<compile_context>
chip_gen: v5e
topology: v5e:2x2
jax: 0.10.0
libtpu: 0.0.40
codegen_flags: <defaults>
</compile_context>

<pallas_src>
import functools

import jax
import jax.numpy as jnp
from jax.experimental import pallas as pl
from jax.experimental.pallas import tpu as pltpu


# ------------------------------ kernel helpers ------------------------------ #

def _silu(v):
    # exp on the EUP; pl.reciprocal keeps the divide off the VALU critical path.
    return v * pl.reciprocal(1.0 + jnp.exp(-v), approx=False)


# --------------------------------- kernel ----------------------------------- #

def _ghost_bottleneck_kernel(x_ref, wpw_ref, chan_ref, o_ref, *, H, W, nb, c1, gc1, gc2):
    HW = H * W
    r1 = nb * gc1            # rows of stage-1 intermediates (y1/y2), images stacked on sublanes
    r2 = nb * gc2            # rows of stage-2 intermediates (z1/z2)
    c2 = 2 * gc2             # == c1 (identity shortcut)

    x = x_ref[...]           # (nb*c1, HW): nb images stacked on the sublane axis

    # ---- 5x5 dwconv boundary masks: built ONCE, shared by both depthwise convs ----
    pos = jax.lax.broadcasted_iota(jnp.int32, (1, HW), 1)
    if (W & (W - 1)) == 0:   # power-of-two width: exact cheap bit ops
        col = jnp.bitwise_and(pos, W - 1)
        row = jnp.right_shift(pos, W.bit_length() - 1)
    else:
        col = pos % W
        row = pos // W
    # index i in [0,5) corresponds to offset d = i - 2
    row_okf = [jnp.where(jnp.logical_and(row + d >= 0, row + d < H), 1.0, 0.0)
               for d in range(-2, 3)]                                   # 5 x (1, HW) f32
    col_okf = [jnp.where(jnp.logical_and(col + d >= 0, col + d < W), 1.0, 0.0)
               for d in range(-2, 3)]                                   # 5 x (1, HW) f32

    def dwconv5x5(y, taps):
        """Depthwise 5x5 'SAME' conv on row-major-flattened (rows, H*W) planes.

        Each row is one (image, channel) plane, so lane rotations never mix images.
        taps: (rows, 25) BN-folded weights, row-major over (ky, kx).
        """
        acc = jnp.zeros(y.shape, jnp.float32)
        for iy in range(5):
            dy = iy - 2
            for ix in range(5):
                dx = ix - 2
                off = dy * W + dx
                shifted = y if off == 0 else pltpu.roll(y, (-off) % HW, 1)
                m = row_okf[iy] * col_okf[ix]                           # (1, HW) hoisted masks
                k = iy * 5 + ix
                acc = acc + shifted * m * taps[:, k:k + 1]
        return acc

    wall = wpw_ref[...]        # packed pointwise-weight slab
    chan = chan_ref[...]       # packed per-channel slab: [:, 0:25]=dw taps, 25=pw bias, 26=dw bias

    # ---- GhostConv #1 (act=SiLU): 1x1 conv (MXU) then cheap depthwise 5x5 ----
    w1 = wall[:r1, :nb * c1]                                            # kron(I_nb, Wpw1)
    y1 = _silu(jnp.dot(w1, x, preferred_element_type=jnp.float32,
                       precision=jax.lax.Precision.HIGHEST) + chan[:r1, 25:26])
    y2 = _silu(dwconv5x5(y1, chan[:r1, 0:25]) + chan[:r1, 26:27])       # (r1, HW)

    # ---- GhostConv #2 (act=Identity): 1x1 conv over cat([y1, y2]) then depthwise 5x5 ----
    w2 = wall[r1:r1 + r2, :2 * r1]                                      # [kron(I,W2a) | kron(I,W2b)]
    ycat = jnp.concatenate([y1, y2], axis=0)                            # (2*r1, HW), tile-aligned
    z1 = (jnp.dot(w2, ycat, preferred_element_type=jnp.float32,
                  precision=jax.lax.Precision.HIGHEST) + chan[r1:, 25:26])
    z2 = dwconv5x5(z1, chan[r1:, 0:25]) + chan[r1:, 26:27]              # (r2, HW)

    # ---- out = cat([z1, z2], channel) + identity shortcut, per image ----
    for b in range(nb):
        xo = b * c2
        zo = b * gc2
        o_ref[xo:xo + gc2, :] = (z1[zo:zo + gc2, :] + x[xo:xo + gc2, :]).astype(o_ref.dtype)
        o_ref[xo + gc2:xo + c2, :] = (z2[zo:zo + gc2, :] + x[xo + gc2:xo + c2, :]).astype(o_ref.dtype)


# --------------------------------- wrapper ----------------------------------- #

def _default_images_per_block(n):
    """Largest divisor of n keeping >= 2 grid steps (feeds both v7x TensorCores)."""
    if n < 2:
        return 1
    for d in range(n // 2, 0, -1):
        if n % d == 0:
            return d
    return 1


def ghost_bottleneck(x_nchw, kp, images_per_block=None):
    N, C1, H, W = x_nchw.shape
    gc1 = kp['wpw1'].shape[0]
    gc2 = kp['wpw2a'].shape[0]
    C2 = 2 * gc2
    HW = H * W
    assert C1 == C2, "s=1 identity shortcut requires c1 == c2"
    assert HW % 128 == 0, "pad H*W up to a multiple of 128 before calling the kernel"

    nb = images_per_block or _default_images_per_block(N)
    assert N % nb == 0, "images_per_block must divide the batch"
    assert (nb * C1) % 8 == 0 or nb == N, "sublane-stacked block should be a multiple of 8 rows"

    # ---- pack the 9 tiny parameter tensors into TWO slabs (3 input DMAs total) ----
    eye = jnp.eye(nb, dtype=jnp.float32)
    w1_big = jnp.kron(eye, kp['wpw1'])                                   # (nb*gc1, nb*C1)
    w2_big = jnp.concatenate([jnp.kron(eye, kp['wpw2a']),
                              jnp.kron(eye, kp['wpw2b'])], axis=1)       # (nb*gc2, 2*nb*gc1)
    wc = max(w1_big.shape[1], w2_big.shape[1])
    padw = lambda w: jnp.pad(w, ((0, 0), (0, wc - w.shape[1])))
    wpw = jnp.concatenate([padw(w1_big), padw(w2_big)], axis=0)          # pointwise-weight slab
    chan1 = jnp.concatenate([jnp.tile(kp['wdw1'], (nb, 1)),
                             jnp.tile(kp['bpw1'], (nb, 1)),
                             jnp.tile(kp['bdw1'], (nb, 1))], axis=1)     # (nb*gc1, 27)
    chan2 = jnp.concatenate([jnp.tile(kp['wdw2'], (nb, 1)),
                             jnp.tile(kp['bpw2'], (nb, 1)),
                             jnp.tile(kp['bdw2'], (nb, 1))], axis=1)     # (nb*gc2, 27)
    chan = jnp.concatenate([chan1, chan2], axis=0)                       # per-channel slab

    x_st = x_nchw.reshape(N * C1, HW).astype(jnp.float32)   # free reshape, NO transpose

    kernel = functools.partial(_ghost_bottleneck_kernel,
                               H=H, W=W, nb=nb, c1=C1, gc1=gc1, gc2=gc2)
    out = pl.pallas_call(
        kernel,
        out_shape=jax.ShapeDtypeStruct((N * C2, HW), jnp.float32),
        grid_spec=pltpu.PrefetchScalarGridSpec(
            num_scalar_prefetch=0,
            grid=(N // nb,),
            in_specs=[pl.BlockSpec((nb * C1, HW), lambda n: (n, 0)),
                      pl.BlockSpec(wpw.shape, lambda n: (0, 0)),
                      pl.BlockSpec(chan.shape, lambda n: (0, 0))],
            out_specs=pl.BlockSpec((nb * C2, HW), lambda n: (n, 0))),
        compiler_params=pltpu.CompilerParams(
            dimension_semantics=("parallel",)),
    )(x_st, wpw, chan)
    return out.reshape(N, C2, H, W)


# --------------------------- parameter construction ------------------------- #

def make_params(key, c1, c2, eps=1e-3):
    assert c1 == c2 and c2 % 4 == 0, "identity shortcut (s=1) needs c1 == c2; c2 % 4 == 0"
    c_mid = c2 // 2            # GhostBottleneck hidden width
    gc1 = c_mid // 2           # GhostConv #1 primary-branch channels
    gc2 = c2 // 2              # GhostConv #2 primary-branch channels
    ks = jax.random.split(key, 8)

    def bn(k, c):
        kg, kb, km, kv = jax.random.split(k, 4)
        return dict(gamma=jax.random.uniform(kg, (c,), jnp.float32, 0.5, 1.5),
                    beta=0.1 * jax.random.normal(kb, (c,), jnp.float32),
                    mean=0.1 * jax.random.normal(km, (c,), jnp.float32),
                    var=jax.random.uniform(kv, (c,), jnp.float32, 0.5, 1.5))

    return dict(
        g1_pw_w=jax.random.normal(ks[0], (gc1, c1, 1, 1), jnp.float32) / jnp.sqrt(c1),
        g1_pw_bn=bn(ks[1], gc1),
        g1_dw_w=jax.random.normal(ks[2], (gc1, 1, 5, 5), jnp.float32) / 5.0,
        g1_dw_bn=bn(ks[3], gc1),
        g2_pw_w=jax.random.normal(ks[4], (gc2, c_mid, 1, 1), jnp.float32) / jnp.sqrt(c_mid),
        g2_pw_bn=bn(ks[5], gc2),
        g2_dw_w=jax.random.normal(ks[6], (gc2, 1, 5, 5), jnp.float32) / 5.0,
        g2_dw_bn=bn(ks[7], gc2),
        eps=eps,
    )


def fold_params(raw):
    """Fold BN scale into the conv weights (eval semantics); reshape for the kernel layout."""
    eps = raw['eps']

    def sb(bnp):
        s = bnp['gamma'] / jnp.sqrt(bnp['var'] + eps)
        return s, bnp['beta'] - bnp['mean'] * s

    s1, b1 = sb(raw['g1_pw_bn'])
    s2, b2 = sb(raw['g1_dw_bn'])
    s3, b3 = sb(raw['g2_pw_bn'])
    s4, b4 = sb(raw['g2_dw_bn'])
    gc1 = raw['g1_pw_w'].shape[0]
    gc2 = raw['g2_pw_w'].shape[0]
    wpw2 = raw['g2_pw_w'][:, :, 0, 0] * s3[:, None]
    return dict(
        wpw1=raw['g1_pw_w'][:, :, 0, 0] * s1[:, None],            # (gc1, c1)
        bpw1=b1[:, None],                                          # (gc1, 1)
        wdw1=raw['g1_dw_w'].reshape(gc1, 25) * s2[:, None],        # (gc1, 25)
        bdw1=b2[:, None],
        wpw2a=wpw2[:, :gc1],                                       # (gc2, gc1) acts on y1
        wpw2b=wpw2[:, gc1:],                                       # (gc2, gc1) acts on y2
        bpw2=b3[:, None],
        wdw2=raw['g2_dw_w'].reshape(gc2, 25) * s4[:, None],        # (gc2, 25)
        bdw2=b4[:, None],
    )


# --------------------------------- reference -------------------------------- #

def _silu_ref(v):
    return v * (1.0 / (1.0 + jnp.exp(-v)))


def ghost_bottleneck_reference(x, raw):
    eps = raw['eps']

    def conv_bn(h, w, bnp, groups, act):
        y = jax.lax.conv_general_dilated(
            h, w, (1, 1), 'SAME',
            feature_group_count=groups,
            dimension_numbers=('NCHW', 'OIHW', 'NCHW'),
            precision=jax.lax.Precision.HIGHEST)
        s = bnp['gamma'] / jnp.sqrt(bnp['var'] + eps)
        b = bnp['beta'] - bnp['mean'] * s
        y = y * s[None, :, None, None] + b[None, :, None, None]
        return _silu_ref(y) if act else y

    y1 = conv_bn(x, raw['g1_pw_w'], raw['g1_pw_bn'], 1, True)
    y2 = conv_bn(y1, raw['g1_dw_w'], raw['g1_dw_bn'], y1.shape[1], True)
    g1 = jnp.concatenate([y1, y2], axis=1)
    z1 = conv_bn(g1, raw['g2_pw_w'], raw['g2_pw_bn'], 1, False)
    z2 = conv_bn(z1, raw['g2_dw_w'], raw['g2_dw_bn'], z1.shape[1], False)
    return jnp.concatenate([z1, z2], axis=1) + x


# ----------------------------------- main ------------------------------------ #

if __name__ == "__main__":
    key = jax.random.PRNGKey(0)
    kx, kw = jax.random.split(key)

    # GhostBottleneck(c1=8, c2=8, k=3, s=1): s=1 -> both stride-2 DWConv blocks are Identity.
    # nb=4 stacks 4 images per grid step (intermediates fill all 8 sublanes), grid=(2,) keeps
    # both v7x TensorCores busy; on 1-TC v5e/v6e images_per_block=N collapses to one step.
    N, C, H, W = 8, 8, 16, 16
    x = jax.random.normal(kx, (N, C, H, W), jnp.float32)

    raw = make_params(kw, C, C)
    folded = fold_params(raw)

    fwd = jax.jit(functools.partial(ghost_bottleneck, images_per_block=4))
    out = jax.block_until_ready(fwd(x, folded))

    ref = ghost_bottleneck_reference(x, raw)
    assert out.shape == (N, C, H, W)
    err = float(jnp.max(jnp.abs(out - ref)))
    assert jnp.allclose(out, ref, atol=1e-3, rtol=1e-3), f"max abs err = {err}"

    print("KERNEL_OK")
</pallas_src>

<mosaic_0001>
module attributes {stable_mosaic.version = 11 : i64} {
  func.func @_ghost_bottleneck_kernel(%arg0: i32, %arg1: memref<32x256xf32, #tpu.memory_space<vmem>>, %arg2: memref<24x32xf32, #tpu.memory_space<vmem>>, %arg3: memref<24x27xf32, #tpu.memory_space<vmem>>, %arg4: memref<32x256xf32, #tpu.memory_space<vmem>>) attributes {dimension_semantics = [#tpu.dimension_semantics<parallel>], iteration_bounds = array<i64: 2>, scalar_prefetch = 0 : i64, scratch_operands = 0 : i64, tpu.core_type = #tpu.core_type<tc>, window_params = [{transform_indices = @transform_0, window_bounds = array<i64: 32, 256>}, {pipeline_mode = #tpu.pipeline_mode<synchronous>, transform_indices = @transform_1, window_bounds = array<i64: 24, 32>}, {pipeline_mode = #tpu.pipeline_mode<synchronous>, transform_indices = @transform_2, window_bounds = array<i64: 24, 27>}, {transform_indices = @transform_3, window_bounds = array<i64: 32, 256>}]} {
    %c0 = arith.constant 0 : index
    %c0_0 = arith.constant 0 : index
    %0 = vector.load %arg1[%c0, %c0_0] : memref<32x256xf32, #tpu.memory_space<vmem>>, vector<32x256xf32>
    %1 = tpu.iota {dimensions = array<i32: 1>} : vector<1x256xi32>
    %c15_i32 = arith.constant 15 : i32
    %2 = vector.broadcast %c15_i32 : i32 to vector<1x256xi32>
    %3 = arith.andi %1, %2 : vector<1x256xi32>
    %c4_i32 = arith.constant 4 : i32
    %4 = vector.broadcast %c4_i32 : i32 to vector<1x256xi32>
    %5 = arith.shrsi %1, %4 : vector<1x256xi32>
    %c-2_i32 = arith.constant -2 : i32
    %6 = vector.broadcast %c-2_i32 : i32 to vector<1x256xi32>
    %7 = arith.addi %5, %6 : vector<1x256xi32>
    %c0_i32 = arith.constant 0 : i32
    %8 = vector.broadcast %c0_i32 : i32 to vector<1x256xi32>
    %9 = arith.cmpi sge, %7, %8 : vector<1x256xi32>
    %c-2_i32_1 = arith.constant -2 : i32
    %10 = vector.broadcast %c-2_i32_1 : i32 to vector<1x256xi32>
    %11 = arith.addi %5, %10 : vector<1x256xi32>
    %c16_i32 = arith.constant 16 : i32
    %12 = vector.broadcast %c16_i32 : i32 to vector<1x256xi32>
    %13 = arith.cmpi slt, %11, %12 : vector<1x256xi32>
    %14 = arith.andi %9, %13 : vector<1x256xi1>
    %cst = arith.constant 1.000000e+00 : f32
    %cst_2 = arith.constant 0.000000e+00 : f32
    %15 = vector.broadcast %cst : f32 to vector<1x256xf32>
    %16 = vector.broadcast %cst_2 : f32 to vector<1x256xf32>
    %17 = arith.select %14, %15, %16 : vector<1x256xi1>, vector<1x256xf32>
    %c-1_i32 = arith.constant -1 : i32
    %18 = vector.broadcast %c-1_i32 : i32 to vector<1x256xi32>
    %19 = arith.addi %5, %18 : vector<1x256xi32>
    %c0_i32_3 = arith.constant 0 : i32
    %20 = vector.broadcast %c0_i32_3 : i32 to vector<1x256xi32>
    %21 = arith.cmpi sge, %19, %20 : vector<1x256xi32>
    %c-1_i32_4 = arith.constant -1 : i32
    %22 = vector.broadcast %c-1_i32_4 : i32 to vector<1x256xi32>
    %23 = arith.addi %5, %22 : vector<1x256xi32>
    %c16_i32_5 = arith.constant 16 : i32
    %24 = vector.broadcast %c16_i32_5 : i32 to vector<1x256xi32>
    %25 = arith.cmpi slt, %23, %24 : vector<1x256xi32>
    %26 = arith.andi %21, %25 : vector<1x256xi1>
    %cst_6 = arith.constant 1.000000e+00 : f32
    %cst_7 = arith.constant 0.000000e+00 : f32
    %27 = vector.broadcast %cst_6 : f32 to vector<1x256xf32>
    %28 = vector.broadcast %cst_7 : f32 to vector<1x256xf32>
    %29 = arith.select %26, %27, %28 : vector<1x256xi1>, vector<1x256xf32>
    %c0_i32_8 = arith.constant 0 : i32
    %30 = vector.broadcast %c0_i32_8 : i32 to vector<1x256xi32>
    %31 = arith.addi %5, %30 : vector<1x256xi32>
    %c0_i32_9 = arith.constant 0 : i32
    %32 = vector.broadcast %c0_i32_9 : i32 to vector<1x256xi32>
    %33 = arith.cmpi sge, %31, %32 : vector<1x256xi32>
    %c0_i32_10 = arith.constant 0 : i32
    %34 = vector.broadcast %c0_i32_10 : i32 to vector<1x256xi32>
    %35 = arith.addi %5, %34 : vector<1x256xi32>
    %c16_i32_11 = arith.constant 16 : i32
    %36 = vector.broadcast %c16_i32_11 : i32 to vector<1x256xi32>
    %37 = arith.cmpi slt, %35, %36 : vector<1x256xi32>
    %38 = arith.andi %33, %37 : vector<1x256xi1>
    %cst_12 = arith.constant 1.000000e+00 : f32
    %cst_13 = arith.constant 0.000000e+00 : f32
    %39 = vector.broadcast %cst_12 : f32 to vector<1x256xf32>
    %40 = vector.broadcast %cst_13 : f32 to vector<1x256xf32>
    %41 = arith.select %38, %39, %40 : vector<1x256xi1>, vector<1x256xf32>
    %c1_i32 = arith.constant 1 : i32
    %42 = vector.broadcast %c1_i32 : i32 to vector<1x256xi32>
    %43 = arith.addi %5, %42 : vector<1x256xi32>
    %c0_i32_14 = arith.constant 0 : i32
    %44 = vector.broadcast %c0_i32_14 : i32 to vector<1x256xi32>
    %45 = arith.cmpi sge, %43, %44 : vector<1x256xi32>
    %c1_i32_15 = arith.constant 1 : i32
    %46 = vector.broadcast %c1_i32_15 : i32 to vector<1x256xi32>
    %47 = arith.addi %5, %46 : vector<1x256xi32>
    %c16_i32_16 = arith.constant 16 : i32
    %48 = vector.broadcast %c16_i32_16 : i32 to vector<1x256xi32>
    %49 = arith.cmpi slt, %47, %48 : vector<1x256xi32>
    %50 = arith.andi %45, %49 : vector<1x256xi1>
    %cst_17 = arith.constant 1.000000e+00 : f32
    %cst_18 = arith.constant 0.000000e+00 : f32
    %51 = vector.broadcast %cst_17 : f32 to vector<1x256xf32>
    %52 = vector.broadcast %cst_18 : f32 to vector<1x256xf32>
    %53 = arith.select %50, %51, %52 : vector<1x256xi1>, vector<1x256xf32>
    %c2_i32 = arith.constant 2 : i32
    %54 = vector.broadcast %c2_i32 : i32 to vector<1x256xi32>
    %55 = arith.addi %5, %54 : vector<1x256xi32>
    %c0_i32_19 = arith.constant 0 : i32
    %56 = vector.broadcast %c0_i32_19 : i32 to vector<1x256xi32>
    %57 = arith.cmpi sge, %55, %56 : vector<1x256xi32>
    %c2_i32_20 = arith.constant 2 : i32
    %58 = vector.broadcast %c2_i32_20 : i32 to vector<1x256xi32>
    %59 = arith.addi %5, %58 : vector<1x256xi32>
    %c16_i32_21 = arith.constant 16 : i32
    %60 = vector.broadcast %c16_i32_21 : i32 to vector<1x256xi32>
    %61 = arith.cmpi slt, %59, %60 : vector<1x256xi32>
    %62 = arith.andi %57, %61 : vector<1x256xi1>
    %cst_22 = arith.constant 1.000000e+00 : f32
    %cst_23 = arith.constant 0.000000e+00 : f32
    %63 = vector.broadcast %cst_22 : f32 to vector<1x256xf32>
    %64 = vector.broadcast %cst_23 : f32 to vector<1x256xf32>
    %65 = arith.select %62, %63, %64 : vector<1x256xi1>, vector<1x256xf32>
    %c-2_i32_24 = arith.constant -2 : i32
    %66 = vector.broadcast %c-2_i32_24 : i32 to vector<1x256xi32>
    %67 = arith.addi %3, %66 : vector<1x256xi32>
    %c0_i32_25 = arith.constant 0 : i32
    %68 = vector.broadcast %c0_i32_25 : i32 to vector<1x256xi32>
    %69 = arith.cmpi sge, %67, %68 : vector<1x256xi32>
    %c-2_i32_26 = arith.constant -2 : i32
    %70 = vector.broadcast %c-2_i32_26 : i32 to vector<1x256xi32>
    %71 = arith.addi %3, %70 : vector<1x256xi32>
    %c16_i32_27 = arith.constant 16 : i32
    %72 = vector.broadcast %c16_i32_27 : i32 to vector<1x256xi32>
    %73 = arith.cmpi slt, %71, %72 : vector<1x256xi32>
    %74 = arith.andi %69, %73 : vector<1x256xi1>
    %cst_28 = arith.constant 1.000000e+00 : f32
    %cst_29 = arith.constant 0.000000e+00 : f32
    %75 = vector.broadcast %cst_28 : f32 to vector<1x256xf32>
    %76 = vector.broadcast %cst_29 : f32 to vector<1x256xf32>
    %77 = arith.select %74, %75, %76 : vector<1x256xi1>, vector<1x256xf32>
    %c-1_i32_30 = arith.constant -1 : i32
    %78 = vector.broadcast %c-1_i32_30 : i32 to vector<1x256xi32>
    %79 = arith.addi %3, %78 : vector<1x256xi32>
    %c0_i32_31 = arith.constant 0 : i32
    %80 = vector.broadcast %c0_i32_31 : i32 to vector<1x256xi32>
    %81 = arith.cmpi sge, %79, %80 : vector<1x256xi32>
    %c-1_i32_32 = arith.constant -1 : i32
    %82 = vector.broadcast %c-1_i32_32 : i32 to vector<1x256xi32>
    %83 = arith.addi %3, %82 : vector<1x256xi32>
    %c16_i32_33 = arith.constant 16 : i32
    %84 = vector.broadcast %c16_i32_33 : i32 to vector<1x256xi32>
    %85 = arith.cmpi slt, %83, %84 : vector<1x256xi32>
    %86 = arith.andi %81, %85 : vector<1x256xi1>
    %cst_34 = arith.constant 1.000000e+00 : f32
    %cst_35 = arith.constant 0.000000e+00 : f32
    %87 = vector.broadcast %cst_34 : f32 to vector<1x256xf32>
    %88 = vector.broadcast %cst_35 : f32 to vector<1x256xf32>
    %89 = arith.select %86, %87, %88 : vector<1x256xi1>, vector<1x256xf32>
    %c0_i32_36 = arith.constant 0 : i32
    %90 = vector.broadcast %c0_i32_36 : i32 to vector<1x256xi32>
    %91 = arith.addi %3, %90 : vector<1x256xi32>
    %c0_i32_37 = arith.constant 0 : i32
    %92 = vector.broadcast %c0_i32_37 : i32 to vector<1x256xi32>
    %93 = arith.cmpi sge, %91, %92 : vector<1x256xi32>
    %c0_i32_38 = arith.constant 0 : i32
    %94 = vector.broadcast %c0_i32_38 : i32 to vector<1x256xi32>
    %95 = arith.addi %3, %94 : vector<1x256xi32>
    %c16_i32_39 = arith.constant 16 : i32
    %96 = vector.broadcast %c16_i32_39 : i32 to vector<1x256xi32>
    %97 = arith.cmpi slt, %95, %96 : vector<1x256xi32>
    %98 = arith.andi %93, %97 : vector<1x256xi1>
    %cst_40 = arith.constant 1.000000e+00 : f32
    %cst_41 = arith.constant 0.000000e+00 : f32
    %99 = vector.broadcast %cst_40 : f32 to vector<1x256xf32>
    %100 = vector.broadcast %cst_41 : f32 to vector<1x256xf32>
    %101 = arith.select %98, %99, %100 : vector<1x256xi1>, vector<1x256xf32>
    %c1_i32_42 = arith.constant 1 : i32
    %102 = vector.broadcast %c1_i32_42 : i32 to vector<1x256xi32>
    %103 = arith.addi %3, %102 : vector<1x256xi32>
    %c0_i32_43 = arith.constant 0 : i32
    %104 = vector.broadcast %c0_i32_43 : i32 to vector<1x256xi32>
    %105 = arith.cmpi sge, %103, %104 : vector<1x256xi32>
    %c1_i32_44 = arith.constant 1 : i32
    %106 = vector.broadcast %c1_i32_44 : i32 to vector<1x256xi32>
    %107 = arith.addi %3, %106 : vector<1x256xi32>
    %c16_i32_45 = arith.constant 16 : i32
    %108 = vector.broadcast %c16_i32_45 : i32 to vector<1x256xi32>
    %109 = arith.cmpi slt, %107, %108 : vector<1x256xi32>
    %110 = arith.andi %105, %109 : vector<1x256xi1>
    %cst_46 = arith.constant 1.000000e+00 : f32
    %cst_47 = arith.constant 0.000000e+00 : f32
    %111 = vector.broadcast %cst_46 : f32 to vector<1x256xf32>
    %112 = vector.broadcast %cst_47 : f32 to vector<1x256xf32>
    %113 = arith.select %110, %111, %112 : vector<1x256xi1>, vector<1x256xf32>
    %c2_i32_48 = arith.constant 2 : i32
    %114 = vector.broadcast %c2_i32_48 : i32 to vector<1x256xi32>
    %115 = arith.addi %3, %114 : vector<1x256xi32>
    %c0_i32_49 = arith.constant 0 : i32
    %116 = vector.broadcast %c0_i32_49 : i32 to vector<1x256xi32>
    %117 = arith.cmpi sge, %115, %116 : vector<1x256xi32>
    %c2_i32_50 = arith.constant 2 : i32
    %118 = vector.broadcast %c2_i32_50 : i32 to vector<1x256xi32>
    %119 = arith.addi %3, %118 : vector<1x256xi32>
    %c16_i32_51 = arith.constant 16 : i32
    %120 = vector.broadcast %c16_i32_51 : i32 to vector<1x256xi32>
    %121 = arith.cmpi slt, %119, %120 : vector<1x256xi32>
    %122 = arith.andi %117, %121 : vector<1x256xi1>
    %cst_52 = arith.constant 1.000000e+00 : f32
    %cst_53 = arith.constant 0.000000e+00 : f32
    %123 = vector.broadcast %cst_52 : f32 to vector<1x256xf32>
    %124 = vector.broadcast %cst_53 : f32 to vector<1x256xf32>
    %125 = arith.select %122, %123, %124 : vector<1x256xi1>, vector<1x256xf32>
    %c0_54 = arith.constant 0 : index
    %c0_55 = arith.constant 0 : index
    %126 = vector.load %arg2[%c0_54, %c0_55] : memref<24x32xf32, #tpu.memory_space<vmem>>, vector<24x32xf32>
    %c0_56 = arith.constant 0 : index
    %c0_57 = arith.constant 0 : index
    %127 = vector.load %arg3[%c0_56, %c0_57] : memref<24x27xf32, #tpu.memory_space<vmem>>, vector<24x27xf32>
    %128 = vector.extract_strided_slice %126 {offsets = [0, 0], sizes = [8, 32], strides = [1, 1]} : vector<24x32xf32> to vector<8x32xf32>
    %cst_58 = arith.constant dense<0.000000e+00> : vector<8x256xf32>
    %129 = tpu.matmul %128, %0, %cst_58 {dimension_numbers = #tpu.dot_dimension_numbers<[1], [0], [0], [1], [0, 0, 1, 1], [], []>, precision = #tpu.contract_precision<fp32>} : vector<8x32xf32>, vector<32x256xf32>, vector<8x256xf32> -> vector<8x256xf32>
    %130 = vector.extract_strided_slice %127 {offsets = [0, 25], sizes = [8, 1], strides = [1, 1]} : vector<24x27xf32> to vector<8x1xf32>
    %131 = vector.broadcast %130 : vector<8x1xf32> to vector<8x256xf32>
    %132 = arith.addf %129, %131 : vector<8x256xf32>
    %cst_59 = arith.constant 0.000000e+00 : f32
    %133 = vector.broadcast %cst_59 : f32 to vector<8x256xf32>
    %134 = arith.subf %133, %132 : vector<8x256xf32>
    %135 = math.exp %134 : vector<8x256xf32>
    %cst_60 = arith.constant 1.000000e+00 : f32
    %136 = vector.broadcast %cst_60 : f32 to vector<8x256xf32>
    %137 = arith.addf %136, %135 : vector<8x256xf32>
    %138 = tpu.reciprocal %137 : vector<8x256xf32> -> vector<8x256xf32>
    %139 = arith.mulf %132, %138 : vector<8x256xf32>
    %140 = vector.extract_strided_slice %127 {offsets = [0, 0], sizes = [8, 25], strides = [1, 1]} : vector<24x27xf32> to vector<8x25xf32>
    %cst_61 = arith.constant 0.000000e+00 : f32
    %141 = vector.broadcast %cst_61 : f32 to vector<8x256xf32>
    %c34_i32 = arith.constant 34 : i32
    %142 = tpu.dynamic_rotate %139 by %c34_i32 dim 1 : vector<8x256xf32>, i32 -> vector<8x256xf32>
    %143 = arith.mulf %17, %77 : vector<1x256xf32>
    %144 = vector.broadcast %143 : vector<1x256xf32> to vector<8x256xf32>
    %145 = arith.mulf %142, %144 : vector<8x256xf32>
    %146 = vector.extract_strided_slice %140 {offsets = [0, 0], sizes = [8, 1], strides = [1, 1]} : vector<8x25xf32> to vector<8x1xf32>
    %147 = vector.broadcast %146 : vector<8x1xf32> to vector<8x256xf32>
    %148 = arith.mulf %145, %147 : vector<8x256xf32>
    %149 = arith.addf %141, %148 : vector<8x256xf32>
    %c33_i32 = arith.constant 33 : i32
    %150 = tpu.dynamic_rotate %139 by %c33_i32 dim 1 : vector<8x256xf32>, i32 -> vector<8x256xf32>
    %151 = arith.mulf %17, %89 : vector<1x256xf32>
    %152 = vector.broadcast %151 : vector<1x256xf32> to vector<8x256xf32>
    %153 = arith.mulf %150, %152 : vector<8x256xf32>
    %154 = vector.extract_strided_slice %140 {offsets = [0, 1], sizes = [8, 1], strides = [1, 1]} : vector<8x25xf32> to vector<8x1xf32>
    %155 = vector.broadcast %154 : vector<8x1xf32> to vector<8x256xf32>
    %156 = arith.mulf %153, %155 : vector<8x256xf32>
    %157 = arith.addf %149, %156 : vector<8x256xf32>
    %c32_i32 = arith.constant 32 : i32
    %158 = tpu.dynamic_rotate %139 by %c32_i32 dim 1 : vector<8x256xf32>, i32 -> vector<8x256xf32>
    %159 = arith.mulf %17, %101 : vector<1x256xf32>
    %160 = vector.broadcast %159 : vector<1x256xf32> to vector<8x256xf32>
    %161 = arith.mulf %158, %160 : vector<8x256xf32>
    %162 = vector.extract_strided_slice %140 {offsets = [0, 2], sizes = [8, 1], strides = [1, 1]} : vector<8x25xf32> to vector<8x1xf32>
    %163 = vector.broadcast %162 : vector<8x1xf32> to vector<8x256xf32>
    %164 = arith.mulf %161, %163 : vector<8x256xf32>
    %165 = arith.addf %157, %164 : vector<8x256xf32>
    %c31_i32 = arith.constant 31 : i32
    %166 = tpu.dynamic_rotate %139 by %c31_i32 dim 1 : vector<8x256xf32>, i32 -> vector<8x256xf32>
    %167 = arith.mulf %17, %113 : vector<1x256xf32>
    %168 = vector.broadcast %167 : vector<1x256xf32> to vector<8x256xf32>
    %169 = arith.mulf %166, %168 : vector<8x256xf32>
    %170 = vector.extract_strided_slice %140 {offsets = [0, 3], sizes = [8, 1], strides = [1, 1]} : vector<8x25xf32> to vector<8x1xf32>
    %171 = vector.broadcast %170 : vector<8x1xf32> to vector<8x256xf32>
    %172 = arith.mulf %169, %171 : vector<8x256xf32>
    %173 = arith.addf %165, %172 : vector<8x256xf32>
    %c30_i32 = arith.constant 30 : i32
    %174 = tpu.dynamic_rotate %139 by %c30_i32 dim 1 : vector<8x256xf32>, i32 -> vector<8x256xf32>
    %175 = arith.mulf %17, %125 : vector<1x256xf32>
    %176 = vector.broadcast %175 : vector<1x256xf32> to vector<8x256xf32>
    %177 = arith.mulf %174, %176 : vector<8x256xf32>
    %178 = vector.extract_strided_slice %140 {offsets = [0, 4], sizes = [8, 1], strides = [1, 1]} : vector<8x25xf32> to vector<8x1xf32>
    %179 = vector.broadcast %178 : vector<8x1xf32> to vector<8x256xf32>
    %180 = arith.mulf %177, %179 : vector<8x256xf32>
    %181 = arith.addf %173, %180 : vector<8x256xf32>
    %c18_i32 = arith.constant 18 : i32
    %182 = tpu.dynamic_rotate %139 by %c18_i32 dim 1 : vector<8x256xf32>, i32 -> vector<8x256xf32>
    %183 = arith.mulf %29, %77 : vector<1x256xf32>
    %184 = vector.broadcast %183 : vector<1x256xf32> to vector<8x256xf32>
    %185 = arith.mulf %182, %184 : vector<8x256xf32>
    %186 = vector.extract_strided_slice %140 {offsets = [0, 5], sizes = [8, 1], strides = [1, 1]} : vector<8x25xf32> to vector<8x1xf32>
    %187 = vector.broadcast %186 : vector<8x1xf32> to vector<8x256xf32>
    %188 = arith.mulf %185, %187 : vector<8x256xf32>
    %189 = arith.addf %181, %188 : vector<8x256xf32>
    %c17_i32 = arith.constant 17 : i32
    %190 = tpu.dynamic_rotate %139 by %c17_i32 dim 1 : vector<8x256xf32>, i32 -> vector<8x256xf32>
    %191 = arith.mulf %29, %89 : vector<1x256xf32>
    %192 = vector.broadcast %191 : vector<1x256xf32> to vector<8x256xf32>
    %193 = arith.mulf %190, %192 : vector<8x256xf32>
    %194 = vector.extract_strided_slice %140 {offsets = [0, 6], sizes = [8, 1], strides = [1, 1]} : vector<8x25xf32> to vector<8x1xf32>
    %195 = vector.broadcast %194 : vector<8x1xf32> to vector<8x256xf32>
    %196 = arith.mulf %193, %195 : vector<8x256xf32>
    %197 = arith.addf %189, %196 : vector<8x256xf32>
    %c16_i32_62 = arith.constant 16 : i32
    %198 = tpu.dynamic_rotate %139 by %c16_i32_62 dim 1 : vector<8x256xf32>, i32 -> vector<8x256xf32>
    %199 = arith.mulf %29, %101 : vector<1x256xf32>
    %200 = vector.broadcast %199 : vector<1x256xf32> to vector<8x256xf32>
    %201 = arith.mulf %198, %200 : vector<8x256xf32>
    %202 = vector.extract_strided_slice %140 {offsets = [0, 7], sizes = [8, 1], strides = [1, 1]} : vector<8x25xf32> to vector<8x1xf32>
    %203 = vector.broadcast %202 : vector<8x1xf32> to vector<8x256xf32>
    %204 = arith.mulf %201, %203 : vector<8x256xf32>
    %205 = arith.addf %197, %204 : vector<8x256xf32>
    %c15_i32_63 = arith.constant 15 : i32
    %206 = tpu.dynamic_rotate %139 by %c15_i32_63 dim 1 : vector<8x256xf32>, i32 -> vector<8x256xf32>
    %207 = arith.mulf %29, %113 : vector<1x256xf32>
    %208 = vector.broadcast %207 : vector<1x256xf32> to vector<8x256xf32>
    %209 = arith.mulf %206, %208 : vector<8x256xf32>
    %210 = vector.extract_strided_slice %140 {offsets = [0, 8], sizes = [8, 1], strides = [1, 1]} : vector<8x25xf32> to vector<8x1xf32>
    %211 = vector.broadcast %210 : vector<8x1xf32> to vector<8x256xf32>
    %212 = arith.mulf %209, %211 : vector<8x256xf32>
    %213 = arith.addf %205, %212 : vector<8x256xf32>
    %c14_i32 = arith.constant 14 : i32
    %214 = tpu.dynamic_rotate %139 by %c14_i32 dim 1 : vector<8x256xf32>, i32 -> vector<8x256xf32>
    %215 = arith.mulf %29, %125 : vector<1x256xf32>
    %216 = vector.broadcast %215 : vector<1x256xf32> to vector<8x256xf32>
    %217 = arith.mulf %214, %216 : vector<8x256xf32>
    %218 = vector.extract_strided_slice %140 {offsets = [0, 9], sizes = [8, 1], strides = [1, 1]} : vector<8x25xf32> to vector<8x1xf32>
    %219 = vector.broadcast %218 : vector<8x1xf32> to vector<8x256xf32>
    %220 = arith.mulf %217, %219 : vector<8x256xf32>
    %221 = arith.addf %213, %220 : vector<8x256xf32>
    %c2_i32_64 = arith.constant 2 : i32
    %222 = tpu.dynamic_rotate %139 by %c2_i32_64 dim 1 : vector<8x256xf32>, i32 -> vector<8x256xf32>
    %223 = arith.mulf %41, %77 : vector<1x256xf32>
    %224 = vector.broadcast %223 : vector<1x256xf32> to vector<8x256xf32>
    %225 = arith.mulf %222, %224 : vector<8x256xf32>
    %226 = vector.extract_strided_slice %140 {offsets = [0, 10], sizes = [8, 1], strides = [1, 1]} : vector<8x25xf32> to vector<8x1xf32>
    %227 = vector.broadcast %226 : vector<8x1xf32> to vector<8x256xf32>
    %228 = arith.mulf %225, %227 : vector<8x256xf32>
    %229 = arith.addf %221, %228 : vector<8x256xf32>
    %c1_i32_65 = arith.constant 1 : i32
    %230 = tpu.dynamic_rotate %139 by %c1_i32_65 dim 1 : vector<8x256xf32>, i32 -> vector<8x256xf32>
    %231 = arith.mulf %41, %89 : vector<1x256xf32>
    %232 = vector.broadcast %231 : vector<1x256xf32> to vector<8x256xf32>
    %233 = arith.mulf %230, %232 : vector<8x256xf32>
    %234 = vector.extract_strided_slice %140 {offsets = [0, 11], sizes = [8, 1], strides = [1, 1]} : vector<8x25xf32> to vector<8x1xf32>
    %235 = vector.broadcast %234 : vector<8x1xf32> to vector<8x256xf32>
    %236 = arith.mulf %233, %235 : vector<8x256xf32>
    %237 = arith.addf %229, %236 : vector<8x256xf32>
    %238 = arith.mulf %41, %101 : vector<1x256xf32>
    %239 = vector.broadcast %238 : vector<1x256xf32> to vector<8x256xf32>
    %240 = arith.mulf %139, %239 : vector<8x256xf32>
    %241 = vector.extract_strided_slice %140 {offsets = [0, 12], sizes = [8, 1], strides = [1, 1]} : vector<8x25xf32> to vector<8x1xf32>
    %242 = vector.broadcast %241 : vector<8x1xf32> to vector<8x256xf32>
    %243 = arith.mulf %240, %242 : vector<8x256xf32>
    %244 = arith.addf %237, %243 : vector<8x256xf32>
    %c255_i32 = arith.constant 255 : i32
    %245 = tpu.dynamic_rotate %139 by %c255_i32 dim 1 : vector<8x256xf32>, i32 -> vector<8x256xf32>
    %246 = arith.mulf %41, %113 : vector<1x256xf32>
    %247 = vector.broadcast %246 : vector<1x256xf32> to vector<8x256xf32>
    %248 = arith.mulf %245, %247 : vector<8x256xf32>
    %249 = vector.extract_strided_slice %140 {offsets = [0, 13], sizes = [8, 1], strides = [1, 1]} : vector<8x25xf32> to vector<8x1xf32>
    %250 = vector.broadcast %249 : vector<8x1xf32> to vector<8x256xf32>
    %251 = arith.mulf %248, %250 : vector<8x256xf32>
    %252 = arith.addf %244, %251 : vector<8x256xf32>
    %c254_i32 = arith.constant 254 : i32
    %253 = tpu.dynamic_rotate %139 by %c254_i32 dim 1 : vector<8x256xf32>, i32 -> vector<8x256xf32>
    %254 = arith.mulf %41, %125 : vector<1x256xf32>
    %255 = vector.broadcast %254 : vector<1x256xf32> to vector<8x256xf32>
    %256 = arith.mulf %253, %255 : vector<8x256xf32>
    %257 = vector.extract_strided_slice %140 {offsets = [0, 14], sizes = [8, 1], strides = [1, 1]} : vector<8x25xf32> to vector<8x1xf32>
    %258 = vector.broadcast %257 : vector<8x1xf32> to vector<8x256xf32>
    %259 = arith.mulf %256, %258 : vector<8x256xf32>
    %260 = arith.addf %252, %259 : vector<8x256xf32>
    %c242_i32 = arith.constant 242 : i32
    %261 = tpu.dynamic_rotate %139 by %c242_i32 dim 1 : vector<8x256xf32>, i32 -> vector<8x256xf32>
    %262 = arith.mulf %53, %77 : vector<1x256xf32>
    %263 = vector.broadcast %262 : vector<1x256xf32> to vector<8x256xf32>
    %264 = arith.mulf %261, %263 : vector<8x256xf32>
    %265 = vector.extract_strided_slice %140 {offsets = [0, 15], sizes = [8, 1], strides = [1, 1]} : vector<8x25xf32> to vector<8x1xf32>
    %266 = vector.broadcast %265 : vector<8x1xf32> to vector<8x256xf32>
    %267 = arith.mulf %264, %266 : vector<8x256xf32>
    %268 = arith.addf %260, %267 : vector<8x256xf32>
    %c241_i32 = arith.constant 241 : i32
    %269 = tpu.dynamic_rotate %139 by %c241_i32 dim 1 : vector<8x256xf32>, i32 -> vector<8x256xf32>
    %270 = arith.mulf %53, %89 : vector<1x256xf32>
    %271 = vector.broadcast %270 : vector<1x256xf32> to vector<8x256xf32>
    %272 = arith.mulf %269, %271 : vector<8x256xf32>
    %273 = vector.extract_strided_slice %140 {offsets = [0, 16], sizes = [8, 1], strides = [1, 1]} : vector<8x25xf32> to vector<8x1xf32>
    %274 = vector.broadcast %273 : vector<8x1xf32> to vector<8x256xf32>
    %275 = arith.mulf %272, %274 : vector<8x256xf32>
    %276 = arith.addf %268, %275 : vector<8x256xf32>
    %c240_i32 = arith.constant 240 : i32
    %277 = tpu.dynamic_rotate %139 by %c240_i32 dim 1 : vector<8x256xf32>, i32 -> vector<8x256xf32>
    %278 = arith.mulf %53, %101 : vector<1x256xf32>
    %279 = vector.broadcast %278 : vector<1x256xf32> to vector<8x256xf32>
    %280 = arith.mulf %277, %279 : vector<8x256xf32>
    %281 = vector.extract_strided_slice %140 {offsets = [0, 17], sizes = [8, 1], strides = [1, 1]} : vector<8x25xf32> to vector<8x1xf32>
    %282 = vector.broadcast %281 : vector<8x1xf32> to vector<8x256xf32>
    %283 = arith.mulf %280, %282 : vector<8x256xf32>
    %284 = arith.addf %276, %283 : vector<8x256xf32>
    %c239_i32 = arith.constant 239 : i32
    %285 = tpu.dynamic_rotate %139 by %c239_i32 dim 1 : vector<8x256xf32>, i32 -> vector<8x256xf32>
    %286 = arith.mulf %53, %113 : vector<1x256xf32>
    %287 = vector.broadcast %286 : vector<1x256xf32> to vector<8x256xf32>
    %288 = arith.mulf %285, %287 : vector<8x256xf32>
    %289 = vector.extract_strided_slice %140 {offsets = [0, 18], sizes = [8, 1], strides = [1, 1]} : vector<8x25xf32> to vector<8x1xf32>
    %290 = vector.broadcast %289 : vector<8x1xf32> to vector<8x256xf32>
    %291 = arith.mulf %288, %290 : vector<8x256xf32>
    %292 = arith.addf %284, %291 : vector<8x256xf32>
    %c238_i32 = arith.constant 238 : i32
    %293 = tpu.dynamic_rotate %139 by %c238_i32 dim 1 : vector<8x256xf32>, i32 -> vector<8x256xf32>
    %294 = arith.mulf %53, %125 : vector<1x256xf32>
    %295 = vector.broadcast %294 : vector<1x256xf32> to vector<8x256xf32>
    %296 = arith.mulf %293, %295 : vector<8x256xf32>
    %297 = vector.extract_strided_slice %140 {offsets = [0, 19], sizes = [8, 1], strides = [1, 1]} : vector<8x25xf32> to vector<8x1xf32>
    %298 = vector.broadcast %297 : vector<8x1xf32> to vector<8x256xf32>
    %299 = arith.mulf %296, %298 : vector<8x256xf32>
    %300 = arith.addf %292, %299 : vector<8x256xf32>
    %c226_i32 = arith.constant 226 : i32
    %301 = tpu.dynamic_rotate %139 by %c226_i32 dim 1 : vector<8x256xf32>, i32 -> vector<8x256xf32>
    %302 = arith.mulf %65, %77 : vector<1x256xf32>
    %303 = vector.broadcast %302 : vector<1x256xf32> to vector<8x256xf32>
    %304 = arith.mulf %301, %303 : vector<8x256xf32>
    %305 = vector.extract_strided_slice %140 {offsets = [0, 20], sizes = [8, 1], strides = [1, 1]} : vector<8x25xf32> to vector<8x1xf32>
    %306 = vector.broadcast %305 : vector<8x1xf32> to vector<8x256xf32>
    %307 = arith.mulf %304, %306 : vector<8x256xf32>
    %308 = arith.addf %300, %307 : vector<8x256xf32>
    %c225_i32 = arith.constant 225 : i32
    %309 = tpu.dynamic_rotate %139 by %c225_i32 dim 1 : vector<8x256xf32>, i32 -> vector<8x256xf32>
    %310 = arith.mulf %65, %89 : vector<1x256xf32>
    %311 = vector.broadcast %310 : vector<1x256xf32> to vector<8x256xf32>
    %312 = arith.mulf %309, %311 : vector<8x256xf32>
    %313 = vector.extract_strided_slice %140 {offsets = [0, 21], sizes = [8, 1], strides = [1, 1]} : vector<8x25xf32> to vector<8x1xf32>
    %314 = vector.broadcast %313 : vector<8x1xf32> to vector<8x256xf32>
    %315 = arith.mulf %312, %314 : vector<8x256xf32>
    %316 = arith.addf %308, %315 : vector<8x256xf32>
    %c224_i32 = arith.constant 224 : i32
    %317 = tpu.dynamic_rotate %139 by %c224_i32 dim 1 : vector<8x256xf32>, i32 -> vector<8x256xf32>
    %318 = arith.mulf %65, %101 : vector<1x256xf32>
    %319 = vector.broadcast %318 : vector<1x256xf32> to vector<8x256xf32>
    %320 = arith.mulf %317, %319 : vector<8x256xf32>
    %321 = vector.extract_strided_slice %140 {offsets = [0, 22], sizes = [8, 1], strides = [1, 1]} : vector<8x25xf32> to vector<8x1xf32>
    %322 = vector.broadcast %321 : vector<8x1xf32> to vector<8x256xf32>
    %323 = arith.mulf %320, %322 : vector<8x256xf32>
    %324 = arith.addf %316, %323 : vector<8x256xf32>
    %c223_i32 = arith.constant 223 : i32
    %325 = tpu.dynamic_rotate %139 by %c223_i32 dim 1 : vector<8x256xf32>, i32 -> vector<8x256xf32>
    %326 = arith.mulf %65, %113 : vector<1x256xf32>
    %327 = vector.broadcast %326 : vector<1x256xf32> to vector<8x256xf32>
    %328 = arith.mulf %325, %327 : vector<8x256xf32>
    %329 = vector.extract_strided_slice %140 {offsets = [0, 23], sizes = [8, 1], strides = [1, 1]} : vector<8x25xf32> to vector<8x1xf32>
    %330 = vector.broadcast %329 : vector<8x1xf32> to vector<8x256xf32>
    %331 = arith.mulf %328, %330 : vector<8x256xf32>
    %332 = arith.addf %324, %331 : vector<8x256xf32>
    %c222_i32 = arith.constant 222 : i32
    %333 = tpu.dynamic_rotate %139 by %c222_i32 dim 1 : vector<8x256xf32>, i32 -> vector<8x256xf32>
    %334 = arith.mulf %65, %125 : vector<1x256xf32>
    %335 = vector.broadcast %334 : vector<1x256xf32> to vector<8x256xf32>
    %336 = arith.mulf %333, %335 : vector<8x256xf32>
    %337 = vector.extract_strided_slice %140 {offsets = [0, 24], sizes = [8, 1], strides = [1, 1]} : vector<8x25xf32> to vector<8x1xf32>
    %338 = vector.broadcast %337 : vector<8x1xf32> to vector<8x256xf32>
    %339 = arith.mulf %336, %338 : vector<8x256xf32>
    %340 = arith.addf %332, %339 : vector<8x256xf32>
    %341 = vector.extract_strided_slice %127 {offsets = [0, 26], sizes = [8, 1], strides = [1, 1]} : vector<24x27xf32> to vector<8x1xf32>
    %342 = vector.broadcast %341 : vector<8x1xf32> to vector<8x256xf32>
    %343 = arith.addf %340, %342 : vector<8x256xf32>
    %cst_66 = arith.constant 0.000000e+00 : f32
    %344 = vector.broadcast %cst_66 : f32 to vector<8x256xf32>
    %345 = arith.subf %344, %343 : vector<8x256xf32>
    %346 = math.exp %345 : vector<8x256xf32>
    %cst_67 = arith.constant 1.000000e+00 : f32
    %347 = vector.broadcast %cst_67 : f32 to vector<8x256xf32>
    %348 = arith.addf %347, %346 : vector<8x256xf32>
    %349 = tpu.reciprocal %348 : vector<8x256xf32> -> vector<8x256xf32>
    %350 = arith.mulf %343, %349 : vector<8x256xf32>
    %351 = vector.extract_strided_slice %126 {offsets = [8, 0], sizes = [16, 16], strides = [1, 1]} : vector<24x32xf32> to vector<16x16xf32>
    %352 = tpu.concatenate %139, %350 in 0 : vector<8x256xf32>, vector<8x256xf32> -> vector<16x256xf32>
    %cst_68 = arith.constant dense<0.000000e+00> : vector<16x256xf32>
    %353 = tpu.matmul %351, %352, %cst_68 {dimension_numbers = #tpu.dot_dimension_numbers<[1], [0], [0], [1], [0, 0, 1, 1], [], []>, precision = #tpu.contract_precision<fp32>} : vector<16x16xf32>, vector<16x256xf32>, vector<16x256xf32> -> vector<16x256xf32>
    %354 = vector.extract_strided_slice %127 {offsets = [8, 25], sizes = [16, 1], strides = [1, 1]} : vector<24x27xf32> to vector<16x1xf32>
    %355 = vector.broadcast %354 : vector<16x1xf32> to vector<16x256xf32>
    %356 = arith.addf %353, %355 : vector<16x256xf32>
    %357 = vector.extract_strided_slice %127 {offsets = [8, 0], sizes = [16, 25], strides = [1, 1]} : vector<24x27xf32> to vector<16x25xf32>
    %cst_69 = arith.constant 0.000000e+00 : f32
    %358 = vector.broadcast %cst_69 : f32 to vector<16x256xf32>
    %c34_i32_70 = arith.constant 34 : i32
    %359 = tpu.dynamic_rotate %356 by %c34_i32_70 dim 1 : vector<16x256xf32>, i32 -> vector<16x256xf32>
    %360 = arith.mulf %17, %77 : vector<1x256xf32>
    %361 = vector.broadcast %360 : vector<1x256xf32> to vector<16x256xf32>
    %362 = arith.mulf %359, %361 : vector<16x256xf32>
    %363 = vector.extract_strided_slice %357 {offsets = [0, 0], sizes = [16, 1], strides = [1, 1]} : vector<16x25xf32> to vector<16x1xf32>
    %364 = vector.broadcast %363 : vector<16x1xf32> to vector<16x256xf32>
    %365 = arith.mulf %362, %364 : vector<16x256xf32>
    %366 = arith.addf %358, %365 : vector<16x256xf32>
    %c33_i32_71 = arith.constant 33 : i32
    %367 = tpu.dynamic_rotate %356 by %c33_i32_71 dim 1 : vector<16x256xf32>, i32 -> vector<16x256xf32>
    %368 = arith.mulf %17, %89 : vector<1x256xf32>
    %369 = vector.broadcast %368 : vector<1x256xf32> to vector<16x256xf32>
    %370 = arith.mulf %367, %369 : vector<16x256xf32>
    %371 = vector.extract_strided_slice %357 {offsets = [0, 1], sizes = [16, 1], strides = [1, 1]} : vector<16x25xf32> to vector<16x1xf32>
    %372 = vector.broadcast %371 : vector<16x1xf32> to vector<16x256xf32>
    %373 = arith.mulf %370, %372 : vector<16x256xf32>
    %374 = arith.addf %366, %373 : vector<16x256xf32>
    %c32_i32_72 = arith.constant 32 : i32
    %375 = tpu.dynamic_rotate %356 by %c32_i32_72 dim 1 : vector<16x256xf32>, i32 -> vector<16x256xf32>
    %376 = arith.mulf %17, %101 : vector<1x256xf32>
    %377 = vector.broadcast %376 : vector<1x256xf32> to vector<16x256xf32>
    %378 = arith.mulf %375, %377 : vector<16x256xf32>
    %379 = vector.extract_strided_slice %357 {offsets = [0, 2], sizes = [16, 1], strides = [1, 1]} : vector<16x25xf32> to vector<16x1xf32>
    %380 = vector.broadcast %379 : vector<16x1xf32> to vector<16x256xf32>
    %381 = arith.mulf %378, %380 : vector<16x256xf32>
    %382 = arith.addf %374, %381 : vector<16x256xf32>
    %c31_i32_73 = arith.constant 31 : i32
    %383 = tpu.dynamic_rotate %356 by %c31_i32_73 dim 1 : vector<16x256xf32>, i32 -> vector<16x256xf32>
    %384 = arith.mulf %17, %113 : vector<1x256xf32>
    %385 = vector.broadcast %384 : vector<1x256xf32> to vector<16x256xf32>
    %386 = arith.mulf %383, %385 : vector<16x256xf32>
    %387 = vector.extract_strided_slice %357 {offsets = [0, 3], sizes = [16, 1], strides = [1, 1]} : vector<16x25xf32> to vector<16x1xf32>
    %388 = vector.broadcast %387 : vector<16x1xf32> to vector<16x256xf32>
    %389 = arith.mulf %386, %388 : vector<16x256xf32>
    %390 = arith.addf %382, %389 : vector<16x256xf32>
    %c30_i32_74 = arith.constant 30 : i32
    %391 = tpu.dynamic_rotate %356 by %c30_i32_74 dim 1 : vector<16x256xf32>, i32 -> vector<16x256xf32>
    %392 = arith.mulf %17, %125 : vector<1x256xf32>
    %393 = vector.broadcast %392 : vector<1x256xf32> to vector<16x256xf32>
    %394 = arith.mulf %391, %393 : vector<16x256xf32>
    %395 = vector.extract_strided_slice %357 {offsets = [0, 4], sizes = [16, 1], strides = [1, 1]} : vector<16x25xf32> to vector<16x1xf32>
    %396 = vector.broadcast %395 : vector<16x1xf32> to vector<16x256xf32>
    %397 = arith.mulf %394, %396 : vector<16x256xf32>
    %398 = arith.addf %390, %397 : vector<16x256xf32>
    %c18_i32_75 = arith.constant 18 : i32
    %399 = tpu.dynamic_rotate %356 by %c18_i32_75 dim 1 : vector<16x256xf32>, i32 -> vector<16x256xf32>
    %400 = arith.mulf %29, %77 : vector<1x256xf32>
    %401 = vector.broadcast %400 : vector<1x256xf32> to vector<16x256xf32>
    %402 = arith.mulf %399, %401 : vector<16x256xf32>
    %403 = vector.extract_strided_slice %357 {offsets = [0, 5], sizes = [16, 1], strides = [1, 1]} : vector<16x25xf32> to vector<16x1xf32>
    %404 = vector.broadcast %403 : vector<16x1xf32> to vector<16x256xf32>
    %405 = arith.mulf %402, %404 : vector<16x256xf32>
    %406 = arith.addf %398, %405 : vector<16x256xf32>
    %c17_i32_76 = arith.constant 17 : i32
    %407 = tpu.dynamic_rotate %356 by %c17_i32_76 dim 1 : vector<16x256xf32>, i32 -> vector<16x256xf32>
    %408 = arith.mulf %29, %89 : vector<1x256xf32>
    %409 = vector.broadcast %408 : vector<1x256xf32> to vector<16x256xf32>
    %410 = arith.mulf %407, %409 : vector<16x256xf32>
    %411 = vector.extract_strided_slice %357 {offsets = [0, 6], sizes = [16, 1], strides = [1, 1]} : vector<16x25xf32> to vector<16x1xf32>
    %412 = vector.broadcast %411 : vector<16x1xf32> to vector<16x256xf32>
    %413 = arith.mulf %410, %412 : vector<16x256xf32>
    %414 = arith.addf %406, %413 : vector<16x256xf32>
    %c16_i32_77 = arith.constant 16 : i32
    %415 = tpu.dynamic_rotate %356 by %c16_i32_77 dim 1 : vector<16x256xf32>, i32 -> vector<16x256xf32>
    %416 = arith.mulf %29, %101 : vector<1x256xf32>
    %417 = vector.broadcast %416 : vector<1x256xf32> to vector<16x256xf32>
    %418 = arith.mulf %415, %417 : vector<16x256xf32>
    %419 = vector.extract_strided_slice %357 {offsets = [0, 7], sizes = [16, 1], strides = [1, 1]} : vector<16x25xf32> to vector<16x1xf32>
    %420 = vector.broadcast %419 : vector<16x1xf32> to vector<16x256xf32>
    %421 = arith.mulf %418, %420 : vector<16x256xf32>
    %422 = arith.addf %414, %421 : vector<16x256xf32>
    %c15_i32_78 = arith.constant 15 : i32
    %423 = tpu.dynamic_rotate %356 by %c15_i32_78 dim 1 : vector<16x256xf32>, i32 -> vector<16x256xf32>
    %424 = arith.mulf %29, %113 : vector<1x256xf32>
    %425 = vector.broadcast %424 : vector<1x256xf32> to vector<16x256xf32>
    %426 = arith.mulf %423, %425 : vector<16x256xf32>
    %427 = vector.extract_strided_slice %357 {offsets = [0, 8], sizes = [16, 1], strides = [1, 1]} : vector<16x25xf32> to vector<16x1xf32>
    %428 = vector.broadcast %427 : vector<16x1xf32> to vector<16x256xf32>
    %429 = arith.mulf %426, %428 : vector<16x256xf32>
    %430 = arith.addf %422, %429 : vector<16x256xf32>
    %c14_i32_79 = arith.constant 14 : i32
    %431 = tpu.dynamic_rotate %356 by %c14_i32_79 dim 1 : vector<16x256xf32>, i32 -> vector<16x256xf32>
    %432 = arith.mulf %29, %125 : vector<1x256xf32>
    %433 = vector.broadcast %432 : vector<1x256xf32> to vector<16x256xf32>
    %434 = arith.mulf %431, %433 : vector<16x256xf32>
    %435 = vector.extract_strided_slice %357 {offsets = [0, 9], sizes = [16, 1], strides = [1, 1]} : vector<16x25xf32> to vector<16x1xf32>
    %436 = vector.broadcast %435 : vector<16x1xf32> to vector<16x256xf32>
    %437 = arith.mulf %434, %436 : vector<16x256xf32>
    %438 = arith.addf %430, %437 : vector<16x256xf32>
    %c2_i32_80 = arith.constant 2 : i32
    %439 = tpu.dynamic_rotate %356 by %c2_i32_80 dim 1 : vector<16x256xf32>, i32 -> vector<16x256xf32>
    %440 = arith.mulf %41, %77 : vector<1x256xf32>
    %441 = vector.broadcast %440 : vector<1x256xf32> to vector<16x256xf32>
    %442 = arith.mulf %439, %441 : vector<16x256xf32>
    %443 = vector.extract_strided_slice %357 {offsets = [0, 10], sizes = [16, 1], strides = [1, 1]} : vector<16x25xf32> to vector<16x1xf32>
    %444 = vector.broadcast %443 : vector<16x1xf32> to vector<16x256xf32>
    %445 = arith.mulf %442, %444 : vector<16x256xf32>
    %446 = arith.addf %438, %445 : vector<16x256xf32>
    %c1_i32_81 = arith.constant 1 : i32
    %447 = tpu.dynamic_rotate %356 by %c1_i32_81 dim 1 : vector<16x256xf32>, i32 -> vector<16x256xf32>
    %448 = arith.mulf %41, %89 : vector<1x256xf32>
    %449 = vector.broadcast %448 : vector<1x256xf32> to vector<16x256xf32>
    %450 = arith.mulf %447, %449 : vector<16x256xf32>
    %451 = vector.extract_strided_slice %357 {offsets = [0, 11], sizes = [16, 1], strides = [1, 1]} : vector<16x25xf32> to vector<16x1xf32>
    %452 = vector.broadcast %451 : vector<16x1xf32> to vector<16x256xf32>
    %453 = arith.mulf %450, %452 : vector<16x256xf32>
    %454 = arith.addf %446, %453 : vector<16x256xf32>
    %455 = arith.mulf %41, %101 : vector<1x256xf32>
    %456 = vector.broadcast %455 : vector<1x256xf32> to vector<16x256xf32>
    %457 = arith.mulf %356, %456 : vector<16x256xf32>
    %458 = vector.extract_strided_slice %357 {offsets = [0, 12], sizes = [16, 1], strides = [1, 1]} : vector<16x25xf32> to vector<16x1xf32>
    %459 = vector.broadcast %458 : vector<16x1xf32> to vector<16x256xf32>
    %460 = arith.mulf %457, %459 : vector<16x256xf32>
    %461 = arith.addf %454, %460 : vector<16x256xf32>
    %c255_i32_82 = arith.constant 255 : i32
    %462 = tpu.dynamic_rotate %356 by %c255_i32_82 dim 1 : vector<16x256xf32>, i32 -> vector<16x256xf32>
    %463 = arith.mulf %41, %113 : vector<1x256xf32>
    %464 = vector.broadcast %463 : vector<1x256xf32> to vector<16x256xf32>
    %465 = arith.mulf %462, %464 : vector<16x256xf32>
    %466 = vector.extract_strided_slice %357 {offsets = [0, 13], sizes = [16, 1], strides = [1, 1]} : vector<16x25xf32> to vector<16x1xf32>
    %467 = vector.broadcast %466 : vector<16x1xf32> to vector<16x256xf32>
    %468 = arith.mulf %465, %467 : vector<16x256xf32>
    %469 = arith.addf %461, %468 : vector<16x256xf32>
    %c254_i32_83 = arith.constant 254 : i32
    %470 = tpu.dynamic_rotate %356 by %c254_i32_83 dim 1 : vector<16x256xf32>, i32 -> vector<16x256xf32>
    %471 = arith.mulf %41, %125 : vector<1x256xf32>
    %472 = vector.broadcast %471 : vector<1x256xf32> to vector<16x256xf32>
    %473 = arith.mulf %470, %472 : vector<16x256xf32>
    %474 = vector.extract_strided_slice %357 {offsets = [0, 14], sizes = [16, 1], strides = [1, 1]} : vector<16x25xf32> to vector<16x1xf32>
    %475 = vector.broadcast %474 : vector<16x1xf32> to vector<16x256xf32>
    %476 = arith.mulf %473, %475 : vector<16x256xf32>
    %477 = arith.addf %469, %476 : vector<16x256xf32>
    %c242_i32_84 = arith.constant 242 : i32
    %478 = tpu.dynamic_rotate %356 by %c242_i32_84 dim 1 : vector<16x256xf32>, i32 -> vector<16x256xf32>
    %479 = arith.mulf %53, %77 : vector<1x256xf32>
    %480 = vector.broadcast %479 : vector<1x256xf32> to vector<16x256xf32>
    %481 = arith.mulf %478, %480 : vector<16x256xf32>
    %482 = vector.extract_strided_slice %357 {offsets = [0, 15], sizes = [16, 1], strides = [1, 1]} : vector<16x25xf32> to vector<16x1xf32>
    %483 = vector.broadcast %482 : vector<16x1xf32> to vector<16x256xf32>
    %484 = arith.mulf %481, %483 : vector<16x256xf32>
    %485 = arith.addf %477, %484 : vector<16x256xf32>
    %c241_i32_85 = arith.constant 241 : i32
    %486 = tpu.dynamic_rotate %356 by %c241_i32_85 dim 1 : vector<16x256xf32>, i32 -> vector<16x256xf32>
    %487 = arith.mulf %53, %89 : vector<1x256xf32>
    %488 = vector.broadcast %487 : vector<1x256xf32> to vector<16x256xf32>
    %489 = arith.mulf %486, %488 : vector<16x256xf32>
    %490 = vector.extract_strided_slice %357 {offsets = [0, 16], sizes = [16, 1], strides = [1, 1]} : vector<16x25xf32> to vector<16x1xf32>
    %491 = vector.broadcast %490 : vector<16x1xf32> to vector<16x256xf32>
    %492 = arith.mulf %489, %491 : vector<16x256xf32>
    %493 = arith.addf %485, %492 : vector<16x256xf32>
    %c240_i32_86 = arith.constant 240 : i32
    %494 = tpu.dynamic_rotate %356 by %c240_i32_86 dim 1 : vector<16x256xf32>, i32 -> vector<16x256xf32>
    %495 = arith.mulf %53, %101 : vector<1x256xf32>
    %496 = vector.broadcast %495 : vector<1x256xf32> to vector<16x256xf32>
    %497 = arith.mulf %494, %496 : vector<16x256xf32>
    %498 = vector.extract_strided_slice %357 {offsets = [0, 17], sizes = [16, 1], strides = [1, 1]} : vector<16x25xf32> to vector<16x1xf32>
    %499 = vector.broadcast %498 : vector<16x1xf32> to vector<16x256xf32>
    %500 = arith.mulf %497, %499 : vector<16x256xf32>
    %501 = arith.addf %493, %500 : vector<16x256xf32>
    %c239_i32_87 = arith.constant 239 : i32
    %502 = tpu.dynamic_rotate %356 by %c239_i32_87 dim 1 : vector<16x256xf32>, i32 -> vector<16x256xf32>
    %503 = arith.mulf %53, %113 : vector<1x256xf32>
    %504 = vector.broadcast %503 : vector<1x256xf32> to vector<16x256xf32>
    %505 = arith.mulf %502, %504 : vector<16x256xf32>
    %506 = vector.extract_strided_slice %357 {offsets = [0, 18], sizes = [16, 1], strides = [1, 1]} : vector<16x25xf32> to vector<16x1xf32>
    %507 = vector.broadcast %506 : vector<16x1xf32> to vector<16x256xf32>
    %508 = arith.mulf %505, %507 : vector<16x256xf32>
    %509 = arith.addf %501, %508 : vector<16x256xf32>
    %c238_i32_88 = arith.constant 238 : i32
    %510 = tpu.dynamic_rotate %356 by %c238_i32_88 dim 1 : vector<16x256xf32>, i32 -> vector<16x256xf32>
    %511 = arith.mulf %53, %125 : vector<1x256xf32>
    %512 = vector.broadcast %511 : vector<1x256xf32> to vector<16x256xf32>
    %513 = arith.mulf %510, %512 : vector<16x256xf32>
    %514 = vector.extract_strided_slice %357 {offsets = [0, 19], sizes = [16, 1], strides = [1, 1]} : vector<16x25xf32> to vector<16x1xf32>
    %515 = vector.broadcast %514 : vector<16x1xf32> to vector<16x256xf32>
    %516 = arith.mulf %513, %515 : vector<16x256xf32>
    %517 = arith.addf %509, %516 : vector<16x256xf32>
    %c226_i32_89 = arith.constant 226 : i32
    %518 = tpu.dynamic_rotate %356 by %c226_i32_89 dim 1 : vector<16x256xf32>, i32 -> vector<16x256xf32>
    %519 = arith.mulf %65, %77 : vector<1x256xf32>
    %520 = vector.broadcast %519 : vector<1x256xf32> to vector<16x256xf32>
    %521 = arith.mulf %518, %520 : vector<16x256xf32>
    %522 = vector.extract_strided_slice %357 {offsets = [0, 20], sizes = [16, 1], strides = [1, 1]} : vector<16x25xf32> to vector<16x1xf32>
    %523 = vector.broadcast %522 : vector<16x1xf32> to vector<16x256xf32>
    %524 = arith.mulf %521, %523 : vector<16x256xf32>
    %525 = arith.addf %517, %524 : vector<16x256xf32>
    %c225_i32_90 = arith.constant 225 : i32
    %526 = tpu.dynamic_rotate %356 by %c225_i32_90 dim 1 : vector<16x256xf32>, i32 -> vector<16x256xf32>
    %527 = arith.mulf %65, %89 : vector<1x256xf32>
    %528 = vector.broadcast %527 : vector<1x256xf32> to vector<16x256xf32>
    %529 = arith.mulf %526, %528 : vector<16x256xf32>
    %530 = vector.extract_strided_slice %357 {offsets = [0, 21], sizes = [16, 1], strides = [1, 1]} : vector<16x25xf32> to vector<16x1xf32>
    %531 = vector.broadcast %530 : vector<16x1xf32> to vector<16x256xf32>
    %532 = arith.mulf %529, %531 : vector<16x256xf32>
    %533 = arith.addf %525, %532 : vector<16x256xf32>
    %c224_i32_91 = arith.constant 224 : i32
    %534 = tpu.dynamic_rotate %356 by %c224_i32_91 dim 1 : vector<16x256xf32>, i32 -> vector<16x256xf32>
    %535 = arith.mulf %65, %101 : vector<1x256xf32>
    %536 = vector.broadcast %535 : vector<1x256xf32> to vector<16x256xf32>
    %537 = arith.mulf %534, %536 : vector<16x256xf32>
    %538 = vector.extract_strided_slice %357 {offsets = [0, 22], sizes = [16, 1], strides = [1, 1]} : vector<16x25xf32> to vector<16x1xf32>
    %539 = vector.broadcast %538 : vector<16x1xf32> to vector<16x256xf32>
    %540 = arith.mulf %537, %539 : vector<16x256xf32>
    %541 = arith.addf %533, %540 : vector<16x256xf32>
    %c223_i32_92 = arith.constant 223 : i32
    %542 = tpu.dynamic_rotate %356 by %c223_i32_92 dim 1 : vector<16x256xf32>, i32 -> vector<16x256xf32>
    %543 = arith.mulf %65, %113 : vector<1x256xf32>
    %544 = vector.broadcast %543 : vector<1x256xf32> to vector<16x256xf32>
    %545 = arith.mulf %542, %544 : vector<16x256xf32>
    %546 = vector.extract_strided_slice %357 {offsets = [0, 23], sizes = [16, 1], strides = [1, 1]} : vector<16x25xf32> to vector<16x1xf32>
    %547 = vector.broadcast %546 : vector<16x1xf32> to vector<16x256xf32>
    %548 = arith.mulf %545, %547 : vector<16x256xf32>
    %549 = arith.addf %541, %548 : vector<16x256xf32>
    %c222_i32_93 = arith.constant 222 : i32
    %550 = tpu.dynamic_rotate %356 by %c222_i32_93 dim 1 : vector<16x256xf32>, i32 -> vector<16x256xf32>
    %551 = arith.mulf %65, %125 : vector<1x256xf32>
    %552 = vector.broadcast %551 : vector<1x256xf32> to vector<16x256xf32>
    %553 = arith.mulf %550, %552 : vector<16x256xf32>
    %554 = vector.extract_strided_slice %357 {offsets = [0, 24], sizes = [16, 1], strides = [1, 1]} : vector<16x25xf32> to vector<16x1xf32>
    %555 = vector.broadcast %554 : vector<16x1xf32> to vector<16x256xf32>
    %556 = arith.mulf %553, %555 : vector<16x256xf32>
    %557 = arith.addf %549, %556 : vector<16x256xf32>
    %558 = vector.extract_strided_slice %127 {offsets = [8, 26], sizes = [16, 1], strides = [1, 1]} : vector<24x27xf32> to vector<16x1xf32>
    %559 = vector.broadcast %558 : vector<16x1xf32> to vector<16x256xf32>
    %560 = arith.addf %557, %559 : vector<16x256xf32>
    %561 = vector.extract_strided_slice %356 {offsets = [0, 0], sizes = [4, 256], strides = [1, 1]} : vector<16x256xf32> to vector<4x256xf32>
    %562 = vector.extract_strided_slice %0 {offsets = [0, 0], sizes = [4, 256], strides = [1, 1]} : vector<32x256xf32> to vector<4x256xf32>
    %563 = arith.addf %561, %562 : vector<4x256xf32>
    %c0_94 = arith.constant 0 : index
    %c0_95 = arith.constant 0 : index
    %564 = vector.load %arg4[%c0_94, %c0_95] : memref<32x256xf32, #tpu.memory_space<vmem>>, vector<4x256xf32>
    tpu.vector_store %arg4[%c0_94, %c0_95], %563 {strides = array<i32>} : memref<32x256xf32, #tpu.memory_space<vmem>>, vector<4x256xf32>,
    %565 = vector.extract_strided_slice %560 {offsets = [0, 0], sizes = [4, 256], strides = [1, 1]} : vector<16x256xf32> to vector<4x256xf32>
    %566 = vector.extract_strided_slice %0 {offsets = [4, 0], sizes = [4, 256], strides = [1, 1]} : vector<32x256xf32> to vector<4x256xf32>
    %567 = arith.addf %565, %566 : vector<4x256xf32>
    %c4 = arith.constant 4 : index
    %c0_96 = arith.constant 0 : index
    %568 = vector.load %arg4[%c4, %c0_96] : memref<32x256xf32, #tpu.memory_space<vmem>>, vector<4x256xf32>
    tpu.vector_store %arg4[%c4, %c0_96], %567 {strides = array<i32>} : memref<32x256xf32, #tpu.memory_space<vmem>>, vector<4x256xf32>,
    %569 = vector.extract_strided_slice %356 {offsets = [4, 0], sizes = [4, 256], strides = [1, 1]} : vector<16x256xf32> to vector<4x256xf32>
    %570 = vector.extract_strided_slice %0 {offsets = [8, 0], sizes = [4, 256], strides = [1, 1]} : vector<32x256xf32> to vector<4x256xf32>
    %571 = arith.addf %569, %570 : vector<4x256xf32>
    %c8 = arith.constant 8 : index
    %c0_97 = arith.constant 0 : index
    %572 = vector.load %arg4[%c8, %c0_97] : memref<32x256xf32, #tpu.memory_space<vmem>>, vector<4x256xf32>
    tpu.vector_store %arg4[%c8, %c0_97], %571 {strides = array<i32>} : memref<32x256xf32, #tpu.memory_space<vmem>>, vector<4x256xf32>,
    %573 = vector.extract_strided_slice %560 {offsets = [4, 0], sizes = [4, 256], strides = [1, 1]} : vector<16x256xf32> to vector<4x256xf32>
    %574 = vector.extract_strided_slice %0 {offsets = [12, 0], sizes = [4, 256], strides = [1, 1]} : vector<32x256xf32> to vector<4x256xf32>
    %575 = arith.addf %573, %574 : vector<4x256xf32>
    %c12 = arith.constant 12 : index
    %c0_98 = arith.constant 0 : index
    %576 = vector.load %arg4[%c12, %c0_98] : memref<32x256xf32, #tpu.memory_space<vmem>>, vector<4x256xf32>
    tpu.vector_store %arg4[%c12, %c0_98], %575 {strides = array<i32>} : memref<32x256xf32, #tpu.memory_space<vmem>>, vector<4x256xf32>,
    %577 = vector.extract_strided_slice %356 {offsets = [8, 0], sizes = [4, 256], strides = [1, 1]} : vector<16x256xf32> to vector<4x256xf32>
    %578 = vector.extract_strided_slice %0 {offsets = [16, 0], sizes = [4, 256], strides = [1, 1]} : vector<32x256xf32> to vector<4x256xf32>
    %579 = arith.addf %577, %578 : vector<4x256xf32>
    %c16 = arith.constant 16 : index
    %c0_99 = arith.constant 0 : index
    %580 = vector.load %arg4[%c16, %c0_99] : memref<32x256xf32, #tpu.memory_space<vmem>>, vector<4x256xf32>
    tpu.vector_store %arg4[%c16, %c0_99], %579 {strides = array<i32>} : memref<32x256xf32, #tpu.memory_space<vmem>>, vector<4x256xf32>,
    %581 = vector.extract_strided_slice %560 {offsets = [8, 0], sizes = [4, 256], strides = [1, 1]} : vector<16x256xf32> to vector<4x256xf32>
    %582 = vector.extract_strided_slice %0 {offsets = [20, 0], sizes = [4, 256], strides = [1, 1]} : vector<32x256xf32> to vector<4x256xf32>
    %583 = arith.addf %581, %582 : vector<4x256xf32>
    %c20 = arith.constant 20 : index
    %c0_100 = arith.constant 0 : index
    %584 = vector.load %arg4[%c20, %c0_100] : memref<32x256xf32, #tpu.memory_space<vmem>>, vector<4x256xf32>
    tpu.vector_store %arg4[%c20, %c0_100], %583 {strides = array<i32>} : memref<32x256xf32, #tpu.memory_space<vmem>>, vector<4x256xf32>,
    %585 = vector.extract_strided_slice %356 {offsets = [12, 0], sizes = [4, 256], strides = [1, 1]} : vector<16x256xf32> to vector<4x256xf32>
    %586 = vector.extract_strided_slice %0 {offsets = [24, 0], sizes = [4, 256], strides = [1, 1]} : vector<32x256xf32> to vector<4x256xf32>
    %587 = arith.addf %585, %586 : vector<4x256xf32>
    %c24 = arith.constant 24 : index
    %c0_101 = arith.constant 0 : index
    %588 = vector.load %arg4[%c24, %c0_101] : memref<32x256xf32, #tpu.memory_space<vmem>>, vector<4x256xf32>
    tpu.vector_store %arg4[%c24, %c0_101], %587 {strides = array<i32>} : memref<32x256xf32, #tpu.memory_space<vmem>>, vector<4x256xf32>,
    %589 = vector.extract_strided_slice %560 {offsets = [12, 0], sizes = [4, 256], strides = [1, 1]} : vector<16x256xf32> to vector<4x256xf32>
    %590 = vector.extract_strided_slice %0 {offsets = [28, 0], sizes = [4, 256], strides = [1, 1]} : vector<32x256xf32> to vector<4x256xf32>
    %591 = arith.addf %589, %590 : vector<4x256xf32>
    %c28 = arith.constant 28 : index
    %c0_102 = arith.constant 0 : index
    %592 = vector.load %arg4[%c28, %c0_102] : memref<32x256xf32, #tpu.memory_space<vmem>>, vector<4x256xf32>
    tpu.vector_store %arg4[%c28, %c0_102], %591 {strides = array<i32>} : memref<32x256xf32, #tpu.memory_space<vmem>>, vector<4x256xf32>,
    return
  }
  func.func @transform_0(%arg0: i32) -> (i32, i32) {
    %c0_i32 = arith.constant 0 : i32
    %c0_i32_0 = arith.constant 0 : i32
    return %arg0, %c0_i32 : i32, i32
  }
  func.func @transform_1(%arg0: i32) -> (i32, i32) {
    %c0_i32 = arith.constant 0 : i32
    %c0_i32_0 = arith.constant 0 : i32
    %c0_i32_1 = arith.constant 0 : i32
    return %c0_i32, %c0_i32_0 : i32, i32
  }
  func.func @transform_2(%arg0: i32) -> (i32, i32) {
    %c0_i32 = arith.constant 0 : i32
    %c0_i32_0 = arith.constant 0 : i32
    %c0_i32_1 = arith.constant 0 : i32
    return %c0_i32, %c0_i32_0 : i32, i32
  }
  func.func @transform_3(%arg0: i32) -> (i32, i32) {
    %c0_i32 = arith.constant 0 : i32
    %c0_i32_0 = arith.constant 0 : i32
    return %arg0, %c0_i32 : i32, i32
  }
}

</mosaic_0001>

<llo_original>
// kernel: ghost_bottleneck.1
$region0: #{ghost_bottleneck.1}
  #allocation0 [shape = 'u32[]', space=smem, size = 0x4, offset = 0x4, fixed_abs, tag = 'smem constant byte address 0x4 - core index']
  #allocation1 [shape = 'u32[72,128]{1,0:T(1,128)}', space=vmem, size = 0x9000, scoped, tag = 'internal scratch']
  %s0 = inlined_call_operand.vmem [shape: f32[64,256], index: 0, kind: input, shape index: {}]
  %s1 = inlined_call_operand.vmem [shape: f32[24,32], index: 1, kind: input, shape index: {}]
  %s2 = inlined_call_operand.vmem [shape: f32[24,27], index: 2, kind: input, shape index: {}]
  %s3 = inlined_call_operand.vmem [shape: f32[64,256], index: 3, kind: output, shape index: {}]
  %s4 = sld [smem:[#allocation0]]
  $region45: #{ghost_bottleneck.1} parent=0
    _
  %s6 = ssub.s32 1, %s4
  %s7 = scalar_select 0, %s6, %s4
  loop: start=0, step=1, limit=4
  $region2: #{ghost_bottleneck.1} parent=0 // loop_pre_header
    _
  $region3: #{ghost_bottleneck.1} parent=0 // loop_header
    %s9 = sphi 0, %s13
    %p10 = scmp.ge.s32.totalorder %s9, 4
    %s19 = sphi 0, %s21
    %s22 = sphi 0, %s19
    %s23 = sphi 0, %s22
    %s39 = sphi 0, %s23
    %s43 = sphi 0, %s43
    %s45 = sphi 0, %s43
    %s46 = sphi 0, %s45
    %s60 = sphi 0, %s46
    %s64 = sphi 0, %s64
    %s66 = sphi 0, %s64
    %s67 = sphi 0, %s66
    %s81 = sphi 0, %s67
    %s87 = sphi 0, %s89
    %s90 = sphi 0, %s87
    %s91 = sphi 0, %s90
    %s107 = sphi 0, %s91
  $region4: #{ghost_bottleneck.1} parent=0 // loop_header_branch
    %12 = sbr.rel (%p10) target = $region8
  $region5: #{ghost_bottleneck.1} parent=0 // loop_body
    %s14 = ssub.s32 %s9, 1
    %s15 = ssub.s32 %s9, 2
    %s16 = sadd.s32 %s9, 1
    %s17 = ssub.s32 %s9, %s16
    %p18 = scmp.eq.s32.totalorder %s17, 0
    %s20 = sadd.s32 %s19, 1
    %s21 = scalar_select %p18, %s19, %s20
    %p24 = pneg %p18
    %p25 = scmp.eq.s32.totalorder %s9, 1
    %p26 = por %p24, %p25
    %p27 = scmp.ne.s32.totalorder %s19, %s22
    %p28 = scmp.eq.s32.totalorder %s9, 0
    %p29 = por %p27, %p28
    %p30 = scmp.ne.s32.totalorder %s19, %s22
    %p31 = scmp.eq.s32.totalorder %s14, 1
    %p32 = por %p30, %p31
    %p33 = scmp.ne.s32.totalorder %s22, %s23
    %p34 = scmp.eq.s32.totalorder %s14, 0
    %p35 = por %p33, %p34
    %p36 = scmp.ne.s32.totalorder %s22, %s23
    %p37 = scmp.eq.s32.totalorder %s15, 1
    %p38 = por %p36, %p37
    %p40 = scmp.ne.s32.totalorder %s23, %s39
    %p41 = scmp.eq.s32.totalorder %s15, 0
    %p42 = por %p40, %p41
    %s44 = sadd.s32 %s43, 1
    %p47 = scmp.eq.s32.totalorder %s9, 1
    %p48 = scmp.ne.s32.totalorder %s43, %s45
    %p49 = scmp.eq.s32.totalorder %s9, 0
    %p50 = por %p48, %p49
    %p51 = scmp.ne.s32.totalorder %s43, %s45
    %p52 = scmp.eq.s32.totalorder %s14, 1
    %p53 = por %p51, %p52
    %p54 = scmp.ne.s32.totalorder %s45, %s46
    %p55 = scmp.eq.s32.totalorder %s14, 0
    %p56 = por %p54, %p55
    %p57 = scmp.ne.s32.totalorder %s45, %s46
    %p58 = scmp.eq.s32.totalorder %s15, 1
    %p59 = por %p57, %p58
    %p61 = scmp.ne.s32.totalorder %s46, %s60
    %p62 = scmp.eq.s32.totalorder %s15, 0
    %p63 = por %p61, %p62
    %s65 = sadd.s32 %s64, 1
    %p68 = scmp.eq.s32.totalorder %s9, 1
    %p69 = scmp.ne.s32.totalorder %s64, %s66
    %p70 = scmp.eq.s32.totalorder %s9, 0
    %p71 = por %p69, %p70
    %p72 = scmp.ne.s32.totalorder %s64, %s66
    %p73 = scmp.eq.s32.totalorder %s14, 1
    %p74 = por %p72, %p73
    %p75 = scmp.ne.s32.totalorder %s66, %s67
    %p76 = scmp.eq.s32.totalorder %s14, 0
    %p77 = por %p75, %p76
    %p78 = scmp.ne.s32.totalorder %s66, %s67
    %p79 = scmp.eq.s32.totalorder %s15, 1
    %p80 = por %p78, %p79
    %p82 = scmp.ne.s32.totalorder %s67, %s81
    %p83 = scmp.eq.s32.totalorder %s15, 0
    %p84 = por %p82, %p83
    %s85 = ssub.s32 %s9, %s16
    %p86 = scmp.eq.s32.totalorder %s85, 0
    %s88 = sadd.s32 %s87, 1
    %s89 = scalar_select %p86, %s87, %s88
    %p92 = pneg %p86
    %p93 = scmp.eq.s32.totalorder %s9, 1
    %p94 = por %p92, %p93
    %p95 = scmp.ne.s32.totalorder %s87, %s90
    %p96 = scmp.eq.s32.totalorder %s9, 0
    %p97 = por %p95, %p96
    %p98 = scmp.ne.s32.totalorder %s87, %s90
    %p99 = scmp.eq.s32.totalorder %s14, 1
    %p100 = por %p98, %p99
    %p101 = scmp.ne.s32.totalorder %s90, %s91
    %p102 = scmp.eq.s32.totalorder %s14, 0
    %p103 = por %p101, %p102
    %p104 = scmp.ne.s32.totalorder %s90, %s91
    %p105 = scmp.eq.s32.totalorder %s15, 1
    %p106 = por %p104, %p105
    %p108 = scmp.ne.s32.totalorder %s91, %s107
    %p109 = scmp.eq.s32.totalorder %s15, 0
    %p110 = por %p108, %p109
    %p111 = scmp.le.s32.totalorder 1, %s9
    %p112 = scmp.lt.s32.totalorder %s9, 3
    %p113 = pnand %p111, %p112
    %p114 = pneg %p113
    // Predicated region
    $region9: #{ghost_bottleneck.1} parent=5 // pred_check
      _
    $region10: #{ghost_bottleneck.1} parent=5 // pred_check_branch
      %116 = sbr.rel (%p113) target = $region12
    $region11: #{ghost_bottleneck.1} parent=5 // pred_region
      %s117 = ssub.s32 %s9, 1
      // Predicated region
      $region13: #{ghost_bottleneck.1} parent=11 // pred_check
        %p118 = pneg %p56
      $region14: #{ghost_bottleneck.1} parent=11 // pred_check_branch
        %120 = sbr.rel (%p118) target = $region16
      $region15: #{ghost_bottleneck.1} parent=11 // pred_region
        _
      $region16: #{ghost_bottleneck.1} parent=11 // pred_fallthru
        _
      // Predicated region
      $region17: #{ghost_bottleneck.1} parent=11 // pred_check
        %p121 = pneg %p77
      $region18: #{ghost_bottleneck.1} parent=11 // pred_check_branch
        %123 = sbr.rel (%p121) target = $region20
      $region19: #{ghost_bottleneck.1} parent=11 // pred_region
        _
      $region20: #{ghost_bottleneck.1} parent=11 // pred_fallthru
        _
    $region12: #{ghost_bottleneck.1} parent=5 // pred_fallthru
      _
    %p124 = scmp.lt.s32.totalorder %s9, 2
    // Predicated region
    $region21: #{ghost_bottleneck.1} parent=5 // pred_check
      %p125 = pneg %p124
    $region22: #{ghost_bottleneck.1} parent=5 // pred_check_branch
      %127 = sbr.rel (%p125) target = $region24
    $region23: #{ghost_bottleneck.1} parent=5 // pred_region
      // Predicated region
      $region25: #{ghost_bottleneck.1} parent=23 // pred_check
        %p128 = pneg %p29
      $region26: #{ghost_bottleneck.1} parent=23 // pred_check_branch
        %130 = sbr.rel (%p128) target = $region28
      $region27: #{ghost_bottleneck.1} parent=23 // pred_region
        %s131 = smul.u32 4, %s9
        %p132 = scmp.lt.s32.totalorder %s131, 7
        %s133 = scalar_select %p132, %s131, 7
        %s134 = smul.addr %s133, 2
        %s135 = smul.addr %s134, 8
        %s136 = scalar_lea.vmem %s0, %s135
        %s137 = smul.u32 4, %s9
      $region28: #{ghost_bottleneck.1} parent=23 // pred_fallthru
        _
    $region24: #{ghost_bottleneck.1} parent=5 // pred_fallthru
      _
    %p138 = scmp.le.s32.totalorder 1, %s9
    %p139 = scmp.lt.s32.totalorder %s9, 3
    %p140 = pnand %p138, %p139
    %p141 = pneg %p140
    // Predicated region
    $region29: #{ghost_bottleneck.1} parent=5 // pred_check
      _
    $region30: #{ghost_bottleneck.1} parent=5 // pred_check_branch
      %143 = sbr.rel (%p140) target = $region32
    $region31: #{ghost_bottleneck.1} parent=5 // pred_region
      %s144 = ssub.s32 %s9, 1
      %s145 = smul.u32 4, %s14
      %p146 = scmp.lt.s32.totalorder %s145, 7
      %s147 = scalar_select %p146, %s145, 7
      %s148 = smul.addr %s147, 2
      %s149 = smul.addr %s148, 8
      %s150 = scalar_lea.vmem %s0, %s149
      %p151 = pneg %p35
      %p152 = pneg %p32
      %p153 = pneg %p56
      %p154 = pneg %p53
      %p155 = pneg %p77
      %p156 = pneg %p74
      %p157 = pneg %p103
      %p158 = pneg %p100
      %s159 = smul.u32 4, %s14
      %p160 = scmp.lt.s32.totalorder %s159, 7
      %s161 = scalar_select %p160, %s159, 7
      %s162 = smul.addr %s161, 2
      %s163 = smul.addr %s162, 8
      %s164 = scalar_lea.vmem %s3, %s163
      %s165 = smul.u32 4, %s14
      %p166 = scmp.lt.s32.totalorder %s165, 7
      %s167 = scalar_select %p166, %s165, 7
      %s168 = smul.addr %s167, 2
      %s169 = smul.addr %s168, 8
      %s170 = scalar_lea.vmem %s0, %s169
      %s171 = smul.u32 4, %s14
      %s172 = smul.u32 4, %s14
      %p173 = scmp.lt.s32.totalorder %s172, 7
      %s174 = scalar_select %p173, %s172, 7
      %s175 = smul.addr %s174, 2
      %s176 = smul.addr %s175, 8
      %s177 = scalar_lea.vmem %s3, %s176
      %s178 = smul.u32 4, %s14
      %v179 = vld [vmem:[%s170] sm:$0xff]
      %v180 = vld [vmem:[%s170 + $0x8] sm:$0xff]
      %v181 = vld [vmem:[%s170 + $0x10] sm:$0xff]
      %v182 = vld [vmem:[%s170 + $0x18] sm:$0xff]
      %v183 = vld [vmem:[%s170 + $0x20] sm:$0xff]
      %v184 = vld [vmem:[%s170 + $0x28] sm:$0xff]
      %v185 = vld [vmem:[%s170 + $0x30] sm:$0xff]
      %v186 = vld [vmem:[%s170 + $0x38] sm:$0xff]
      %v187 = vlaneseq
      %v188 = vand.u32 %v187, 127
      %v189 = vadd.s32 %v188, 128
      %v190 = vand.u32 %v188, 15
      %v191 = vand.u32 %v189, 15
      %v192 = vshra.s32 %v188, 4
      %v193 = vshra.s32 %v189, 4
      %v194 = vadd.s32 %v192, 4294967294
      %v195 = vadd.s32 %v193, 4294967294
      %vm196 = vcmp.ge.s32.totalorder %v194, 0
      %vm197 = vcmp.ge.s32.totalorder %v195, 0
      %vm198 = vcmp.lt.s32.totalorder %v194, 16
      %vm199 = vcmp.lt.s32.totalorder %v195, 16
      %vm200 = vmand %vm196, %vm198
      %vm201 = vmand %vm197, %vm199
      %v202 = vsel %vm200, 1.0, 0.0
      %v203 = vsel %vm201, 1.0, 0.0
      %v204 = vadd.s32 %v192, 4294967295
      %v205 = vadd.s32 %v193, 4294967295
      %vm206 = vcmp.ge.s32.totalorder %v204, 0
      %vm207 = vcmp.ge.s32.totalorder %v205, 0
      %vm208 = vcmp.lt.s32.totalorder %v204, 16
      %vm209 = vcmp.lt.s32.totalorder %v205, 16
      %vm210 = vmand %vm206, %vm208
      %vm211 = vmand %vm207, %vm209
      %v212 = vsel %vm210, 1.0, 0.0
      %v213 = vsel %vm211, 1.0, 0.0
      %vm214 = vcmp.ge.s32.totalorder %v192, 0
      %vm215 = vcmp.ge.s32.totalorder %v193, 0
      %vm216 = vcmp.lt.s32.totalorder %v192, 16
      %vm217 = vcmp.lt.s32.totalorder %v193, 16
      %vm218 = vmand %vm214, %vm216
      %vm219 = vmand %vm215, %vm217
      %v220 = vsel %vm218, 1.0, 0.0
      %v221 = vsel %vm219, 1.0, 0.0
      %v222 = vadd.s32 %v192, 1
      %v223 = vadd.s32 %v193, 1
      %vm224 = vcmp.ge.s32.totalorder %v222, 0
      %vm225 = vcmp.ge.s32.totalorder %v223, 0
      %vm226 = vcmp.lt.s32.totalorder %v222, 16
      %vm227 = vcmp.lt.s32.totalorder %v223, 16
      %vm228 = vmand %vm224, %vm226
      %vm229 = vmand %vm225, %vm227
      %v230 = vsel %vm228, 1.0, 0.0
      %v231 = vsel %vm229, 1.0, 0.0
      %v232 = vadd.s32 %v192, 2
      %v233 = vadd.s32 %v193, 2
      %vm234 = vcmp.ge.s32.totalorder %v232, 0
      %vm235 = vcmp.ge.s32.totalorder %v233, 0
      %vm236 = vcmp.lt.s32.totalorder %v232, 16
      %vm237 = vcmp.lt.s32.totalorder %v233, 16
      %vm238 = vmand %vm234, %vm236
      %vm239 = vmand %vm235, %vm237
      %v240 = vsel %vm238, 1.0, 0.0
      %v241 = vsel %vm239, 1.0, 0.0
      %v242 = vadd.s32 %v190, 4294967294
      %v243 = vadd.s32 %v191, 4294967294
      %vm244 = vcmp.ge.s32.totalorder %v242, 0
      %vm245 = vcmp.ge.s32.totalorder %v243, 0
      %vm246 = vcmp.lt.s32.totalorder %v242, 16
      %vm247 = vcmp.lt.s32.totalorder %v243, 16
      %vm248 = vmand %vm244, %vm246
      %vm249 = vmand %vm245, %vm247
      %v250 = vsel %vm248, 1.0, 0.0
      %v251 = vsel %vm249, 1.0, 0.0
      %v252 = vadd.s32 %v190, 4294967295
      %v253 = vadd.s32 %v191, 4294967295
      %vm254 = vcmp.ge.s32.totalorder %v252, 0
      %vm255 = vcmp.ge.s32.totalorder %v253, 0
      %vm256 = vcmp.lt.s32.totalorder %v252, 16
      %vm257 = vcmp.lt.s32.totalorder %v253, 16
      %vm258 = vmand %vm254, %vm256
      %vm259 = vmand %vm255, %vm257
      %v260 = vsel %vm258, 1.0, 0.0
      %v261 = vsel %vm259, 1.0, 0.0
      %vm262 = vcmp.ge.s32.totalorder %v190, 0
      %vm263 = vcmp.ge.s32.totalorder %v191, 0
      %vm264 = vcmp.lt.s32.totalorder %v190, 16
      %vm265 = vcmp.lt.s32.totalorder %v191, 16
      %vm266 = vmand %vm262, %vm264
      %vm267 = vmand %vm263, %vm265
      %v268 = vsel %vm266, 1.0, 0.0
      %v269 = vsel %vm267, 1.0, 0.0
      %v270 = vadd.s32 %v190, 1
      %v271 = vadd.s32 %v191, 1
      %vm272 = vcmp.ge.s32.totalorder %v270, 0
      %vm273 = vcmp.ge.s32.totalorder %v271, 0
      %vm274 = vcmp.lt.s32.totalorder %v270, 16
      %vm275 = vcmp.lt.s32.totalorder %v271, 16
      %vm276 = vmand %vm272, %vm274
      %vm277 = vmand %vm273, %vm275
      %v278 = vsel %vm276, 1.0, 0.0
      %v279 = vsel %vm277, 1.0, 0.0
      %v280 = vadd.s32 %v190, 2
      %v281 = vadd.s32 %v191, 2
      %vm282 = vcmp.ge.s32.totalorder %v280, 0
      %vm283 = vcmp.ge.s32.totalorder %v281, 0
      %vm284 = vcmp.lt.s32.totalorder %v280, 16
      %vm285 = vcmp.lt.s32.totalorder %v281, 16
      %vm286 = vmand %vm282, %vm284
      %vm287 = vmand %vm283, %vm285
      %v288 = vsel %vm286, 1.0, 0.0
      %v289 = vsel %vm287, 1.0, 0.0
      %v290 = vld [vmem:[%s1] sm:$0xff]
      %v291 = vld [vmem:[%s1 + $0x8] sm:$0xff]
      %v292 = vld [vmem:[%s1 + $0x10] sm:$0xff]
      %v293 = vld [vmem:[%s2] sm:$0xff]
      %v294 = vld [vmem:[%s2 + $0x8] sm:$0xff]
      %v295 = vld [vmem:[%s2 + $0x10] sm:$0xff]
      %297 = vset.pattern.permute.xlu0 25
      %298 = vperm.xlu0 %297, %v293
      %v299 = vpop.permute.xlu0 %298
      %vm301 = vcmask 261120
      %v303 = vsel %vm301, %v290, 0
      %305 = vmatpush.msra.mxu0 0.0
      %306 = vmatpush.msra.mxu0 0.0
      %307 = vmatpush.msra.mxu0 0.0
      %308 = vmatpush.msra.mxu0 0.0
      %309 = vmatpush.msra.mxu0 0.0
      %310 = vmatpush.msra.mxu0 0.0
      %311 = vmatpush.msra.mxu0 0.0
      %312 = vmatpush.msra.mxu0 0.0
      %313 = vmatpush.msra.mxu0 0.0
      %314 = vmatpush.msra.mxu0 0.0
      %315 = vmatpush.msra.mxu0 0.0
      %316 = vmatpush.msra.mxu0 0.0
      %v317 = vand.u32 %v185, 4294901760
      %318 = vmatpush.msra.mxu0 %v317
      %v319 = vand.u32 %v183, 4294901760
      %320 = vmatpush.msra.mxu0 %v319
      %v321 = vand.u32 %v181, 4294901760
      %322 = vmatpush.msra.mxu0 %v321
      %v323 = vand.u32 %v179, 4294901760
      %324 = vmatpush.msra.mxu0 %v323
      %v325 = vand.u32 %v303, 4294901760
      %v326 = vsub.f32 %v303, %v325
      %v327 = vand.u32 %v326, 4294901760
      %v328 = vsub.f32 %v326, %v327
      %v329 = vand.u32 %v328, 4294901760
      %330 = vmatmul.f32.gmra.mxu0 %v329
      %v331 = vpop.f32.mrf.mxu0
      %v332 = vadd.f32 %v299, %v331
      %333 = vdwg.mxu0
      %334 = vmatpush.msra.mxu0 0.0
      %335 = vmatpush.msra.mxu0 0.0
      %336 = vmatpush.msra.mxu0 0.0
      %337 = vmatpush.msra.mxu0 0.0
      %338 = vmatpush.msra.mxu0 0.0
      %339 = vmatpush.msra.mxu0 0.0
      %340 = vmatpush.msra.mxu0 0.0
      %341 = vmatpush.msra.mxu0 0.0
      %342 = vmatpush.msra.mxu0 0.0
      %343 = vmatpush.msra.mxu0 0.0
      %344 = vmatpush.msra.mxu0 0.0
      %345 = vmatpush.msra.mxu0 0.0
      %v346 = vand.u32 %v185, 4294901760
      %v347 = vsub.f32 %v185, %v346
      %v348 = vand.u32 %v347, 4294901760
      %v349 = vsub.f32 %v347, %v348
      %v350 = vand.u32 %v349, 4294901760
      %351 = vmatpush.msra.mxu0 %v350
      %v352 = vand.u32 %v183, 4294901760
      %v353 = vsub.f32 %v183, %v352
      %v354 = vand.u32 %v353, 4294901760
      %v355 = vsub.f32 %v353, %v354
      %v356 = vand.u32 %v355, 4294901760
      %357 = vmatpush.msra.mxu0 %v356
      %v358 = vand.u32 %v181, 4294901760
      %v359 = vsub.f32 %v181, %v358
      %v360 = vand.u32 %v359, 4294901760
      %v361 = vsub.f32 %v359, %v360
      %v362 = vand.u32 %v361, 4294901760
      %363 = vmatpush.msra.mxu0 %v362
      %v364 = vand.u32 %v179, 4294901760
      %v365 = vsub.f32 %v179, %v364
      %v366 = vand.u32 %v365, 4294901760
      %v367 = vsub.f32 %v365, %v366
      %v368 = vand.u32 %v367, 4294901760
      %369 = vmatpush.msra.mxu0 %v368
      %v370 = vand.u32 %v303, 4294901760
      %371 = vmatmul.f32.gmra.mxu0 %v370
      %v372 = vpop.f32.mrf.mxu0
      %v373 = vadd.f32 %v332, %v372
      %374 = vdwg.mxu0
      %375 = vmatpush.msra.mxu0 0.0
      %376 = vmatpush.msra.mxu0 0.0
      %377 = vmatpush.msra.mxu0 0.0
      %378 = vmatpush.msra.mxu0 0.0
      %379 = vmatpush.msra.mxu0 0.0
      %380 = vmatpush.msra.mxu0 0.0
      %381 = vmatpush.msra.mxu0 0.0
      %382 = vmatpush.msra.mxu0 0.0
      %383 = vmatpush.msra.mxu0 0.0
      %384 = vmatpush.msra.mxu0 0.0
      %385 = vmatpush.msra.mxu0 0.0
      %386 = vmatpush.msra.mxu0 0.0
      %v387 = vand.u32 %v185, 4294901760
      %v388 = vsub.f32 %v185, %v387
      %389 = vmatpush.msra.mxu0 %v388
      %v390 = vand.u32 %v183, 4294901760
      %v391 = vsub.f32 %v183, %v390
      %392 = vmatpush.msra.mxu0 %v391
      %v393 = vand.u32 %v181, 4294901760
      %v394 = vsub.f32 %v181, %v393
      %395 = vmatpush.msra.mxu0 %v394
      %v396 = vand.u32 %v179, 4294901760
      %v397 = vsub.f32 %v179, %v396
      %398 = vmatpush.msra.mxu0 %v397
      %v399 = vand.u32 %v303, 4294901760
      %v400 = vsub.f32 %v303, %v399
      %401 = vmatmul.f32.gmra.mxu0 %v400
      %v402 = vpop.f32.mrf.mxu0
      %v403 = vadd.f32 %v373, %v402
      %404 = vdwg.mxu0
      %405 = vmatpush.msra.mxu0 0.0
      %406 = vmatpush.msra.mxu0 0.0
      %407 = vmatpush.msra.mxu0 0.0
      %408 = vmatpush.msra.mxu0 0.0
      %409 = vmatpush.msra.mxu0 0.0
      %410 = vmatpush.msra.mxu0 0.0
      %411 = vmatpush.msra.mxu0 0.0
      %412 = vmatpush.msra.mxu0 0.0
      %413 = vmatpush.msra.mxu0 0.0
      %414 = vmatpush.msra.mxu0 0.0
      %415 = vmatpush.msra.mxu0 0.0
      %416 = vmatpush.msra.mxu0 0.0
      %v417 = vand.u32 %v185, 4294901760
      %418 = vmatpush.msra.mxu0 %v417
      %v419 = vand.u32 %v183, 4294901760
      %420 = vmatpush.msra.mxu0 %v419
      %v421 = vand.u32 %v181, 4294901760
      %422 = vmatpush.msra.mxu0 %v421
      %v423 = vand.u32 %v179, 4294901760
      %424 = vmatpush.msra.mxu0 %v423
      %v425 = vand.u32 %v303, 4294901760
      %v426 = vsub.f32 %v303, %v425
      %v427 = vand.u32 %v426, 4294901760
      %428 = vmatmul.f32.gmra.mxu0 %v427
      %v429 = vpop.f32.mrf.mxu0
      %v430 = vadd.f32 %v403, %v429
      %431 = vdwg.mxu0
      %432 = vmatpush.msra.mxu0 0.0
      %433 = vmatpush.msra.mxu0 0.0
      %434 = vmatpush.msra.mxu0 0.0
      %435 = vmatpush.msra.mxu0 0.0
      %436 = vmatpush.msra.mxu0 0.0
      %437 = vmatpush.msra.mxu0 0.0
      %438 = vmatpush.msra.mxu0 0.0
      %439 = vmatpush.msra.mxu0 0.0
      %440 = vmatpush.msra.mxu0 0.0
      %441 = vmatpush.msra.mxu0 0.0
      %442 = vmatpush.msra.mxu0 0.0
      %443 = vmatpush.msra.mxu0 0.0
      %v444 = vand.u32 %v185, 4294901760
      %v445 = vsub.f32 %v185, %v444
      %v446 = vand.u32 %v445, 4294901760
      %447 = vmatpush.msra.mxu0 %v446
      %v448 = vand.u32 %v183, 4294901760
      %v449 = vsub.f32 %v183, %v448
      %v450 = vand.u32 %v449, 4294901760
      %451 = vmatpush.msra.mxu0 %v450
      %v452 = vand.u32 %v181, 4294901760
      %v453 = vsub.f32 %v181, %v452
      %v454 = vand.u32 %v453, 4294901760
      %455 = vmatpush.msra.mxu0 %v454
      %v456 = vand.u32 %v179, 4294901760
      %v457 = vsub.f32 %v179, %v456
      %v458 = vand.u32 %v457, 4294901760
      %459 = vmatpush.msra.mxu0 %v458
      %v460 = vand.u32 %v303, 4294901760
      %461 = vmatmul.f32.gmra.mxu0 %v460
      %v462 = vpop.f32.mrf.mxu0
      %v463 = vadd.f32 %v430, %v462
      %464 = vdwg.mxu0
      %465 = vmatpush.msra.mxu0 0.0
      %466 = vmatpush.msra.mxu0 0.0
      %467 = vmatpush.msra.mxu0 0.0
      %468 = vmatpush.msra.mxu0 0.0
      %469 = vmatpush.msra.mxu0 0.0
      %470 = vmatpush.msra.mxu0 0.0
      %471 = vmatpush.msra.mxu0 0.0
      %472 = vmatpush.msra.mxu0 0.0
      %473 = vmatpush.msra.mxu0 0.0
      %474 = vmatpush.msra.mxu0 0.0
      %475 = vmatpush.msra.mxu0 0.0
      %476 = vmatpush.msra.mxu0 0.0
      %v477 = vand.u32 %v185, 4294901760
      %478 = vmatpush.msra.mxu0 %v477
      %v479 = vand.u32 %v183, 4294901760
      %480 = vmatpush.msra.mxu0 %v479
      %v481 = vand.u32 %v181, 4294901760
      %482 = vmatpush.msra.mxu0 %v481
      %v483 = vand.u32 %v179, 4294901760
      %484 = vmatpush.msra.mxu0 %v483
      %v485 = vand.u32 %v303, 4294901760
      %486 = vmatmul.f32.gmra.mxu0 %v485
      %v487 = vpop.f32.mrf.mxu0
      %v488 = vadd.f32 %v463, %v487
      %489 = vdwg.mxu0
      %490 = vmatpush.msra.mxu0 0.0
      %491 = vmatpush.msra.mxu0 0.0
      %492 = vmatpush.msra.mxu0 0.0
      %493 = vmatpush.msra.mxu0 0.0
      %494 = vmatpush.msra.mxu0 0.0
      %495 = vmatpush.msra.mxu0 0.0
      %496 = vmatpush.msra.mxu0 0.0
      %497 = vmatpush.msra.mxu0 0.0
      %498 = vmatpush.msra.mxu0 0.0
      %499 = vmatpush.msra.mxu0 0.0
      %500 = vmatpush.msra.mxu0 0.0
      %501 = vmatpush.msra.mxu0 0.0
      %v502 = vand.u32 %v186, 4294901760
      %503 = vmatpush.msra.mxu0 %v502
      %v504 = vand.u32 %v184, 4294901760
      %505 = vmatpush.msra.mxu0 %v504
      %v506 = vand.u32 %v182, 4294901760
      %507 = vmatpush.msra.mxu0 %v506
      %v508 = vand.u32 %v180, 4294901760
      %509 = vmatpush.msra.mxu0 %v508
      %v510 = vand.u32 %v303, 4294901760
      %v511 = vsub.f32 %v303, %v510
      %v512 = vand.u32 %v511, 4294901760
      %v513 = vsub.f32 %v511, %v512
      %v514 = vand.u32 %v513, 4294901760
      %515 = vmatmul.f32.gmra.mxu0 %v514
      %v516 = vpop.f32.mrf.mxu0
      %v517 = vadd.f32 %v299, %v516
      %518 = vdwg.mxu0
      %519 = vmatpush.msra.mxu0 0.0
      %520 = vmatpush.msra.mxu0 0.0
      %521 = vmatpush.msra.mxu0 0.0
      %522 = vmatpush.msra.mxu0 0.0
      %523 = vmatpush.msra.mxu0 0.0
      %524 = vmatpush.msra.mxu0 0.0
      %525 = vmatpush.msra.mxu0 0.0
      %526 = vmatpush.msra.mxu0 0.0
      %527 = vmatpush.msra.mxu0 0.0
      %528 = vmatpush.msra.mxu0 0.0
      %529 = vmatpush.msra.mxu0 0.0
      %530 = vmatpush.msra.mxu0 0.0
      %v531 = vand.u32 %v186, 4294901760
      %v532 = vsub.f32 %v186, %v531
      %v533 = vand.u32 %v532, 4294901760
      %v534 = vsub.f32 %v532, %v533
      %v535 = vand.u32 %v534, 4294901760
      %536 = vmatpush.msra.mxu0 %v535
      %v537 = vand.u32 %v184, 4294901760
      %v538 = vsub.f32 %v184, %v537
      %v539 = vand.u32 %v538, 4294901760
      %v540 = vsub.f32 %v538, %v539
      %v541 = vand.u32 %v540, 4294901760
      %542 = vmatpush.msra.mxu0 %v541
      %v543 = vand.u32 %v182, 4294901760
      %v544 = vsub.f32 %v182, %v543
      %v545 = vand.u32 %v544, 4294901760
      %v546 = vsub.f32 %v544, %v545
      %v547 = vand.u32 %v546, 4294901760
      %548 = vmatpush.msra.mxu0 %v547
      %v549 = vand.u32 %v180, 4294901760
      %v550 = vsub.f32 %v180, %v549
      %v551 = vand.u32 %v550, 4294901760
      %v552 = vsub.f32 %v550, %v551
      %v553 = vand.u32 %v552, 4294901760
      %554 = vmatpush.msra.mxu0 %v553
      %v555 = vand.u32 %v303, 4294901760
      %556 = vmatmul.f32.gmra.mxu0 %v555
      %v557 = vpop.f32.mrf.mxu0
      %v558 = vadd.f32 %v517, %v557
      %559 = vdwg.mxu0
      %560 = vmatpush.msra.mxu0 0.0
      %561 = vmatpush.msra.mxu0 0.0
      %562 = vmatpush.msra.mxu0 0.0
      %563 = vmatpush.msra.mxu0 0.0
      %564 = vmatpush.msra.mxu0 0.0
      %565 = vmatpush.msra.mxu0 0.0
      %566 = vmatpush.msra.mxu0 0.0
      %567 = vmatpush.msra.mxu0 0.0
      %568 = vmatpush.msra.mxu0 0.0
      %569 = vmatpush.msra.mxu0 0.0
      %570 = vmatpush.msra.mxu0 0.0
      %571 = vmatpush.msra.mxu0 0.0
      %v572 = vand.u32 %v186, 4294901760
      %v573 = vsub.f32 %v186, %v572
      %574 = vmatpush.msra.mxu0 %v573
      %v575 = vand.u32 %v184, 4294901760
      %v576 = vsub.f32 %v184, %v575
      %577 = vmatpush.msra.mxu0 %v576
      %v578 = vand.u32 %v182, 4294901760
      %v579 = vsub.f32 %v182, %v578
      %580 = vmatpush.msra.mxu0 %v579
      %v581 = vand.u32 %v180, 4294901760
      %v582 = vsub.f32 %v180, %v581
      %583 = vmatpush.msra.mxu0 %v582
      %v584 = vand.u32 %v303, 4294901760
      %v585 = vsub.f32 %v303, %v584
      %586 = vmatmul.f32.gmra.mxu0 %v585
      %v587 = vpop.f32.mrf.mxu0
      %v588 = vadd.f32 %v558, %v587
      %589 = vdwg.mxu0
      %590 = vmatpush.msra.mxu0 0.0
      %591 = vmatpush.msra.mxu0 0.0
      %592 = vmatpush.msra.mxu0 0.0
      %593 = vmatpush.msra.mxu0 0.0
      %594 = vmatpush.msra.mxu0 0.0
      %595 = vmatpush.msra.mxu0 0.0
      %596 = vmatpush.msra.mxu0 0.0
      %597 = vmatpush.msra.mxu0 0.0
      %598 = vmatpush.msra.mxu0 0.0
      %599 = vmatpush.msra.mxu0 0.0
      %600 = vmatpush.msra.mxu0 0.0
      %601 = vmatpush.msra.mxu0 0.0
      %v602 = vand.u32 %v186, 4294901760
      %603 = vmatpush.msra.mxu0 %v602
      %v604 = vand.u32 %v184, 4294901760
      %605 = vmatpush.msra.mxu0 %v604
      %v606 = vand.u32 %v182, 4294901760
      %607 = vmatpush.msra.mxu0 %v606
      %v608 = vand.u32 %v180, 4294901760
      %609 = vmatpush.msra.mxu0 %v608
      %v610 = vand.u32 %v303, 4294901760
      %v611 = vsub.f32 %v303, %v610
      %v612 = vand.u32 %v611, 4294901760
      %613 = vmatmul.f32.gmra.mxu0 %v612
      %v614 = vpop.f32.mrf.mxu0
      %v615 = vadd.f32 %v588, %v614
      %616 = vdwg.mxu0
      %617 = vmatpush.msra.mxu0 0.0
      %618 = vmatpush.msra.mxu0 0.0
      %619 = vmatpush.msra.mxu0 0.0
      %620 = vmatpush.msra.mxu0 0.0
      %621 = vmatpush.msra.mxu0 0.0
      %622 = vmatpush.msra.mxu0 0.0
      %623 = vmatpush.msra.mxu0 0.0
      %624 = vmatpush.msra.mxu0 0.0
      %625 = vmatpush.msra.mxu0 0.0
      %626 = vmatpush.msra.mxu0 0.0
      %627 = vmatpush.msra.mxu0 0.0
      %628 = vmatpush.msra.mxu0 0.0
      %v629 = vand.u32 %v186, 4294901760
      %v630 = vsub.f32 %v186, %v629
      %v631 = vand.u32 %v630, 4294901760
      %632 = vmatpush.msra.mxu0 %v631
      %v633 = vand.u32 %v184, 4294901760
      %v634 = vsub.f32 %v184, %v633
      %v635 = vand.u32 %v634, 4294901760
      %636 = vmatpush.msra.mxu0 %v635
      %v637 = vand.u32 %v182, 4294901760
      %v638 = vsub.f32 %v182, %v637
      %v639 = vand.u32 %v638, 4294901760
      %640 = vmatpush.msra.mxu0 %v639
      %v641 = vand.u32 %v180, 4294901760
      %v642 = vsub.f32 %v180, %v641
      %v643 = vand.u32 %v642, 4294901760
      %644 = vmatpush.msra.mxu0 %v643
      %v645 = vand.u32 %v303, 4294901760
      %646 = vmatmul.f32.gmra.mxu0 %v645
      %v647 = vpop.f32.mrf.mxu0
      %v648 = vadd.f32 %v615, %v647
      %649 = vdwg.mxu0
      %650 = vmatpush.msra.mxu0 0.0
      %651 = vmatpush.msra.mxu0 0.0
      %652 = vmatpush.msra.mxu0 0.0
      %653 = vmatpush.msra.mxu0 0.0
      %654 = vmatpush.msra.mxu0 0.0
      %655 = vmatpush.msra.mxu0 0.0
      %656 = vmatpush.msra.mxu0 0.0
      %657 = vmatpush.msra.mxu0 0.0
      %658 = vmatpush.msra.mxu0 0.0
      %659 = vmatpush.msra.mxu0 0.0
      %660 = vmatpush.msra.mxu0 0.0
      %661 = vmatpush.msra.mxu0 0.0
      %v662 = vand.u32 %v186, 4294901760
      %663 = vmatpush.msra.mxu0 %v662
      %v664 = vand.u32 %v184, 4294901760
      %665 = vmatpush.msra.mxu0 %v664
      %v666 = vand.u32 %v182, 4294901760
      %667 = vmatpush.msra.mxu0 %v666
      %v668 = vand.u32 %v180, 4294901760
      %669 = vmatpush.msra.mxu0 %v668
      %v670 = vand.u32 %v303, 4294901760
      %671 = vmatmul.f32.gmra.mxu0 %v670
      %v672 = vpop.f32.mrf.mxu0
      %v673 = vadd.f32 %v648, %v672
      %674 = vdwg.mxu0
      %v675 = vsub.f32 0.0, %v488
      %v676 = vsub.f32 0.0, %v673
      %v677 = vmul.f32 %v675, 1.442695
      %v678 = vpow.pop %v677
      %v679 = vmul.f32 %v676, 1.442695
      %v680 = vpow.pop %v679
      %v681 = vadd.f32 %v678, 1.0
      %v682 = vadd.f32 %v680, 1.0
      %v683 = vrcp.pop %v681
      %v684 = vmul.f32 %v681, %v683
      %v685 = vsub.f32 1.0, %v684
      %v686 = vmul.f32 %v683, %v685
      %v687 = vadd.f32 %v683, %v686
      %vm688 = vweird.f32 %v681
      %vm689 = vweird.f32 %v683
      %vm690 = vmor %vm688, %vm689
      %v691 = vsel %vm690, %v683, %v687
      %v692 = vand.u32 2147483647, %v681
      %vm693 = vcmp.eq.f32.partialorder %v692, 8.507059e+37
      %v694 = vand.u32 %v681, 2147483648
      %v695 = vor.u32 1.1754944e-38, %v694
      %v696 = vsel %vm693, %v695, %v691
      %v697 = vrcp.pop %v682
      %v698 = vmul.f32 %v682, %v697
      %v699 = vsub.f32 1.0, %v698
      %v700 = vmul.f32 %v697, %v699
      %v701 = vadd.f32 %v697, %v700
      %vm702 = vweird.f32 %v682
      %vm703 = vweird.f32 %v697
      %vm704 = vmor %vm702, %vm703
      %v705 = vsel %vm704, %v697, %v701
      %v706 = vand.u32 2147483647, %v682
      %vm707 = vcmp.eq.f32.partialorder %v706, 8.507059e+37
      %v708 = vand.u32 %v682, 2147483648
      %v709 = vor.u32 1.1754944e-38, %v708
      %v710 = vsel %vm707, %v709, %v705
      %v711 = vmul.f32 %v488, %v696
      %v712 = vmul.f32 %v673, %v710
      %713 = vrot.lane.b32.xlu0 %v711, 34
      %v714 = vpop.permute.xlu0 %713
      %715 = vrot.lane.b32.xlu0 %v712, 34
      %v716 = vpop.permute.xlu0 %715
      %vm717 = vcmp.lt.s32.totalorder %v188, 34
      %v718 = vsel %vm717, %v714, %v716
      %v719 = vsel %vm717, %v716, %v714
      %v720 = vmul.f32 %v202, %v250
      %v721 = vmul.f32 %v203, %v251
      %v722 = vmul.f32 %v719, %v720
      %v723 = vmul.f32 %v718, %v721
      %724 = vset.pattern.permute.xlu0 0
      %725 = vperm.xlu0 %724, %v293
      %v726 = vpop.permute.xlu0 %725
      %v728 = vmul.f32 %v722, %v726
      %v729 = vmul.f32 %v723, %v726
      %v730 = vadd.f32 %v728, 0.0
      %v731 = vadd.f32 %v729, 0.0
      %732 = vrot.lane.b32.xlu0 %v711, 33
      %v733 = vpop.permute.xlu0 %732
      %734 = vrot.lane.b32.xlu0 %v712, 33
      %v735 = vpop.permute.xlu0 %734
      %vm736 = vcmp.lt.s32.totalorder %v188, 33
      %v737 = vsel %vm736, %v733, %v735
      %v738 = vsel %vm736, %v735, %v733
      %v739 = vmul.f32 %v202, %v260
      %v740 = vmul.f32 %v203, %v261
      %v741 = vmul.f32 %v738, %v739
      %v742 = vmul.f32 %v737, %v740
      %743 = vset.pattern.permute.xlu0 1
      %744 = vperm.xlu0 %743, %v293
      %v745 = vpop.permute.xlu0 %744
      %v747 = vmul.f32 %v741, %v745
      %v748 = vmul.f32 %v742, %v745
      %v749 = vadd.f32 %v730, %v747
      %v750 = vadd.f32 %v731, %v748
      %751 = vrot.lane.b32.xlu0 %v711, 32
      %v752 = vpop.permute.xlu0 %751
      %753 = vrot.lane.b32.xlu0 %v712, 32
      %v754 = vpop.permute.xlu0 %753
      %vm755 = vcmp.lt.s32.totalorder %v188, 32
      %v756 = vsel %vm755, %v752, %v754
      %v757 = vsel %vm755, %v754, %v752
      %v758 = vmul.f32 %v202, %v268
      %v759 = vmul.f32 %v203, %v269
      %v760 = vmul.f32 %v757, %v758
      %v761 = vmul.f32 %v756, %v759
      %762 = vset.pattern.permute.xlu0 2
      %763 = vperm.xlu0 %762, %v293
      %v764 = vpop.permute.xlu0 %763
      %v766 = vmul.f32 %v760, %v764
      %v767 = vmul.f32 %v761, %v764
      %v768 = vadd.f32 %v749, %v766
      %v769 = vadd.f32 %v750, %v767
      %770 = vrot.lane.b32.xlu0 %v711, 31
      %v771 = vpop.permute.xlu0 %770
      %772 = vrot.lane.b32.xlu0 %v712, 31
      %v773 = vpop.permute.xlu0 %772
      %vm774 = vcmp.lt.s32.totalorder %v188, 31
      %v775 = vsel %vm774, %v771, %v773
      %v776 = vsel %vm774, %v773, %v771
      %v777 = vmul.f32 %v202, %v278
      %v778 = vmul.f32 %v203, %v279
      %v779 = vmul.f32 %v776, %v777
      %v780 = vmul.f32 %v775, %v778
      %781 = vset.pattern.permute.xlu0 3
      %782 = vperm.xlu0 %781, %v293
      %v783 = vpop.permute.xlu0 %782
      %v785 = vmul.f32 %v779, %v783
      %v786 = vmul.f32 %v780, %v783
      %v787 = vadd.f32 %v768, %v785
      %v788 = vadd.f32 %v769, %v786
      %789 = vrot.lane.b32.xlu0 %v711, 30
      %v790 = vpop.permute.xlu0 %789
      %791 = vrot.lane.b32.xlu0 %v712, 30
      %v792 = vpop.permute.xlu0 %791
      %vm793 = vcmp.lt.s32.totalorder %v188, 30
      %v794 = vsel %vm793, %v790, %v792
      %v795 = vsel %vm793, %v792, %v790
      %v796 = vmul.f32 %v202, %v288
      %v797 = vmul.f32 %v203, %v289
      %v798 = vmul.f32 %v795, %v796
      %v799 = vmul.f32 %v794, %v797
      %800 = vset.pattern.permute.xlu0 4
      %801 = vperm.xlu0 %800, %v293
      %v802 = vpop.permute.xlu0 %801
      %v804 = vmul.f32 %v798, %v802
      %v805 = vmul.f32 %v799, %v802
      %v806 = vadd.f32 %v787, %v804
      %v807 = vadd.f32 %v788, %v805
      %808 = vrot.lane.b32.xlu0 %v711, 18
      %v809 = vpop.permute.xlu0 %808
      %810 = vrot.lane.b32.xlu0 %v712, 18
      %v811 = vpop.permute.xlu0 %810
      %vm812 = vcmp.lt.s32.totalorder %v188, 18
      %v813 = vsel %vm812, %v809, %v811
      %v814 = vsel %vm812, %v811, %v809
      %v815 = vmul.f32 %v212, %v250
      %v816 = vmul.f32 %v213, %v251
      %v817 = vmul.f32 %v814, %v815
      %v818 = vmul.f32 %v813, %v816
      %819 = vset.pattern.permute.xlu0 5
      %820 = vperm.xlu0 %819, %v293
      %v821 = vpop.permute.xlu0 %820
      %v823 = vmul.f32 %v817, %v821
      %v824 = vmul.f32 %v818, %v821
      %v825 = vadd.f32 %v806, %v823
      %v826 = vadd.f32 %v807, %v824
      %827 = vrot.lane.b32.xlu0 %v711, 17
      %v828 = vpop.permute.xlu0 %827
      %829 = vrot.lane.b32.xlu0 %v712, 17
      %v830 = vpop.permute.xlu0 %829
      %vm831 = vcmp.lt.s32.totalorder %v188, 17
      %v832 = vsel %vm831, %v828, %v830
      %v833 = vsel %vm831, %v830, %v828
      %v834 = vmul.f32 %v212, %v260
      %v835 = vmul.f32 %v213, %v261
      %v836 = vmul.f32 %v833, %v834
      %v837 = vmul.f32 %v832, %v835
      %838 = vset.pattern.permute.xlu0 6
      %839 = vperm.xlu0 %838, %v293
      %v840 = vpop.permute.xlu0 %839
      %v842 = vmul.f32 %v836, %v840
      %v843 = vmul.f32 %v837, %v840
      %v844 = vadd.f32 %v825, %v842
      %v845 = vadd.f32 %v826, %v843
      %846 = vrot.lane.b32.xlu0 %v711, 16
      %v847 = vpop.permute.xlu0 %846
      %848 = vrot.lane.b32.xlu0 %v712, 16
      %v849 = vpop.permute.xlu0 %848
      %vm850 = vcmp.lt.s32.totalorder %v188, 16
      %v851 = vsel %vm850, %v847, %v849
      %v852 = vsel %vm850, %v849, %v847
      %v853 = vmul.f32 %v212, %v268
      %v854 = vmul.f32 %v213, %v269
      %v855 = vmul.f32 %v852, %v853
      %v856 = vmul.f32 %v851, %v854
      %857 = vset.pattern.permute.xlu0 7
      %858 = vperm.xlu0 %857, %v293
      %v859 = vpop.permute.xlu0 %858
      %v861 = vmul.f32 %v855, %v859
      %v862 = vmul.f32 %v856, %v859
      %v863 = vadd.f32 %v844, %v861
      %v864 = vadd.f32 %v845, %v862
      %865 = vrot.lane.b32.xlu0 %v711, 15
      %v866 = vpop.permute.xlu0 %865
      %867 = vrot.lane.b32.xlu0 %v712, 15
      %v868 = vpop.permute.xlu0 %867
      %vm869 = vcmp.lt.s32.totalorder %v188, 15
      %v870 = vsel %vm869, %v866, %v868
      %v871 = vsel %vm869, %v868, %v866
      %v872 = vmul.f32 %v212, %v278
      %v873 = vmul.f32 %v213, %v279
      %v874 = vmul.f32 %v871, %v872
      %v875 = vmul.f32 %v870, %v873
      %876 = vset.pattern.permute.xlu0 8
      %877 = vperm.xlu0 %876, %v293
      %v878 = vpop.permute.xlu0 %877
      %v880 = vmul.f32 %v874, %v878
      %v881 = vmul.f32 %v875, %v878
      %v882 = vadd.f32 %v863, %v880
      %v883 = vadd.f32 %v864, %v881
      %884 = vrot.lane.b32.xlu0 %v711, 14
      %v885 = vpop.permute.xlu0 %884
      %886 = vrot.lane.b32.xlu0 %v712, 14
      %v887 = vpop.permute.xlu0 %886
      %vm888 = vcmp.lt.s32.totalorder %v188, 14
      %v889 = vsel %vm888, %v885, %v887
      %v890 = vsel %vm888, %v887, %v885
      %v891 = vmul.f32 %v212, %v288
      %v892 = vmul.f32 %v213, %v289
      %v893 = vmul.f32 %v890, %v891
      %v894 = vmul.f32 %v889, %v892
      %895 = vset.pattern.permute.xlu0 9
      %896 = vperm.xlu0 %895, %v293
      %v897 = vpop.permute.xlu0 %896
      %v899 = vmul.f32 %v893, %v897
      %v900 = vmul.f32 %v894, %v897
      %v901 = vadd.f32 %v882, %v899
      %v902 = vadd.f32 %v883, %v900
      %903 = vrot.lane.b32.xlu0 %v711, 2
      %v904 = vpop.permute.xlu0 %903
      %905 = vrot.lane.b32.xlu0 %v712, 2
      %v906 = vpop.permute.xlu0 %905
      %vm907 = vcmp.lt.s32.totalorder %v188, 2
      %v908 = vsel %vm907, %v904, %v906
      %v909 = vsel %vm907, %v906, %v904
      %v910 = vmul.f32 %v220, %v250
      %v911 = vmul.f32 %v221, %v251
      %v912 = vmul.f32 %v909, %v910
      %v913 = vmul.f32 %v908, %v911
      %914 = vset.pattern.permute.xlu0 10
      %915 = vperm.xlu0 %914, %v293
      %v916 = vpop.permute.xlu0 %915
      %v918 = vmul.f32 %v912, %v916
      %v919 = vmul.f32 %v913, %v916
      %v920 = vadd.f32 %v901, %v918
      %v921 = vadd.f32 %v902, %v919
      %922 = vrot.lane.b32.xlu0 %v711, 1
      %v923 = vpop.permute.xlu0 %922
      %924 = vrot.lane.b32.xlu0 %v712, 1
      %v925 = vpop.permute.xlu0 %924
      %vm926 = vcmp.lt.s32.totalorder %v188, 1
      %v927 = vsel %vm926, %v923, %v925
      %v928 = vsel %vm926, %v925, %v923
      %v929 = vmul.f32 %v220, %v260
      %v930 = vmul.f32 %v221, %v261
      %v931 = vmul.f32 %v928, %v929
      %v932 = vmul.f32 %v927, %v930
      %933 = vset.pattern.permute.xlu0 11
      %934 = vperm.xlu0 %933, %v293
      %v935 = vpop.permute.xlu0 %934
      %v937 = vmul.f32 %v931, %v935
      %v938 = vmul.f32 %v932, %v935
      %v939 = vadd.f32 %v920, %v937
      %v940 = vadd.f32 %v921, %v938
      %v941 = vmul.f32 %v220, %v268
      %v942 = vmul.f32 %v221, %v269
      %v943 = vmul.f32 %v711, %v941
      %v944 = vmul.f32 %v712, %v942
      %945 = vset.pattern.permute.xlu0 12
      %946 = vperm.xlu0 %945, %v293
      %v947 = vpop.permute.xlu0 %946
      %v949 = vmul.f32 %v943, %v947
      %v950 = vmul.f32 %v944, %v947
      %v951 = vadd.f32 %v939, %v949
      %v952 = vadd.f32 %v940, %v950
      %953 = vrot.lane.b32.xlu0 %v711, 127
      %v954 = vpop.permute.xlu0 %953
      %955 = vrot.lane.b32.xlu0 %v712, 127
      %v956 = vpop.permute.xlu0 %955
      %vm957 = vcmp.lt.s32.totalorder %v188, 127
      %v958 = vsel %vm957, %v954, %v956
      %v959 = vsel %vm957, %v956, %v954
      %v960 = vmul.f32 %v220, %v278
      %v961 = vmul.f32 %v221, %v279
      %v962 = vmul.f32 %v958, %v960
      %v963 = vmul.f32 %v959, %v961
      %964 = vset.pattern.permute.xlu0 13
      %965 = vperm.xlu0 %964, %v293
      %v966 = vpop.permute.xlu0 %965
      %v968 = vmul.f32 %v962, %v966
      %v969 = vmul.f32 %v963, %v966
      %v970 = vadd.f32 %v951, %v968
      %v971 = vadd.f32 %v952, %v969
      %972 = vrot.lane.b32.xlu0 %v711, 126
      %v973 = vpop.permute.xlu0 %972
      %974 = vrot.lane.b32.xlu0 %v712, 126
      %v975 = vpop.permute.xlu0 %974
      %vm976 = vcmp.lt.s32.totalorder %v188, 126
      %v977 = vsel %vm976, %v973, %v975
      %v978 = vsel %vm976, %v975, %v973
      %v979 = vmul.f32 %v220, %v288
      %v980 = vmul.f32 %v221, %v289
      %v981 = vmul.f32 %v977, %v979
      %v982 = vmul.f32 %v978, %v980
      %983 = vset.pattern.permute.xlu0 14
      %984 = vperm.xlu0 %983, %v293
      %v985 = vpop.permute.xlu0 %984
      %v987 = vmul.f32 %v981, %v985
      %v988 = vmul.f32 %v982, %v985
      %v989 = vadd.f32 %v970, %v987
      %v990 = vadd.f32 %v971, %v988
      %991 = vrot.lane.b32.xlu0 %v711, 114
      %v992 = vpop.permute.xlu0 %991
      %993 = vrot.lane.b32.xlu0 %v712, 114
      %v994 = vpop.permute.xlu0 %993
      %vm995 = vcmp.lt.s32.totalorder %v188, 114
      %v996 = vsel %vm995, %v992, %v994
      %v997 = vsel %vm995, %v994, %v992
      %v998 = vmul.f32 %v230, %v250
      %v999 = vmul.f32 %v231, %v251
      %v1000 = vmul.f32 %v996, %v998
      %v1001 = vmul.f32 %v997, %v999
      %1002 = vset.pattern.permute.xlu0 15
      %1003 = vperm.xlu0 %1002, %v293
      %v1004 = vpop.permute.xlu0 %1003
      %v1006 = vmul.f32 %v1000, %v1004
      %v1007 = vmul.f32 %v1001, %v1004
      %v1008 = vadd.f32 %v989, %v1006
      %v1009 = vadd.f32 %v990, %v1007
      %1010 = vrot.lane.b32.xlu0 %v711, 113
      %v1011 = vpop.permute.xlu0 %1010
      %1012 = vrot.lane.b32.xlu0 %v712, 113
      %v1013 = vpop.permute.xlu0 %1012
      %vm1014 = vcmp.lt.s32.totalorder %v188, 113
      %v1015 = vsel %vm1014, %v1011, %v1013
      %v1016 = vsel %vm1014, %v1013, %v1011
      %v1017 = vmul.f32 %v230, %v260
      %v1018 = vmul.f32 %v231, %v261
      %v1019 = vmul.f32 %v1015, %v1017
      %v1020 = vmul.f32 %v1016, %v1018
      %1021 = vset.pattern.permute.xlu0 16
      %1022 = vperm.xlu0 %1021, %v293
      %v1023 = vpop.permute.xlu0 %1022
      %v1025 = vmul.f32 %v1019, %v1023
      %v1026 = vmul.f32 %v1020, %v1023
      %v1027 = vadd.f32 %v1008, %v1025
      %v1028 = vadd.f32 %v1009, %v1026
      %1029 = vrot.lane.b32.xlu0 %v711, 112
      %v1030 = vpop.permute.xlu0 %1029
      %1031 = vrot.lane.b32.xlu0 %v712, 112
      %v1032 = vpop.permute.xlu0 %1031
      %vm1033 = vcmp.lt.s32.totalorder %v188, 112
      %v1034 = vsel %vm1033, %v1030, %v1032
      %v1035 = vsel %vm1033, %v1032, %v1030
      %v1036 = vmul.f32 %v230, %v268
      %v1037 = vmul.f32 %v231, %v269
      %v1038 = vmul.f32 %v1034, %v1036
      %v1039 = vmul.f32 %v1035, %v1037
      %1040 = vset.pattern.permute.xlu0 17
      %1041 = vperm.xlu0 %1040, %v293
      %v1042 = vpop.permute.xlu0 %1041
      %v1044 = vmul.f32 %v1038, %v1042
      %v1045 = vmul.f32 %v1039, %v1042
      %v1046 = vadd.f32 %v1027, %v1044
      %v1047 = vadd.f32 %v1028, %v1045
      %1048 = vrot.lane.b32.xlu0 %v711, 111
      %v1049 = vpop.permute.xlu0 %1048
      %1050 = vrot.lane.b32.xlu0 %v712, 111
      %v1051 = vpop.permute.xlu0 %1050
      %vm1052 = vcmp.lt.s32.totalorder %v188, 111
      %v1053 = vsel %vm1052, %v1049, %v1051
      %v1054 = vsel %vm1052, %v1051, %v1049
      %v1055 = vmul.f32 %v230, %v278
      %v1056 = vmul.f32 %v231, %v279
      %v1057 = vmul.f32 %v1053, %v1055
      %v1058 = vmul.f32 %v1054, %v1056
      %1059 = vset.pattern.permute.xlu0 18
      %1060 = vperm.xlu0 %1059, %v293
      %v1061 = vpop.permute.xlu0 %1060
      %v1063 = vmul.f32 %v1057, %v1061
      %v1064 = vmul.f32 %v1058, %v1061
      %v1065 = vadd.f32 %v1046, %v1063
      %v1066 = vadd.f32 %v1047, %v1064
      %1067 = vrot.lane.b32.xlu0 %v711, 110
      %v1068 = vpop.permute.xlu0 %1067
      %1069 = vrot.lane.b32.xlu0 %v712, 110
      %v1070 = vpop.permute.xlu0 %1069
      %vm1071 = vcmp.lt.s32.totalorder %v188, 110
      %v1072 = vsel %vm1071, %v1068, %v1070
      %v1073 = vsel %vm1071, %v1070, %v1068
      %v1074 = vmul.f32 %v230, %v288
      %v1075 = vmul.f32 %v231, %v289
      %v1076 = vmul.f32 %v1072, %v1074
      %v1077 = vmul.f32 %v1073, %v1075
      %1078 = vset.pattern.permute.xlu0 19
      %1079 = vperm.xlu0 %1078, %v293
      %v1080 = vpop.permute.xlu0 %1079
      %v1082 = vmul.f32 %v1076, %v1080
      %v1083 = vmul.f32 %v1077, %v1080
      %v1084 = vadd.f32 %v1065, %v1082
      %v1085 = vadd.f32 %v1066, %v1083
      %1086 = vrot.lane.b32.xlu0 %v711, 98
      %v1087 = vpop.permute.xlu0 %1086
      %1088 = vrot.lane.b32.xlu0 %v712, 98
      %v1089 = vpop.permute.xlu0 %1088
      %vm1090 = vcmp.lt.s32.totalorder %v188, 98
      %v1091 = vsel %vm1090, %v1087, %v1089
      %v1092 = vsel %vm1090, %v1089, %v1087
      %v1093 = vmul.f32 %v240, %v250
      %v1094 = vmul.f32 %v241, %v251
      %v1095 = vmul.f32 %v1091, %v1093
      %v1096 = vmul.f32 %v1092, %v1094
      %1097 = vset.pattern.permute.xlu0 20
      %1098 = vperm.xlu0 %1097, %v293
      %v1099 = vpop.permute.xlu0 %1098
      %v1101 = vmul.f32 %v1095, %v1099
      %v1102 = vmul.f32 %v1096, %v1099
      %v1103 = vadd.f32 %v1084, %v1101
      %v1104 = vadd.f32 %v1085, %v1102
      %1105 = vrot.lane.b32.xlu0 %v711, 97
      %v1106 = vpop.permute.xlu0 %1105
      %1107 = vrot.lane.b32.xlu0 %v712, 97
      %v1108 = vpop.permute.xlu0 %1107
      %vm1109 = vcmp.lt.s32.totalorder %v188, 97
      %v1110 = vsel %vm1109, %v1106, %v1108
      %v1111 = vsel %vm1109, %v1108, %v1106
      %v1112 = vmul.f32 %v240, %v260
      %v1113 = vmul.f32 %v241, %v261
      %v1114 = vmul.f32 %v1110, %v1112
      %v1115 = vmul.f32 %v1111, %v1113
      %1116 = vset.pattern.permute.xlu0 21
      %1117 = vperm.xlu0 %1116, %v293
      %v1118 = vpop.permute.xlu0 %1117
      %v1120 = vmul.f32 %v1114, %v1118
      %v1121 = vmul.f32 %v1115, %v1118
      %v1122 = vadd.f32 %v1103, %v1120
      %v1123 = vadd.f32 %v1104, %v1121
      %1124 = vrot.lane.b32.xlu0 %v711, 96
      %v1125 = vpop.permute.xlu0 %1124
      %1126 = vrot.lane.b32.xlu0 %v712, 96
      %v1127 = vpop.permute.xlu0 %1126
      %vm1128 = vcmp.lt.s32.totalorder %v188, 96
      %v1129 = vsel %vm1128, %v1125, %v1127
      %v1130 = vsel %vm1128, %v1127, %v1125
      %v1131 = vmul.f32 %v240, %v268
      %v1132 = vmul.f32 %v241, %v269
      %v1133 = vmul.f32 %v1129, %v1131
      %v1134 = vmul.f32 %v1130, %v1132
      %1135 = vset.pattern.permute.xlu0 22
      %1136 = vperm.xlu0 %1135, %v293
      %v1137 = vpop.permute.xlu0 %1136
      %v1139 = vmul.f32 %v1133, %v1137
      %v1140 = vmul.f32 %v1134, %v1137
      %v1141 = vadd.f32 %v1122, %v1139
      %v1142 = vadd.f32 %v1123, %v1140
      %1143 = vrot.lane.b32.xlu0 %v711, 95
      %v1144 = vpop.permute.xlu0 %1143
      %1145 = vrot.lane.b32.xlu0 %v712, 95
      %v1146 = vpop.permute.xlu0 %1145
      %vm1147 = vcmp.lt.s32.totalorder %v188, 95
      %v1148 = vsel %vm1147, %v1144, %v1146
      %v1149 = vsel %vm1147, %v1146, %v1144
      %v1150 = vmul.f32 %v240, %v278
      %v1151 = vmul.f32 %v241, %v279
      %v1152 = vmul.f32 %v1148, %v1150
      %v1153 = vmul.f32 %v1149, %v1151
      %1154 = vset.pattern.permute.xlu0 23
      %1155 = vperm.xlu0 %1154, %v293
      %v1156 = vpop.permute.xlu0 %1155
      %v1158 = vmul.f32 %v1152, %v1156
      %v1159 = vmul.f32 %v1153, %v1156
      %v1160 = vadd.f32 %v1141, %v1158
      %v1161 = vadd.f32 %v1142, %v1159
      %1162 = vrot.lane.b32.xlu0 %v711, 94
      %v1163 = vpop.permute.xlu0 %1162
      %1164 = vrot.lane.b32.xlu0 %v712, 94
      %v1165 = vpop.permute.xlu0 %1164
      %vm1166 = vcmp.lt.s32.totalorder %v188, 94
      %v1167 = vsel %vm1166, %v1163, %v1165
      %v1168 = vsel %vm1166, %v1165, %v1163
      %v1169 = vmul.f32 %v240, %v288
      %v1170 = vmul.f32 %v241, %v289
      %v1171 = vmul.f32 %v1167, %v1169
      %v1172 = vmul.f32 %v1168, %v1170
      %1173 = vset.pattern.permute.xlu0 24
      %1174 = vperm.xlu0 %1173, %v293
      %v1175 = vpop.permute.xlu0 %1174
      %v1177 = vmul.f32 %v1171, %v1175
      %v1178 = vmul.f32 %v1172, %v1175
      %v1179 = vadd.f32 %v1160, %v1177
      %v1180 = vadd.f32 %v1161, %v1178
      %1181 = vset.pattern.permute.xlu0 26
      %1182 = vperm.xlu0 %1181, %v293
      %v1183 = vpop.permute.xlu0 %1182
      %v1185 = vadd.f32 %v1179, %v1183
      %v1186 = vadd.f32 %v1180, %v1183
      %v1187 = vsub.f32 0.0, %v1185
      %v1188 = vsub.f32 0.0, %v1186
      %v1189 = vmul.f32 %v1187, 1.442695
      %v1190 = vpow.pop %v1189
      %v1191 = vmul.f32 %v1188, 1.442695
      %v1192 = vpow.pop %v1191
      %v1193 = vadd.f32 %v1190, 1.0
      %v1194 = vadd.f32 %v1192, 1.0
      %v1195 = vrcp.pop %v1193
      %v1196 = vmul.f32 %v1193, %v1195
      %v1197 = vsub.f32 1.0, %v1196
      %v1198 = vmul.f32 %v1195, %v1197
      %v1199 = vadd.f32 %v1195, %v1198
      %vm1200 = vweird.f32 %v1193
      %vm1201 = vweird.f32 %v1195
      %vm1202 = vmor %vm1200, %vm1201
      %v1203 = vsel %vm1202, %v1195, %v1199
      %v1204 = vand.u32 2147483647, %v1193
      %vm1205 = vcmp.eq.f32.partialorder %v1204, 8.507059e+37
      %v1206 = vand.u32 %v1193, 2147483648
      %v1207 = vor.u32 1.1754944e-38, %v1206
      %v1208 = vsel %vm1205, %v1207, %v1203
      %v1209 = vrcp.pop %v1194
      %v1210 = vmul.f32 %v1194, %v1209
      %v1211 = vsub.f32 1.0, %v1210
      %v1212 = vmul.f32 %v1209, %v1211
      %v1213 = vadd.f32 %v1209, %v1212
      %vm1214 = vweird.f32 %v1194
      %vm1215 = vweird.f32 %v1209
      %vm1216 = vmor %vm1214, %vm1215
      %v1217 = vsel %vm1216, %v1209, %v1213
      %v1218 = vand.u32 2147483647, %v1194
      %vm1219 = vcmp.eq.f32.partialorder %v1218, 8.507059e+37
      %v1220 = vand.u32 %v1194, 2147483648
      %v1221 = vor.u32 1.1754944e-38, %v1220
      %v1222 = vsel %vm1219, %v1221, %v1217
      %v1223 = vmul.f32 %v1185, %v1208
      %v1224 = vmul.f32 %v1186, %v1222
      %1226 = vset.pattern.permute.xlu0 25
      %1227 = vperm.xlu0 %1226, %v294
      %v1228 = vpop.permute.xlu0 %1227
      %1231 = vset.pattern.permute.xlu0 25
      %1232 = vperm.xlu0 %1231, %v295
      %v1233 = vpop.permute.xlu0 %1232
      %vm1235 = vcmask 130048
      %v1237 = vsel %vm1235, %v291, 0
      %v1240 = vsel %vm1235, %v292, 0
      %1242 = vmatpush.msra.mxu0 0.0
      %1243 = vmatpush.msra.mxu0 0.0
      %1244 = vmatpush.msra.mxu0 0.0
      %1245 = vmatpush.msra.mxu0 0.0
      %1246 = vmatpush.msra.mxu0 0.0
      %1247 = vmatpush.msra.mxu0 0.0
      %1248 = vmatpush.msra.mxu0 0.0
      %1249 = vmatpush.msra.mxu0 0.0
      %1250 = vmatpush.msra.mxu0 0.0
      %1251 = vmatpush.msra.mxu0 0.0
      %1252 = vmatpush.msra.mxu0 0.0
      %1253 = vmatpush.msra.mxu0 0.0
      %1254 = vmatpush.msra.mxu0 0.0
      %1255 = vmatpush.msra.mxu0 0.0
      %v1256 = vand.u32 %v1223, 4294901760
      %1257 = vmatpush.msra.mxu0 %v1256
      %v1258 = vand.u32 %v711, 4294901760
      %1259 = vmatpush.msra.mxu0 %v1258
      %v1260 = vand.u32 %v1237, 4294901760
      %v1261 = vsub.f32 %v1237, %v1260
      %v1262 = vand.u32 %v1261, 4294901760
      %v1263 = vsub.f32 %v1261, %v1262
      %v1264 = vand.u32 %v1263, 4294901760
      %1265 = vmatmul.f32.gmra.mxu0 %v1264
      %v1266 = vpop.f32.mrf.mxu0
      %v1267 = vadd.f32 %v1228, %v1266
      %v1268 = vand.u32 %v1240, 4294901760
      %v1269 = vsub.f32 %v1240, %v1268
      %v1270 = vand.u32 %v1269, 4294901760
      %v1271 = vsub.f32 %v1269, %v1270
      %v1272 = vand.u32 %v1271, 4294901760
      %1273 = vmatmul.f32.gmra.mxu0 %v1272
      %v1274 = vpop.f32.mrf.mxu0
      %v1275 = vadd.f32 %v1233, %v1274
      %1276 = vdwg.mxu0
      %1277 = vmatpush.msra.mxu0 0.0
      %1278 = vmatpush.msra.mxu0 0.0
      %1279 = vmatpush.msra.mxu0 0.0
      %1280 = vmatpush.msra.mxu0 0.0
      %1281 = vmatpush.msra.mxu0 0.0
      %1282 = vmatpush.msra.mxu0 0.0
      %1283 = vmatpush.msra.mxu0 0.0
      %1284 = vmatpush.msra.mxu0 0.0
      %1285 = vmatpush.msra.mxu0 0.0
      %1286 = vmatpush.msra.mxu0 0.0
      %1287 = vmatpush.msra.mxu0 0.0
      %1288 = vmatpush.msra.mxu0 0.0
      %1289 = vmatpush.msra.mxu0 0.0
      %1290 = vmatpush.msra.mxu0 0.0
      %v1291 = vand.u32 %v1223, 4294901760
      %v1292 = vsub.f32 %v1223, %v1291
      %v1293 = vand.u32 %v1292, 4294901760
      %v1294 = vsub.f32 %v1292, %v1293
      %v1295 = vand.u32 %v1294, 4294901760
      %1296 = vmatpush.msra.mxu0 %v1295
      %v1297 = vand.u32 %v711, 4294901760
      %v1298 = vsub.f32 %v711, %v1297
      %v1299 = vand.u32 %v1298, 4294901760
      %v1300 = vsub.f32 %v1298, %v1299
      %v1301 = vand.u32 %v1300, 4294901760
      %1302 = vmatpush.msra.mxu0 %v1301
      %v1303 = vand.u32 %v1237, 4294901760
      %1304 = vmatmul.f32.gmra.mxu0 %v1303
      %v1305 = vpop.f32.mrf.mxu0
      %v1306 = vadd.f32 %v1267, %v1305
      %v1307 = vand.u32 %v1240, 4294901760
      %1308 = vmatmul.f32.gmra.mxu0 %v1307
      %v1309 = vpop.f32.mrf.mxu0
      %v1310 = vadd.f32 %v1275, %v1309
      %1311 = vdwg.mxu0
      %1312 = vmatpush.msra.mxu0 0.0
      %1313 = vmatpush.msra.mxu0 0.0
      %1314 = vmatpush.msra.mxu0 0.0
      %1315 = vmatpush.msra.mxu0 0.0
      %1316 = vmatpush.msra.mxu0 0.0
      %1317 = vmatpush.msra.mxu0 0.0
      %1318 = vmatpush.msra.mxu0 0.0
      %1319 = vmatpush.msra.mxu0 0.0
      %1320 = vmatpush.msra.mxu0 0.0
      %1321 = vmatpush.msra.mxu0 0.0
      %1322 = vmatpush.msra.mxu0 0.0
      %1323 = vmatpush.msra.mxu0 0.0
      %1324 = vmatpush.msra.mxu0 0.0
      %1325 = vmatpush.msra.mxu0 0.0
      %v1326 = vand.u32 %v1223, 4294901760
      %v1327 = vsub.f32 %v1223, %v1326
      %1328 = vmatpush.msra.mxu0 %v1327
      %v1329 = vand.u32 %v711, 4294901760
      %v1330 = vsub.f32 %v711, %v1329
      %1331 = vmatpush.msra.mxu0 %v1330
      %v1332 = vand.u32 %v1237, 4294901760
      %v1333 = vsub.f32 %v1237, %v1332
      %1334 = vmatmul.f32.gmra.mxu0 %v1333
      %v1335 = vpop.f32.mrf.mxu0
      %v1336 = vadd.f32 %v1306, %v1335
      %v1337 = vand.u32 %v1240, 4294901760
      %v1338 = vsub.f32 %v1240, %v1337
      %1339 = vmatmul.f32.gmra.mxu0 %v1338
      %v1340 = vpop.f32.mrf.mxu0
      %v1341 = vadd.f32 %v1310, %v1340
      %1342 = vdwg.mxu0
      %1343 = vmatpush.msra.mxu0 0.0
      %1344 = vmatpush.msra.mxu0 0.0
      %1345 = vmatpush.msra.mxu0 0.0
      %1346 = vmatpush.msra.mxu0 0.0
      %1347 = vmatpush.msra.mxu0 0.0
      %1348 = vmatpush.msra.mxu0 0.0
      %1349 = vmatpush.msra.mxu0 0.0
      %1350 = vmatpush.msra.mxu0 0.0
      %1351 = vmatpush.msra.mxu0 0.0
      %1352 = vmatpush.msra.mxu0 0.0
      %1353 = vmatpush.msra.mxu0 0.0
      %1354 = vmatpush.msra.mxu0 0.0
      %1355 = vmatpush.msra.mxu0 0.0
      %1356 = vmatpush.msra.mxu0 0.0
      %v1357 = vand.u32 %v1223, 4294901760
      %1358 = vmatpush.msra.mxu0 %v1357
      %v1359 = vand.u32 %v711, 4294901760
      %1360 = vmatpush.msra.mxu0 %v1359
      %v1361 = vand.u32 %v1237, 4294901760
      %v1362 = vsub.f32 %v1237, %v1361
      %v1363 = vand.u32 %v1362, 4294901760
      %1364 = vmatmul.f32.gmra.mxu0 %v1363
      %v1365 = vpop.f32.mrf.mxu0
      %v1366 = vadd.f32 %v1336, %v1365
      %v1367 = vand.u32 %v1240, 4294901760
      %v1368 = vsub.f32 %v1240, %v1367
      %v1369 = vand.u32 %v1368, 4294901760
      %1370 = vmatmul.f32.gmra.mxu0 %v1369
      %v1371 = vpop.f32.mrf.mxu0
      %v1372 = vadd.f32 %v1341, %v1371
      %1373 = vdwg.mxu0
      %1374 = vmatpush.msra.mxu0 0.0
      %1375 = vmatpush.msra.mxu0 0.0
      %1376 = vmatpush.msra.mxu0 0.0
      %1377 = vmatpush.msra.mxu0 0.0
      %1378 = vmatpush.msra.mxu0 0.0
      %1379 = vmatpush.msra.mxu0 0.0
      %1380 = vmatpush.msra.mxu0 0.0
      %1381 = vmatpush.msra.mxu0 0.0
      %1382 = vmatpush.msra.mxu0 0.0
      %1383 = vmatpush.msra.mxu0 0.0
      %1384 = vmatpush.msra.mxu0 0.0
      %1385 = vmatpush.msra.mxu0 0.0
      %1386 = vmatpush.msra.mxu0 0.0
      %1387 = vmatpush.msra.mxu0 0.0
      %v1388 = vand.u32 %v1223, 4294901760
      %v1389 = vsub.f32 %v1223, %v1388
      %v1390 = vand.u32 %v1389, 4294901760
      %1391 = vmatpush.msra.mxu0 %v1390
      %v1392 = vand.u32 %v711, 4294901760
      %v1393 = vsub.f32 %v711, %v1392
      %v1394 = vand.u32 %v1393, 4294901760
      %1395 = vmatpush.msra.mxu0 %v1394
      %v1396 = vand.u32 %v1237, 4294901760
      %1397 = vmatmul.f32.gmra.mxu0 %v1396
      %v1398 = vpop.f32.mrf.mxu0
      %v1399 = vadd.f32 %v1366, %v1398
      %v1400 = vand.u32 %v1240, 4294901760
      %1401 = vmatmul.f32.gmra.mxu0 %v1400
      %v1402 = vpop.f32.mrf.mxu0
      %v1403 = vadd.f32 %v1372, %v1402
      %1404 = vdwg.mxu0
      %1405 = vmatpush.msra.mxu0 0.0
      %1406 = vmatpush.msra.mxu0 0.0
      %1407 = vmatpush.msra.mxu0 0.0
      %1408 = vmatpush.msra.mxu0 0.0
      %1409 = vmatpush.msra.mxu0 0.0
      %1410 = vmatpush.msra.mxu0 0.0
      %1411 = vmatpush.msra.mxu0 0.0
      %1412 = vmatpush.msra.mxu0 0.0
      %1413 = vmatpush.msra.mxu0 0.0
      %1414 = vmatpush.msra.mxu0 0.0
      %1415 = vmatpush.msra.mxu0 0.0
      %1416 = vmatpush.msra.mxu0 0.0
      %1417 = vmatpush.msra.mxu0 0.0
      %1418 = vmatpush.msra.mxu0 0.0
      %v1419 = vand.u32 %v1223, 4294901760
      %1420 = vmatpush.msra.mxu0 %v1419
      %v1421 = vand.u32 %v711, 4294901760
      %1422 = vmatpush.msra.mxu0 %v1421
      %v1423 = vand.u32 %v1237, 4294901760
      %1424 = vmatmul.f32.gmra.mxu0 %v1423
      %v1425 = vpop.f32.mrf.mxu0
      %v1426 = vadd.f32 %v1399, %v1425
      %v1427 = vand.u32 %v1240, 4294901760
      %1428 = vmatmul.f32.gmra.mxu0 %v1427
      %v1429 = vpop.f32.mrf.mxu0
      %v1430 = vadd.f32 %v1403, %v1429
      %1431 = vdwg.mxu0
      %1432 = vmatpush.msra.mxu0 0.0
      %1433 = vmatpush.msra.mxu0 0.0
      %1434 = vmatpush.msra.mxu0 0.0
      %1435 = vmatpush.msra.mxu0 0.0
      %1436 = vmatpush.msra.mxu0 0.0
      %1437 = vmatpush.msra.mxu0 0.0
      %1438 = vmatpush.msra.mxu0 0.0
      %1439 = vmatpush.msra.mxu0 0.0
      %1440 = vmatpush.msra.mxu0 0.0
      %1441 = vmatpush.msra.mxu0 0.0
      %1442 = vmatpush.msra.mxu0 0.0
      %1443 = vmatpush.msra.mxu0 0.0
      %1444 = vmatpush.msra.mxu0 0.0
      %1445 = vmatpush.msra.mxu0 0.0
      %v1446 = vand.u32 %v1224, 4294901760
      %1447 = vmatpush.msra.mxu0 %v1446
      %v1448 = vand.u32 %v712, 4294901760
      %1449 = vmatpush.msra.mxu0 %v1448
      %v1450 = vand.u32 %v1237, 4294901760
      %v1451 = vsub.f32 %v1237, %v1450
      %v1452 = vand.u32 %v1451, 4294901760
      %v1453 = vsub.f32 %v1451, %v1452
      %v1454 = vand.u32 %v1453, 4294901760
      %1455 = vmatmul.f32.gmra.mxu0 %v1454
      %v1456 = vpop.f32.mrf.mxu0
      %v1457 = vadd.f32 %v1228, %v1456
      %v1458 = vand.u32 %v1240, 4294901760
      %v1459 = vsub.f32 %v1240, %v1458
      %v1460 = vand.u32 %v1459, 4294901760
      %v1461 = vsub.f32 %v1459, %v1460
      %v1462 = vand.u32 %v1461, 4294901760
      %1463 = vmatmul.f32.gmra.mxu0 %v1462
      %v1464 = vpop.f32.mrf.mxu0
      %v1465 = vadd.f32 %v1233, %v1464
      %1466 = vdwg.mxu0
      %1467 = vmatpush.msra.mxu0 0.0
      %1468 = vmatpush.msra.mxu0 0.0
      %1469 = vmatpush.msra.mxu0 0.0
      %1470 = vmatpush.msra.mxu0 0.0
      %1471 = vmatpush.msra.mxu0 0.0
      %1472 = vmatpush.msra.mxu0 0.0
      %1473 = vmatpush.msra.mxu0 0.0
      %1474 = vmatpush.msra.mxu0 0.0
      %1475 = vmatpush.msra.mxu0 0.0
      %1476 = vmatpush.msra.mxu0 0.0
      %1477 = vmatpush.msra.mxu0 0.0
      %1478 = vmatpush.msra.mxu0 0.0
      %1479 = vmatpush.msra.mxu0 0.0
      %1480 = vmatpush.msra.mxu0 0.0
      %v1481 = vand.u32 %v1224, 4294901760
      %v1482 = vsub.f32 %v1224, %v1481
      %v1483 = vand.u32 %v1482, 4294901760
      %v1484 = vsub.f32 %v1482, %v1483
      %v1485 = vand.u32 %v1484, 4294901760
      %1486 = vmatpush.msra.mxu0 %v1485
      %v1487 = vand.u32 %v712, 4294901760
      %v1488 = vsub.f32 %v712, %v1487
      %v1489 = vand.u32 %v1488, 4294901760
      %v1490 = vsub.f32 %v1488, %v1489
      %v1491 = vand.u32 %v1490, 4294901760
      %1492 = vmatpush.msra.mxu0 %v1491
      %v1493 = vand.u32 %v1237, 4294901760
      %1494 = vmatmul.f32.gmra.mxu0 %v1493
      %v1495 = vpop.f32.mrf.mxu0
      %v1496 = vadd.f32 %v1457, %v1495
      %v1497 = vand.u32 %v1240, 4294901760
      %1498 = vmatmul.f32.gmra.mxu0 %v1497
      %v1499 = vpop.f32.mrf.mxu0
      %v1500 = vadd.f32 %v1465, %v1499
      %1501 = vdwg.mxu0
      %1502 = vmatpush.msra.mxu0 0.0
      %1503 = vmatpush.msra.mxu0 0.0
      %1504 = vmatpush.msra.mxu0 0.0
      %1505 = vmatpush.msra.mxu0 0.0
      %1506 = vmatpush.msra.mxu0 0.0
      %1507 = vmatpush.msra.mxu0 0.0
      %1508 = vmatpush.msra.mxu0 0.0
      %1509 = vmatpush.msra.mxu0 0.0
      %1510 = vmatpush.msra.mxu0 0.0
      %1511 = vmatpush.msra.mxu0 0.0
      %1512 = vmatpush.msra.mxu0 0.0
      %1513 = vmatpush.msra.mxu0 0.0
      %1514 = vmatpush.msra.mxu0 0.0
      %1515 = vmatpush.msra.mxu0 0.0
      %v1516 = vand.u32 %v1224, 4294901760
      %v1517 = vsub.f32 %v1224, %v1516
      %1518 = vmatpush.msra.mxu0 %v1517
      %v1519 = vand.u32 %v712, 4294901760
      %v1520 = vsub.f32 %v712, %v1519
      %1521 = vmatpush.msra.mxu0 %v1520
      %v1522 = vand.u32 %v1237, 4294901760
      %v1523 = vsub.f32 %v1237, %v1522
      %1524 = vmatmul.f32.gmra.mxu0 %v1523
      %v1525 = vpop.f32.mrf.mxu0
      %v1526 = vadd.f32 %v1496, %v1525
      %v1527 = vand.u32 %v1240, 4294901760
      %v1528 = vsub.f32 %v1240, %v1527
      %1529 = vmatmul.f32.gmra.mxu0 %v1528
      %v1530 = vpop.f32.mrf.mxu0
      %v1531 = vadd.f32 %v1500, %v1530
      %1532 = vdwg.mxu0
      %1533 = vmatpush.msra.mxu0 0.0
      %1534 = vmatpush.msra.mxu0 0.0
      %1535 = vmatpush.msra.mxu0 0.0
      %1536 = vmatpush.msra.mxu0 0.0
      %1537 = vmatpush.msra.mxu0 0.0
      %1538 = vmatpush.msra.mxu0 0.0
      %1539 = vmatpush.msra.mxu0 0.0
      %1540 = vmatpush.msra.mxu0 0.0
      %1541 = vmatpush.msra.mxu0 0.0
      %1542 = vmatpush.msra.mxu0 0.0
      %1543 = vmatpush.msra.mxu0 0.0
      %1544 = vmatpush.msra.mxu0 0.0
      %1545 = vmatpush.msra.mxu0 0.0
      %1546 = vmatpush.msra.mxu0 0.0
      %v1547 = vand.u32 %v1224, 4294901760
      %1548 = vmatpush.msra.mxu0 %v1547
      %v1549 = vand.u32 %v712, 4294901760
      %1550 = vmatpush.msra.mxu0 %v1549
      %v1551 = vand.u32 %v1237, 4294901760
      %v1552 = vsub.f32 %v1237, %v1551
      %v1553 = vand.u32 %v1552, 4294901760
      %1554 = vmatmul.f32.gmra.mxu0 %v1553
      %v1555 = vpop.f32.mrf.mxu0
      %v1556 = vadd.f32 %v1526, %v1555
      %v1557 = vand.u32 %v1240, 4294901760
      %v1558 = vsub.f32 %v1240, %v1557
      %v1559 = vand.u32 %v1558, 4294901760
      %1560 = vmatmul.f32.gmra.mxu0 %v1559
      %v1561 = vpop.f32.mrf.mxu0
      %v1562 = vadd.f32 %v1531, %v1561
      %1563 = vdwg.mxu0
      %1564 = vmatpush.msra.mxu0 0.0
      %1565 = vmatpush.msra.mxu0 0.0
      %1566 = vmatpush.msra.mxu0 0.0
      %1567 = vmatpush.msra.mxu0 0.0
      %1568 = vmatpush.msra.mxu0 0.0
      %1569 = vmatpush.msra.mxu0 0.0
      %1570 = vmatpush.msra.mxu0 0.0
      %1571 = vmatpush.msra.mxu0 0.0
      %1572 = vmatpush.msra.mxu0 0.0
      %1573 = vmatpush.msra.mxu0 0.0
      %1574 = vmatpush.msra.mxu0 0.0
      %1575 = vmatpush.msra.mxu0 0.0
      %1576 = vmatpush.msra.mxu0 0.0
      %1577 = vmatpush.msra.mxu0 0.0
      %v1578 = vand.u32 %v1224, 4294901760
      %v1579 = vsub.f32 %v1224, %v1578
      %v1580 = vand.u32 %v1579, 4294901760
      %1581 = vmatpush.msra.mxu0 %v1580
      %v1582 = vand.u32 %v712, 4294901760
      %v1583 = vsub.f32 %v712, %v1582
      %v1584 = vand.u32 %v1583, 4294901760
      %1585 = vmatpush.msra.mxu0 %v1584
      %v1586 = vand.u32 %v1237, 4294901760
      %1587 = vmatmul.f32.gmra.mxu0 %v1586
      %v1588 = vpop.f32.mrf.mxu0
      %v1589 = vadd.f32 %v1556, %v1588
      %v1590 = vand.u32 %v1240, 4294901760
      %1591 = vmatmul.f32.gmra.mxu0 %v1590
      %v1592 = vpop.f32.mrf.mxu0
      %v1593 = vadd.f32 %v1562, %v1592
      %1594 = vdwg.mxu0
      %1595 = vmatpush.msra.mxu0 0.0
      %1596 = vmatpush.msra.mxu0 0.0
      %1597 = vmatpush.msra.mxu0 0.0
      %1598 = vmatpush.msra.mxu0 0.0
      %1599 = vmatpush.msra.mxu0 0.0
      %1600 = vmatpush.msra.mxu0 0.0
      %1601 = vmatpush.msra.mxu0 0.0
      %1602 = vmatpush.msra.mxu0 0.0
      %1603 = vmatpush.msra.mxu0 0.0
      %1604 = vmatpush.msra.mxu0 0.0
      %1605 = vmatpush.msra.mxu0 0.0
      %1606 = vmatpush.msra.mxu0 0.0
      %1607 = vmatpush.msra.mxu0 0.0
      %1608 = vmatpush.msra.mxu0 0.0
      %v1609 = vand.u32 %v1224, 4294901760
      %1610 = vmatpush.msra.mxu0 %v1609
      %v1611 = vand.u32 %v712, 4294901760
      %1612 = vmatpush.msra.mxu0 %v1611
      %v1613 = vand.u32 %v1237, 4294901760
      %1614 = vmatmul.f32.gmra.mxu0 %v1613
      %v1615 = vpop.f32.mrf.mxu0
      %v1616 = vadd.f32 %v1589, %v1615
      %v1617 = vand.u32 %v1240, 4294901760
      %1618 = vmatmul.f32.gmra.mxu0 %v1617
      %v1619 = vpop.f32.mrf.mxu0
      %v1620 = vadd.f32 %v1593, %v1619
      %1621 = vdwg.mxu0
      %1622 = vrot.lane.b32.xlu0 %v1426, 34
      %v1623 = vpop.permute.xlu0 %1622
      %1624 = vrot.lane.b32.xlu0 %v1430, 34
      %v1625 = vpop.permute.xlu0 %1624
      %1626 = vrot.lane.b32.xlu0 %v1616, 34
      %v1627 = vpop.permute.xlu0 %1626
      %1628 = vrot.lane.b32.xlu0 %v1620, 34
      %v1629 = vpop.permute.xlu0 %1628
      %v1630 = vsel %vm717, %v1623, %v1627
      %v1631 = vsel %vm717, %v1625, %v1629
      %v1632 = vsel %vm717, %v1627, %v1623
      %v1633 = vsel %vm717, %v1629, %v1625
      %v1634 = vmul.f32 %v1632, %v720
      %v1635 = vmul.f32 %v1630, %v721
      %v1636 = vmul.f32 %v1633, %v720
      %v1637 = vmul.f32 %v1631, %v721
      %1638 = vset.pattern.permute.xlu0 0
      %1639 = vperm.xlu0 %1638, %v294
      %v1640 = vpop.permute.xlu0 %1639
      %1642 = vset.pattern.permute.xlu0 0
      %1643 = vperm.xlu0 %1642, %v295
      %v1644 = vpop.permute.xlu0 %1643
      %v1646 = vmul.f32 %v1634, %v1640
      %v1647 = vmul.f32 %v1635, %v1640
      %v1648 = vmul.f32 %v1636, %v1644
      %v1649 = vmul.f32 %v1637, %v1644
      %v1650 = vadd.f32 %v1646, 0.0
      %v1651 = vadd.f32 %v1647, 0.0
      %v1652 = vadd.f32 %v1648, 0.0
      %v1653 = vadd.f32 %v1649, 0.0
      %1654 = vrot.lane.b32.xlu0 %v1426, 33
      %v1655 = vpop.permute.xlu0 %1654
      %1656 = vrot.lane.b32.xlu0 %v1430, 33
      %v1657 = vpop.permute.xlu0 %1656
      %1658 = vrot.lane.b32.xlu0 %v1616, 33
      %v1659 = vpop.permute.xlu0 %1658
      %1660 = vrot.lane.b32.xlu0 %v1620, 33
      %v1661 = vpop.permute.xlu0 %1660
      %v1662 = vsel %vm736, %v1655, %v1659
      %v1663 = vsel %vm736, %v1657, %v1661
      %v1664 = vsel %vm736, %v1659, %v1655
      %v1665 = vsel %vm736, %v1661, %v1657
      %v1666 = vmul.f32 %v1664, %v739
      %v1667 = vmul.f32 %v1662, %v740
      %v1668 = vmul.f32 %v1665, %v739
      %v1669 = vmul.f32 %v1663, %v740
      %1670 = vset.pattern.permute.xlu0 1
      %1671 = vperm.xlu0 %1670, %v294
      %v1672 = vpop.permute.xlu0 %1671
      %1674 = vset.pattern.permute.xlu0 1
      %1675 = vperm.xlu0 %1674, %v295
      %v1676 = vpop.permute.xlu0 %1675
      %v1678 = vmul.f32 %v1666, %v1672
      %v1679 = vmul.f32 %v1667, %v1672
      %v1680 = vmul.f32 %v1668, %v1676
      %v1681 = vmul.f32 %v1669, %v1676
      %v1682 = vadd.f32 %v1650, %v1678
      %v1683 = vadd.f32 %v1651, %v1679
      %v1684 = vadd.f32 %v1652, %v1680
      %v1685 = vadd.f32 %v1653, %v1681
      %1686 = vrot.lane.b32.xlu0 %v1426, 32
      %v1687 = vpop.permute.xlu0 %1686
      %1688 = vrot.lane.b32.xlu0 %v1430, 32
      %v1689 = vpop.permute.xlu0 %1688
      %1690 = vrot.lane.b32.xlu0 %v1616, 32
      %v1691 = vpop.permute.xlu0 %1690
      %1692 = vrot.lane.b32.xlu0 %v1620, 32
      %v1693 = vpop.permute.xlu0 %1692
      %v1694 = vsel %vm755, %v1687, %v1691
      %v1695 = vsel %vm755, %v1689, %v1693
      %v1696 = vsel %vm755, %v1691, %v1687
      %v1697 = vsel %vm755, %v1693, %v1689
      %v1698 = vmul.f32 %v1696, %v758
      %v1699 = vmul.f32 %v1694, %v759
      %v1700 = vmul.f32 %v1697, %v758
      %v1701 = vmul.f32 %v1695, %v759
      %1702 = vset.pattern.permute.xlu0 2
      %1703 = vperm.xlu0 %1702, %v294
      %v1704 = vpop.permute.xlu0 %1703
      %1706 = vset.pattern.permute.xlu0 2
      %1707 = vperm.xlu0 %1706, %v295
      %v1708 = vpop.permute.xlu0 %1707
      %v1710 = vmul.f32 %v1698, %v1704
      %v1711 = vmul.f32 %v1699, %v1704
      %v1712 = vmul.f32 %v1700, %v1708
      %v1713 = vmul.f32 %v1701, %v1708
      %v1714 = vadd.f32 %v1682, %v1710
      %v1715 = vadd.f32 %v1683, %v1711
      %v1716 = vadd.f32 %v1684, %v1712
      %v1717 = vadd.f32 %v1685, %v1713
      %1718 = vrot.lane.b32.xlu0 %v1426, 31
      %v1719 = vpop.permute.xlu0 %1718
      %1720 = vrot.lane.b32.xlu0 %v1430, 31
      %v1721 = vpop.permute.xlu0 %1720
      %1722 = vrot.lane.b32.xlu0 %v1616, 31
      %v1723 = vpop.permute.xlu0 %1722
      %1724 = vrot.lane.b32.xlu0 %v1620, 31
      %v1725 = vpop.permute.xlu0 %1724
      %v1726 = vsel %vm774, %v1719, %v1723
      %v1727 = vsel %vm774, %v1721, %v1725
      %v1728 = vsel %vm774, %v1723, %v1719
      %v1729 = vsel %vm774, %v1725, %v1721
      %v1730 = vmul.f32 %v1728, %v777
      %v1731 = vmul.f32 %v1726, %v778
      %v1732 = vmul.f32 %v1729, %v777
      %v1733 = vmul.f32 %v1727, %v778
      %1734 = vset.pattern.permute.xlu0 3
      %1735 = vperm.xlu0 %1734, %v294
      %v1736 = vpop.permute.xlu0 %1735
      %1738 = vset.pattern.permute.xlu0 3
      %1739 = vperm.xlu0 %1738, %v295
      %v1740 = vpop.permute.xlu0 %1739
      %v1742 = vmul.f32 %v1730, %v1736
      %v1743 = vmul.f32 %v1731, %v1736
      %v1744 = vmul.f32 %v1732, %v1740
      %v1745 = vmul.f32 %v1733, %v1740
      %v1746 = vadd.f32 %v1714, %v1742
      %v1747 = vadd.f32 %v1715, %v1743
      %v1748 = vadd.f32 %v1716, %v1744
      %v1749 = vadd.f32 %v1717, %v1745
      %1750 = vrot.lane.b32.xlu0 %v1426, 30
      %v1751 = vpop.permute.xlu0 %1750
      %1752 = vrot.lane.b32.xlu0 %v1430, 30
      %v1753 = vpop.permute.xlu0 %1752
      %1754 = vrot.lane.b32.xlu0 %v1616, 30
      %v1755 = vpop.permute.xlu0 %1754
      %1756 = vrot.lane.b32.xlu0 %v1620, 30
      %v1757 = vpop.permute.xlu0 %1756
      %v1758 = vsel %vm793, %v1751, %v1755
      %v1759 = vsel %vm793, %v1753, %v1757
      %v1760 = vsel %vm793, %v1755, %v1751
      %v1761 = vsel %vm793, %v1757, %v1753
      %v1762 = vmul.f32 %v1760, %v796
      %v1763 = vmul.f32 %v1758, %v797
      %v1764 = vmul.f32 %v1761, %v796
      %v1765 = vmul.f32 %v1759, %v797
      %1766 = vset.pattern.permute.xlu0 4
      %1767 = vperm.xlu0 %1766, %v294
      %v1768 = vpop.permute.xlu0 %1767
      %1770 = vset.pattern.permute.xlu0 4
      %1771 = vperm.xlu0 %1770, %v295
      %v1772 = vpop.permute.xlu0 %1771
      %v1774 = vmul.f32 %v1762, %v1768
      %v1775 = vmul.f32 %v1763, %v1768
      %v1776 = vmul.f32 %v1764, %v1772
      %v1777 = vmul.f32 %v1765, %v1772
      %v1778 = vadd.f32 %v1746, %v1774
      %v1779 = vadd.f32 %v1747, %v1775
      %v1780 = vadd.f32 %v1748, %v1776
      %v1781 = vadd.f32 %v1749, %v1777
      %1782 = vrot.lane.b32.xlu0 %v1426, 18
      %v1783 = vpop.permute.xlu0 %1782
      %1784 = vrot.lane.b32.xlu0 %v1430, 18
      %v1785 = vpop.permute.xlu0 %1784
      %1786 = vrot.lane.b32.xlu0 %v1616, 18
      %v1787 = vpop.permute.xlu0 %1786
      %1788 = vrot.lane.b32.xlu0 %v1620, 18
      %v1789 = vpop.permute.xlu0 %1788
      %v1790 = vsel %vm812, %v1783, %v1787
      %v1791 = vsel %vm812, %v1785, %v1789
      %v1792 = vsel %vm812, %v1787, %v1783
      %v1793 = vsel %vm812, %v1789, %v1785
      %v1794 = vmul.f32 %v1792, %v815
      %v1795 = vmul.f32 %v1790, %v816
      %v1796 = vmul.f32 %v1793, %v815
      %v1797 = vmul.f32 %v1791, %v816
      %1798 = vset.pattern.permute.xlu0 5
      %1799 = vperm.xlu0 %1798, %v294
      %v1800 = vpop.permute.xlu0 %1799
      %1802 = vset.pattern.permute.xlu0 5
      %1803 = vperm.xlu0 %1802, %v295
      %v1804 = vpop.permute.xlu0 %1803
      %v1806 = vmul.f32 %v1794, %v1800
      %v1807 = vmul.f32 %v1795, %v1800
      %v1808 = vmul.f32 %v1796, %v1804
      %v1809 = vmul.f32 %v1797, %v1804
      %v1810 = vadd.f32 %v1778, %v1806
      %v1811 = vadd.f32 %v1779, %v1807
      %v1812 = vadd.f32 %v1780, %v1808
      %v1813 = vadd.f32 %v1781, %v1809
      %1814 = vrot.lane.b32.xlu0 %v1426, 17
      %v1815 = vpop.permute.xlu0 %1814
      %1816 = vrot.lane.b32.xlu0 %v1430, 17
      %v1817 = vpop.permute.xlu0 %1816
      %1818 = vrot.lane.b32.xlu0 %v1616, 17
      %v1819 = vpop.permute.xlu0 %1818
      %1820 = vrot.lane.b32.xlu0 %v1620, 17
      %v1821 = vpop.permute.xlu0 %1820
      %v1822 = vsel %vm831, %v1815, %v1819
      %v1823 = vsel %vm831, %v1817, %v1821
      %v1824 = vsel %vm831, %v1819, %v1815
      %v1825 = vsel %vm831, %v1821, %v1817
      %v1826 = vmul.f32 %v1824, %v834
      %v1827 = vmul.f32 %v1822, %v835
      %v1828 = vmul.f32 %v1825, %v834
      %v1829 = vmul.f32 %v1823, %v835
      %1830 = vset.pattern.permute.xlu0 6
      %1831 = vperm.xlu0 %1830, %v294
      %v1832 = vpop.permute.xlu0 %1831
      %1834 = vset.pattern.permute.xlu0 6
      %1835 = vperm.xlu0 %1834, %v295
      %v1836 = vpop.permute.xlu0 %1835
      %v1838 = vmul.f32 %v1826, %v1832
      %v1839 = vmul.f32 %v1827, %v1832
      %v1840 = vmul.f32 %v1828, %v1836
      %v1841 = vmul.f32 %v1829, %v1836
      %v1842 = vadd.f32 %v1810, %v1838
      %v1843 = vadd.f32 %v1811, %v1839
      %v1844 = vadd.f32 %v1812, %v1840
      %v1845 = vadd.f32 %v1813, %v1841
      %1846 = vrot.lane.b32.xlu0 %v1426, 16
      %v1847 = vpop.permute.xlu0 %1846
      %1848 = vrot.lane.b32.xlu0 %v1430, 16
      %v1849 = vpop.permute.xlu0 %1848
      %1850 = vrot.lane.b32.xlu0 %v1616, 16
      %v1851 = vpop.permute.xlu0 %1850
      %1852 = vrot.lane.b32.xlu0 %v1620, 16
      %v1853 = vpop.permute.xlu0 %1852
      %v1854 = vsel %vm850, %v1847, %v1851
      %v1855 = vsel %vm850, %v1849, %v1853
      %v1856 = vsel %vm850, %v1851, %v1847
      %v1857 = vsel %vm850, %v1853, %v1849
      %v1858 = vmul.f32 %v1856, %v853
      %v1859 = vmul.f32 %v1854, %v854
      %v1860 = vmul.f32 %v1857, %v853
      %v1861 = vmul.f32 %v1855, %v854
      %1862 = vset.pattern.permute.xlu0 7
      %1863 = vperm.xlu0 %1862, %v294
      %v1864 = vpop.permute.xlu0 %1863
      %1866 = vset.pattern.permute.xlu0 7
      %1867 = vperm.xlu0 %1866, %v295
      %v1868 = vpop.permute.xlu0 %1867
      %v1870 = vmul.f32 %v1858, %v1864
      %v1871 = vmul.f32 %v1859, %v1864
      %v1872 = vmul.f32 %v1860, %v1868
      %v1873 = vmul.f32 %v1861, %v1868
      %v1874 = vadd.f32 %v1842, %v1870
      %v1875 = vadd.f32 %v1843, %v1871
      %v1876 = vadd.f32 %v1844, %v1872
      %v1877 = vadd.f32 %v1845, %v1873
      %1878 = vrot.lane.b32.xlu0 %v1426, 15
      %v1879 = vpop.permute.xlu0 %1878
      %1880 = vrot.lane.b32.xlu0 %v1430, 15
      %v1881 = vpop.permute.xlu0 %1880
      %1882 = vrot.lane.b32.xlu0 %v1616, 15
      %v1883 = vpop.permute.xlu0 %1882
      %1884 = vrot.lane.b32.xlu0 %v1620, 15
      %v1885 = vpop.permute.xlu0 %1884
      %v1886 = vsel %vm869, %v1879, %v1883
      %v1887 = vsel %vm869, %v1881, %v1885
      %v1888 = vsel %vm869, %v1883, %v1879
      %v1889 = vsel %vm869, %v1885, %v1881
      %v1890 = vmul.f32 %v1888, %v872
      %v1891 = vmul.f32 %v1886, %v873
      %v1892 = vmul.f32 %v1889, %v872
      %v1893 = vmul.f32 %v1887, %v873
      %1894 = vset.pattern.permute.xlu0 8
      %1895 = vperm.xlu0 %1894, %v294
      %v1896 = vpop.permute.xlu0 %1895
      %1898 = vset.pattern.permute.xlu0 8
      %1899 = vperm.xlu0 %1898, %v295
      %v1900 = vpop.permute.xlu0 %1899
      %v1902 = vmul.f32 %v1890, %v1896
      %v1903 = vmul.f32 %v1891, %v1896
      %v1904 = vmul.f32 %v1892, %v1900
      %v1905 = vmul.f32 %v1893, %v1900
      %v1906 = vadd.f32 %v1874, %v1902
      %v1907 = vadd.f32 %v1875, %v1903
      %v1908 = vadd.f32 %v1876, %v1904
      %v1909 = vadd.f32 %v1877, %v1905
      %1910 = vrot.lane.b32.xlu0 %v1426, 14
      %v1911 = vpop.permute.xlu0 %1910
      %1912 = vrot.lane.b32.xlu0 %v1430, 14
      %v1913 = vpop.permute.xlu0 %1912
      %1914 = vrot.lane.b32.xlu0 %v1616, 14
      %v1915 = vpop.permute.xlu0 %1914
      %1916 = vrot.lane.b32.xlu0 %v1620, 14
      %v1917 = vpop.permute.xlu0 %1916
      %v1918 = vsel %vm888, %v1911, %v1915
      %v1919 = vsel %vm888, %v1913, %v1917
      %v1920 = vsel %vm888, %v1915, %v1911
      %v1921 = vsel %vm888, %v1917, %v1913
      %v1922 = vmul.f32 %v1920, %v891
      %v1923 = vmul.f32 %v1918, %v892
      %v1924 = vmul.f32 %v1921, %v891
      %v1925 = vmul.f32 %v1919, %v892
      %1926 = vset.pattern.permute.xlu0 9
      %1927 = vperm.xlu0 %1926, %v294
      %v1928 = vpop.permute.xlu0 %1927
      %1930 = vset.pattern.permute.xlu0 9
      %1931 = vperm.xlu0 %1930, %v295
      %v1932 = vpop.permute.xlu0 %1931
      %v1934 = vmul.f32 %v1922, %v1928
      %v1935 = vmul.f32 %v1923, %v1928
      %v1936 = vmul.f32 %v1924, %v1932
      %v1937 = vmul.f32 %v1925, %v1932
      %v1938 = vadd.f32 %v1906, %v1934
      %v1939 = vadd.f32 %v1907, %v1935
      %v1940 = vadd.f32 %v1908, %v1936
      %v1941 = vadd.f32 %v1909, %v1937
      %1942 = vrot.lane.b32.xlu0 %v1426, 2
      %v1943 = vpop.permute.xlu0 %1942
      %1944 = vrot.lane.b32.xlu0 %v1430, 2
      %v1945 = vpop.permute.xlu0 %1944
      %1946 = vrot.lane.b32.xlu0 %v1616, 2
      %v1947 = vpop.permute.xlu0 %1946
      %1948 = vrot.lane.b32.xlu0 %v1620, 2
      %v1949 = vpop.permute.xlu0 %1948
      %v1950 = vsel %vm907, %v1943, %v1947
      %v1951 = vsel %vm907, %v1945, %v1949
      %v1952 = vsel %vm907, %v1947, %v1943
      %v1953 = vsel %vm907, %v1949, %v1945
      %v1954 = vmul.f32 %v1952, %v910
      %v1955 = vmul.f32 %v1950, %v911
      %v1956 = vmul.f32 %v1953, %v910
      %v1957 = vmul.f32 %v1951, %v911
      %1958 = vset.pattern.permute.xlu0 10
      %1959 = vperm.xlu0 %1958, %v294
      %v1960 = vpop.permute.xlu0 %1959
      %1962 = vset.pattern.permute.xlu0 10
      %1963 = vperm.xlu0 %1962, %v295
      %v1964 = vpop.permute.xlu0 %1963
      %v1966 = vmul.f32 %v1954, %v1960
      %v1967 = vmul.f32 %v1955, %v1960
      %v1968 = vmul.f32 %v1956, %v1964
      %v1969 = vmul.f32 %v1957, %v1964
      %v1970 = vadd.f32 %v1938, %v1966
      %v1971 = vadd.f32 %v1939, %v1967
      %v1972 = vadd.f32 %v1940, %v1968
      %v1973 = vadd.f32 %v1941, %v1969
      %1974 = vrot.lane.b32.xlu0 %v1426, 1
      %v1975 = vpop.permute.xlu0 %1974
      %1976 = vrot.lane.b32.xlu0 %v1430, 1
      %v1977 = vpop.permute.xlu0 %1976
      %1978 = vrot.lane.b32.xlu0 %v1616, 1
      %v1979 = vpop.permute.xlu0 %1978
      %1980 = vrot.lane.b32.xlu0 %v1620, 1
      %v1981 = vpop.permute.xlu0 %1980
      %v1982 = vsel %vm926, %v1975, %v1979
      %v1983 = vsel %vm926, %v1977, %v1981
      %v1984 = vsel %vm926, %v1979, %v1975
      %v1985 = vsel %vm926, %v1981, %v1977
      %v1986 = vmul.f32 %v1984, %v929
      %v1987 = vmul.f32 %v1982, %v930
      %v1988 = vmul.f32 %v1985, %v929
      %v1989 = vmul.f32 %v1983, %v930
      %1990 = vset.pattern.permute.xlu0 11
      %1991 = vperm.xlu0 %1990, %v294
      %v1992 = vpop.permute.xlu0 %1991
      %1994 = vset.pattern.permute.xlu0 11
      %1995 = vperm.xlu0 %1994, %v295
      %v1996 = vpop.permute.xlu0 %1995
      %v1998 = vmul.f32 %v1986, %v1992
      %v1999 = vmul.f32 %v1987, %v1992
      %v2000 = vmul.f32 %v1988, %v1996
      %v2001 = vmul.f32 %v1989, %v1996
      %v2002 = vadd.f32 %v1970, %v1998
      %v2003 = vadd.f32 %v1971, %v1999
      %v2004 = vadd.f32 %v1972, %v2000
      %v2005 = vadd.f32 %v1973, %v2001
      %v2006 = vmul.f32 %v1426, %v941
      %v2007 = vmul.f32 %v1616, %v942
      %v2008 = vmul.f32 %v1430, %v941
      %v2009 = vmul.f32 %v1620, %v942
      %2010 = vset.pattern.permute.xlu0 12
      %2011 = vperm.xlu0 %2010, %v294
      %v2012 = vpop.permute.xlu0 %2011
      %2014 = vset.pattern.permute.xlu0 12
      %2015 = vperm.xlu0 %2014, %v295
      %v2016 = vpop.permute.xlu0 %2015
      %v2018 = vmul.f32 %v2006, %v2012
      %v2019 = vmul.f32 %v2007, %v2012
      %v2020 = vmul.f32 %v2008, %v2016
      %v2021 = vmul.f32 %v2009, %v2016
      %v2022 = vadd.f32 %v2002, %v2018
      %v2023 = vadd.f32 %v2003, %v2019
      %v2024 = vadd.f32 %v2004, %v2020
      %v2025 = vadd.f32 %v2005, %v2021
      %2026 = vrot.lane.b32.xlu0 %v1426, 127
      %v2027 = vpop.permute.xlu0 %2026
      %2028 = vrot.lane.b32.xlu0 %v1430, 127
      %v2029 = vpop.permute.xlu0 %2028
      %2030 = vrot.lane.b32.xlu0 %v1616, 127
      %v2031 = vpop.permute.xlu0 %2030
      %2032 = vrot.lane.b32.xlu0 %v1620, 127
      %v2033 = vpop.permute.xlu0 %2032
      %v2034 = vsel %vm957, %v2027, %v2031
      %v2035 = vsel %vm957, %v2029, %v2033
      %v2036 = vsel %vm957, %v2031, %v2027
      %v2037 = vsel %vm957, %v2033, %v2029
      %v2038 = vmul.f32 %v2034, %v960
      %v2039 = vmul.f32 %v2036, %v961
      %v2040 = vmul.f32 %v2035, %v960
      %v2041 = vmul.f32 %v2037, %v961
      %2042 = vset.pattern.permute.xlu0 13
      %2043 = vperm.xlu0 %2042, %v294
      %v2044 = vpop.permute.xlu0 %2043
      %2046 = vset.pattern.permute.xlu0 13
      %2047 = vperm.xlu0 %2046, %v295
      %v2048 = vpop.permute.xlu0 %2047
      %v2050 = vmul.f32 %v2038, %v2044
      %v2051 = vmul.f32 %v2039, %v2044
      %v2052 = vmul.f32 %v2040, %v2048
      %v2053 = vmul.f32 %v2041, %v2048
      %v2054 = vadd.f32 %v2022, %v2050
      %v2055 = vadd.f32 %v2023, %v2051
      %v2056 = vadd.f32 %v2024, %v2052
      %v2057 = vadd.f32 %v2025, %v2053
      %2058 = vrot.lane.b32.xlu0 %v1426, 126
      %v2059 = vpop.permute.xlu0 %2058
      %2060 = vrot.lane.b32.xlu0 %v1430, 126
      %v2061 = vpop.permute.xlu0 %2060
      %2062 = vrot.lane.b32.xlu0 %v1616, 126
      %v2063 = vpop.permute.xlu0 %2062
      %2064 = vrot.lane.b32.xlu0 %v1620, 126
      %v2065 = vpop.permute.xlu0 %2064
      %v2066 = vsel %vm976, %v2059, %v2063
      %v2067 = vsel %vm976, %v2061, %v2065
      %v2068 = vsel %vm976, %v2063, %v2059
      %v2069 = vsel %vm976, %v2065, %v2061
      %v2070 = vmul.f32 %v2066, %v979
      %v2071 = vmul.f32 %v2068, %v980
      %v2072 = vmul.f32 %v2067, %v979
      %v2073 = vmul.f32 %v2069, %v980
      %2074 = vset.pattern.permute.xlu0 14
      %2075 = vperm.xlu0 %2074, %v294
      %v2076 = vpop.permute.xlu0 %2075
      %2078 = vset.pattern.permute.xlu0 14
      %2079 = vperm.xlu0 %2078, %v295
      %v2080 = vpop.permute.xlu0 %2079
      %v2082 = vmul.f32 %v2070, %v2076
      %v2083 = vmul.f32 %v2071, %v2076
      %v2084 = vmul.f32 %v2072, %v2080
      %v2085 = vmul.f32 %v2073, %v2080
      %v2086 = vadd.f32 %v2054, %v2082
      %v2087 = vadd.f32 %v2055, %v2083
      %v2088 = vadd.f32 %v2056, %v2084
      %v2089 = vadd.f32 %v2057, %v2085
      %2090 = vrot.lane.b32.xlu0 %v1426, 114
      %v2091 = vpop.permute.xlu0 %2090
      %2092 = vrot.lane.b32.xlu0 %v1430, 114
      %v2093 = vpop.permute.xlu0 %2092
      %2094 = vrot.lane.b32.xlu0 %v1616, 114
      %v2095 = vpop.permute.xlu0 %2094
      %2096 = vrot.lane.b32.xlu0 %v1620, 114
      %v2097 = vpop.permute.xlu0 %2096
      %v2098 = vsel %vm995, %v2091, %v2095
      %v2099 = vsel %vm995, %v2093, %v2097
      %v2100 = vsel %vm995, %v2095, %v2091
      %v2101 = vsel %vm995, %v2097, %v2093
      %v2102 = vmul.f32 %v2098, %v998
      %v2103 = vmul.f32 %v2100, %v999
      %v2104 = vmul.f32 %v2099, %v998
      %v2105 = vmul.f32 %v2101, %v999
      %2106 = vset.pattern.permute.xlu0 15
      %2107 = vperm.xlu0 %2106, %v294
      %v2108 = vpop.permute.xlu0 %2107
      %2110 = vset.pattern.permute.xlu0 15
      %2111 = vperm.xlu0 %2110, %v295
      %v2112 = vpop.permute.xlu0 %2111
      %v2114 = vmul.f32 %v2102, %v2108
      %v2115 = vmul.f32 %v2103, %v2108
      %v2116 = vmul.f32 %v2104, %v2112
      %v2117 = vmul.f32 %v2105, %v2112
      %v2118 = vadd.f32 %v2086, %v2114
      %v2119 = vadd.f32 %v2087, %v2115
      %v2120 = vadd.f32 %v2088, %v2116
      %v2121 = vadd.f32 %v2089, %v2117
      %2122 = vrot.lane.b32.xlu0 %v1426, 113
      %v2123 = vpop.permute.xlu0 %2122
      %2124 = vrot.lane.b32.xlu0 %v1430, 113
      %v2125 = vpop.permute.xlu0 %2124
      %2126 = vrot.lane.b32.xlu0 %v1616, 113
      %v2127 = vpop.permute.xlu0 %2126
      %2128 = vrot.lane.b32.xlu0 %v1620, 113
      %v2129 = vpop.permute.xlu0 %2128
      %v2130 = vsel %vm1014, %v2123, %v2127
      %v2131 = vsel %vm1014, %v2125, %v2129
      %v2132 = vsel %vm1014, %v2127, %v2123
      %v2133 = vsel %vm1014, %v2129, %v2125
      %v2134 = vmul.f32 %v2130, %v1017
      %v2135 = vmul.f32 %v2132, %v1018
      %v2136 = vmul.f32 %v2131, %v1017
      %v2137 = vmul.f32 %v2133, %v1018
      %2138 = vset.pattern.permute.xlu0 16
      %2139 = vperm.xlu0 %2138, %v294
      %v2140 = vpop.permute.xlu0 %2139
      %2142 = vset.pattern.permute.xlu0 16
      %2143 = vperm.xlu0 %2142, %v295
      %v2144 = vpop.permute.xlu0 %2143
      %v2146 = vmul.f32 %v2134, %v2140
      %v2147 = vmul.f32 %v2135, %v2140
      %v2148 = vmul.f32 %v2136, %v2144
      %v2149 = vmul.f32 %v2137, %v2144
      %v2150 = vadd.f32 %v2118, %v2146
      %v2151 = vadd.f32 %v2119, %v2147
      %v2152 = vadd.f32 %v2120, %v2148
      %v2153 = vadd.f32 %v2121, %v2149
      %2154 = vrot.lane.b32.xlu0 %v1426, 112
      %v2155 = vpop.permute.xlu0 %2154
      %2156 = vrot.lane.b32.xlu0 %v1430, 112
      %v2157 = vpop.permute.xlu0 %2156
      %2158 = vrot.lane.b32.xlu0 %v1616, 112
      %v2159 = vpop.permute.xlu0 %2158
      %2160 = vrot.lane.b32.xlu0 %v1620, 112
      %v2161 = vpop.permute.xlu0 %2160
      %v2162 = vsel %vm1033, %v2155, %v2159
      %v2163 = vsel %vm1033, %v2157, %v2161
      %v2164 = vsel %vm1033, %v2159, %v2155
      %v2165 = vsel %vm1033, %v2161, %v2157
      %v2166 = vmul.f32 %v2162, %v1036
      %v2167 = vmul.f32 %v2164, %v1037
      %v2168 = vmul.f32 %v2163, %v1036
      %v2169 = vmul.f32 %v2165, %v1037
      %2170 = vset.pattern.permute.xlu0 17
      %2171 = vperm.xlu0 %2170, %v294
      %v2172 = vpop.permute.xlu0 %2171
      %2174 = vset.pattern.permute.xlu0 17
      %2175 = vperm.xlu0 %2174, %v295
      %v2176 = vpop.permute.xlu0 %2175
      %v2178 = vmul.f32 %v2166, %v2172
      %v2179 = vmul.f32 %v2167, %v2172
      %v2180 = vmul.f32 %v2168, %v2176
      %v2181 = vmul.f32 %v2169, %v2176
      %v2182 = vadd.f32 %v2150, %v2178
      %v2183 = vadd.f32 %v2151, %v2179
      %v2184 = vadd.f32 %v2152, %v2180
      %v2185 = vadd.f32 %v2153, %v2181
      %2186 = vrot.lane.b32.xlu0 %v1426, 111
      %v2187 = vpop.permute.xlu0 %2186
      %2188 = vrot.lane.b32.xlu0 %v1430, 111
      %v2189 = vpop.permute.xlu0 %2188
      %2190 = vrot.lane.b32.xlu0 %v1616, 111
      %v2191 = vpop.permute.xlu0 %2190
      %2192 = vrot.lane.b32.xlu0 %v1620, 111
      %v2193 = vpop.permute.xlu0 %2192
      %v2194 = vsel %vm1052, %v2187, %v2191
      %v2195 = vsel %vm1052, %v2189, %v2193
      %v2196 = vsel %vm1052, %v2191, %v2187
      %v2197 = vsel %vm1052, %v2193, %v2189
      %v2198 = vmul.f32 %v2194, %v1055
      %v2199 = vmul.f32 %v2196, %v1056
      %v2200 = vmul.f32 %v2195, %v1055
      %v2201 = vmul.f32 %v2197, %v1056
      %2202 = vset.pattern.permute.xlu0 18
      %2203 = vperm.xlu0 %2202, %v294
      %v2204 = vpop.permute.xlu0 %2203
      %2206 = vset.pattern.permute.xlu0 18
      %2207 = vperm.xlu0 %2206, %v295
      %v2208 = vpop.permute.xlu0 %2207
      %v2210 = vmul.f32 %v2198, %v2204
      %v2211 = vmul.f32 %v2199, %v2204
      %v2212 = vmul.f32 %v2200, %v2208
      %v2213 = vmul.f32 %v2201, %v2208
      %v2214 = vadd.f32 %v2182, %v2210
      %v2215 = vadd.f32 %v2183, %v2211
      %v2216 = vadd.f32 %v2184, %v2212
      %v2217 = vadd.f32 %v2185, %v2213
      %2218 = vrot.lane.b32.xlu0 %v1426, 110
      %v2219 = vpop.permute.xlu0 %2218
      %2220 = vrot.lane.b32.xlu0 %v1430, 110
      %v2221 = vpop.permute.xlu0 %2220
      %2222 = vrot.lane.b32.xlu0 %v1616, 110
      %v2223 = vpop.permute.xlu0 %2222
      %2224 = vrot.lane.b32.xlu0 %v1620, 110
      %v2225 = vpop.permute.xlu0 %2224
      %v2226 = vsel %vm1071, %v2219, %v2223
      %v2227 = vsel %vm1071, %v2221, %v2225
      %v2228 = vsel %vm1071, %v2223, %v2219
      %v2229 = vsel %vm1071, %v2225, %v2221
      %v2230 = vmul.f32 %v2226, %v1074
      %v2231 = vmul.f32 %v2228, %v1075
      %v2232 = vmul.f32 %v2227, %v1074
      %v2233 = vmul.f32 %v2229, %v1075
      %2234 = vset.pattern.permute.xlu0 19
      %2235 = vperm.xlu0 %2234, %v294
      %v2236 = vpop.permute.xlu0 %2235
      %2238 = vset.pattern.permute.xlu0 19
      %2239 = vperm.xlu0 %2238, %v295
      %v2240 = vpop.permute.xlu0 %2239
      %v2242 = vmul.f32 %v2230, %v2236
      %v2243 = vmul.f32 %v2231, %v2236
      %v2244 = vmul.f32 %v2232, %v2240
      %v2245 = vmul.f32 %v2233, %v2240
      %v2246 = vadd.f32 %v2214, %v2242
      %v2247 = vadd.f32 %v2215, %v2243
      %v2248 = vadd.f32 %v2216, %v2244
      %v2249 = vadd.f32 %v2217, %v2245
      %2250 = vrot.lane.b32.xlu0 %v1426, 98
      %v2251 = vpop.permute.xlu0 %2250
      %2252 = vrot.lane.b32.xlu0 %v1430, 98
      %v2253 = vpop.permute.xlu0 %2252
      %2254 = vrot.lane.b32.xlu0 %v1616, 98
      %v2255 = vpop.permute.xlu0 %2254
      %2256 = vrot.lane.b32.xlu0 %v1620, 98
      %v2257 = vpop.permute.xlu0 %2256
      %v2258 = vsel %vm1090, %v2251, %v2255
      %v2259 = vsel %vm1090, %v2253, %v2257
      %v2260 = vsel %vm1090, %v2255, %v2251
      %v2261 = vsel %vm1090, %v2257, %v2253
      %v2262 = vmul.f32 %v2258, %v1093
      %v2263 = vmul.f32 %v2260, %v1094
      %v2264 = vmul.f32 %v2259, %v1093
      %v2265 = vmul.f32 %v2261, %v1094
      %2266 = vset.pattern.permute.xlu0 20
      %2267 = vperm.xlu0 %2266, %v294
      %v2268 = vpop.permute.xlu0 %2267
      %2270 = vset.pattern.permute.xlu0 20
      %2271 = vperm.xlu0 %2270, %v295
      %v2272 = vpop.permute.xlu0 %2271
      %v2274 = vmul.f32 %v2262, %v2268
      %v2275 = vmul.f32 %v2263, %v2268
      %v2276 = vmul.f32 %v2264, %v2272
      %v2277 = vmul.f32 %v2265, %v2272
      %v2278 = vadd.f32 %v2246, %v2274
      %v2279 = vadd.f32 %v2247, %v2275
      %v2280 = vadd.f32 %v2248, %v2276
      %v2281 = vadd.f32 %v2249, %v2277
      %2282 = vrot.lane.b32.xlu0 %v1426, 97
      %v2283 = vpop.permute.xlu0 %2282
      %2284 = vrot.lane.b32.xlu0 %v1430, 97
      %v2285 = vpop.permute.xlu0 %2284
      %2286 = vrot.lane.b32.xlu0 %v1616, 97
      %v2287 = vpop.permute.xlu0 %2286
      %2288 = vrot.lane.b32.xlu0 %v1620, 97
      %v2289 = vpop.permute.xlu0 %2288
      %v2290 = vsel %vm1109, %v2283, %v2287
      %v2291 = vsel %vm1109, %v2285, %v2289
      %v2292 = vsel %vm1109, %v2287, %v2283
      %v2293 = vsel %vm1109, %v2289, %v2285
      %v2294 = vmul.f32 %v2290, %v1112
      %v2295 = vmul.f32 %v2292, %v1113
      %v2296 = vmul.f32 %v2291, %v1112
      %v2297 = vmul.f32 %v2293, %v1113
      %2298 = vset.pattern.permute.xlu0 21
      %2299 = vperm.xlu0 %2298, %v294
      %v2300 = vpop.permute.xlu0 %2299
      %2302 = vset.pattern.permute.xlu0 21
      %2303 = vperm.xlu0 %2302, %v295
      %v2304 = vpop.permute.xlu0 %2303
      %v2306 = vmul.f32 %v2294, %v2300
      %v2307 = vmul.f32 %v2295, %v2300
      %v2308 = vmul.f32 %v2296, %v2304
      %v2309 = vmul.f32 %v2297, %v2304
      %v2310 = vadd.f32 %v2278, %v2306
      %v2311 = vadd.f32 %v2279, %v2307
      %v2312 = vadd.f32 %v2280, %v2308
      %v2313 = vadd.f32 %v2281, %v2309
      %2314 = vrot.lane.b32.xlu0 %v1426, 96
      %v2315 = vpop.permute.xlu0 %2314
      %2316 = vrot.lane.b32.xlu0 %v1430, 96
      %v2317 = vpop.permute.xlu0 %2316
      %2318 = vrot.lane.b32.xlu0 %v1616, 96
      %v2319 = vpop.permute.xlu0 %2318
      %2320 = vrot.lane.b32.xlu0 %v1620, 96
      %v2321 = vpop.permute.xlu0 %2320
      %v2322 = vsel %vm1128, %v2315, %v2319
      %v2323 = vsel %vm1128, %v2317, %v2321
      %v2324 = vsel %vm1128, %v2319, %v2315
      %v2325 = vsel %vm1128, %v2321, %v2317
      %v2326 = vmul.f32 %v2322, %v1131
      %v2327 = vmul.f32 %v2324, %v1132
      %v2328 = vmul.f32 %v2323, %v1131
      %v2329 = vmul.f32 %v2325, %v1132
      %2330 = vset.pattern.permute.xlu0 22
      %2331 = vperm.xlu0 %2330, %v294
      %v2332 = vpop.permute.xlu0 %2331
      %2334 = vset.pattern.permute.xlu0 22
      %2335 = vperm.xlu0 %2334, %v295
      %v2336 = vpop.permute.xlu0 %2335
      %v2338 = vmul.f32 %v2326, %v2332
      %v2339 = vmul.f32 %v2327, %v2332
      %v2340 = vmul.f32 %v2328, %v2336
      %v2341 = vmul.f32 %v2329, %v2336
      %v2342 = vadd.f32 %v2310, %v2338
      %v2343 = vadd.f32 %v2311, %v2339
      %v2344 = vadd.f32 %v2312, %v2340
      %v2345 = vadd.f32 %v2313, %v2341
      %2346 = vrot.lane.b32.xlu0 %v1426, 95
      %v2347 = vpop.permute.xlu0 %2346
      %2348 = vrot.lane.b32.xlu0 %v1430, 95
      %v2349 = vpop.permute.xlu0 %2348
      %2350 = vrot.lane.b32.xlu0 %v1616, 95
      %v2351 = vpop.permute.xlu0 %2350
      %2352 = vrot.lane.b32.xlu0 %v1620, 95
      %v2353 = vpop.permute.xlu0 %2352
      %v2354 = vsel %vm1147, %v2347, %v2351
      %v2355 = vsel %vm1147, %v2349, %v2353
      %v2356 = vsel %vm1147, %v2351, %v2347
      %v2357 = vsel %vm1147, %v2353, %v2349
      %v2358 = vmul.f32 %v2354, %v1150
      %v2359 = vmul.f32 %v2356, %v1151
      %v2360 = vmul.f32 %v2355, %v1150
      %v2361 = vmul.f32 %v2357, %v1151
      %2362 = vset.pattern.permute.xlu0 23
      %2363 = vperm.xlu0 %2362, %v294
      %v2364 = vpop.permute.xlu0 %2363
      %2366 = vset.pattern.permute.xlu0 23
      %2367 = vperm.xlu0 %2366, %v295
      %v2368 = vpop.permute.xlu0 %2367
      %v2370 = vmul.f32 %v2358, %v2364
      %v2371 = vmul.f32 %v2359, %v2364
      %v2372 = vmul.f32 %v2360, %v2368
      %v2373 = vmul.f32 %v2361, %v2368
      %v2374 = vadd.f32 %v2342, %v2370
      %v2375 = vadd.f32 %v2343, %v2371
      %v2376 = vadd.f32 %v2344, %v2372
      %v2377 = vadd.f32 %v2345, %v2373
      %2378 = vrot.lane.b32.xlu0 %v1426, 94
      %v2379 = vpop.permute.xlu0 %2378
      %2380 = vrot.lane.b32.xlu0 %v1430, 94
      %v2381 = vpop.permute.xlu0 %2380
      %2382 = vrot.lane.b32.xlu0 %v1616, 94
      %v2383 = vpop.permute.xlu0 %2382
      %2384 = vrot.lane.b32.xlu0 %v1620, 94
      %v2385 = vpop.permute.xlu0 %2384
      %v2386 = vsel %vm1166, %v2379, %v2383
      %v2387 = vsel %vm1166, %v2381, %v2385
      %v2388 = vsel %vm1166, %v2383, %v2379
      %v2389 = vsel %vm1166, %v2385, %v2381
      %v2390 = vmul.f32 %v2386, %v1169
      %v2391 = vmul.f32 %v2388, %v1170
      %v2392 = vmul.f32 %v2387, %v1169
      %v2393 = vmul.f32 %v2389, %v1170
      %2394 = vset.pattern.permute.xlu0 24
      %2395 = vperm.xlu0 %2394, %v294
      %v2396 = vpop.permute.xlu0 %2395
      %2398 = vset.pattern.permute.xlu0 24
      %2399 = vperm.xlu0 %2398, %v295
      %v2400 = vpop.permute.xlu0 %2399
      %v2402 = vmul.f32 %v2390, %v2396
      %v2403 = vmul.f32 %v2391, %v2396
      %v2404 = vmul.f32 %v2392, %v2400
      %v2405 = vmul.f32 %v2393, %v2400
      %v2406 = vadd.f32 %v2374, %v2402
      %v2407 = vadd.f32 %v2375, %v2403
      %v2408 = vadd.f32 %v2376, %v2404
      %v2409 = vadd.f32 %v2377, %v2405
      %2410 = vset.pattern.permute.xlu0 26
      %2411 = vperm.xlu0 %2410, %v294
      %v2412 = vpop.permute.xlu0 %2411
      %2414 = vset.pattern.permute.xlu0 26
      %2415 = vperm.xlu0 %2414, %v295
      %v2416 = vpop.permute.xlu0 %2415
      %v2418 = vadd.f32 %v2406, %v2412
      %v2419 = vadd.f32 %v2407, %v2412
      %v2420 = vadd.f32 %v2408, %v2416
      %v2421 = vadd.f32 %v2409, %v2416
      %v2422 = vadd.f32 %v1426, %v179
      %v2423 = vadd.f32 %v1616, %v180
      %2424 = vst [vmem:[%s177] sm:$0xf] %v2422
      %2425 = vst [vmem:[%s177 + $0x8] sm:$0xf] %v2423
      %v2428 = vrot.slane %v179, 4
      %v2429 = vrot.slane %v180, 4
      %v2432 = vadd.f32 %v2418, %v2428
      %v2433 = vadd.f32 %v2419, %v2429
      %v2436 = vrot.slane %v2432, 4
      %v2437 = vrot.slane %v2433, 4
      %2440 = vst [vmem:[%s177] sm:$0xf0] %v2436
      %2441 = vst [vmem:[%s177 + $0x8] sm:$0xf0] %v2437
      %v2444 = vrot.slane %v181, 4
      %v2445 = vrot.slane %v182, 4
      %v2448 = vadd.f32 %v1426, %v2444
      %v2449 = vadd.f32 %v1616, %v2445
      %v2452 = vrot.slane %v2448, 4
      %v2453 = vrot.slane %v2449, 4
      %2456 = vst [vmem:[%s177 + $0x10] sm:$0xf] %v2452
      %2457 = vst [vmem:[%s177 + $0x18] sm:$0xf] %v2453
      %v2458 = vadd.f32 %v2418, %v181
      %v2459 = vadd.f32 %v2419, %v182
      %2460 = vst [vmem:[%s177 + $0x10] sm:$0xf0] %v2458
      %2461 = vst [vmem:[%s177 + $0x18] sm:$0xf0] %v2459
      %v2462 = vadd.f32 %v1430, %v183
      %v2463 = vadd.f32 %v1620, %v184
      %2464 = vst [vmem:[%s177 + $0x20] sm:$0xf] %v2462
      %2465 = vst [vmem:[%s177 + $0x28] sm:$0xf] %v2463
      %v2468 = vrot.slane %v183, 4
      %v2469 = vrot.slane %v184, 4
      %v2472 = vadd.f32 %v2420, %v2468
      %v2473 = vadd.f32 %v2421, %v2469
      %v2476 = vrot.slane %v2472, 4
      %v2477 = vrot.slane %v2473, 4
      %2480 = vst [vmem:[%s177 + $0x20] sm:$0xf0] %v2476
      %2481 = vst [vmem:[%s177 + $0x28] sm:$0xf0] %v2477
      %v2484 = vrot.slane %v185, 4
      %v2485 = vrot.slane %v186, 4
      %v2488 = vadd.f32 %v1430, %v2484
      %v2489 = vadd.f32 %v1620, %v2485
      %v2492 = vrot.slane %v2488, 4
      %v2493 = vrot.slane %v2489, 4
      %2496 = vst [vmem:[%s177 + $0x30] sm:$0xf] %v2492
      %2497 = vst [vmem:[%s177 + $0x38] sm:$0xf] %v2493
      %v2498 = vadd.f32 %v2420, %v185
      %v2499 = vadd.f32 %v2421, %v186
      %2500 = vst [vmem:[%s177 + $0x30] sm:$0xf0] %v2498
      %2501 = vst [vmem:[%s177 + $0x38] sm:$0xf0] %v2499
      %s2502 = smul.u32 4, %s14
      %p2503 = scmp.lt.s32.totalorder %s2502, 7
      %s2504 = scalar_select %p2503, %s2502, 7
      %s2505 = smul.addr %s2504, 2
      %s2506 = smul.addr %s2505, 8
      %s2507 = scalar_lea.vmem %s3, %s2506
      // Predicated region
      $region33: #{ghost_bottleneck.1} parent=31 // pred_check
        %p2508 = pneg %p100
      $region34: #{ghost_bottleneck.1} parent=31 // pred_check_branch
        %2510 = sbr.rel (%p2508) target = $region36
      $region35: #{ghost_bottleneck.1} parent=31 // pred_region
        %s2511 = smul.u32 4, %s14
      $region36: #{ghost_bottleneck.1} parent=31 // pred_fallthru
        _
    $region32: #{ghost_bottleneck.1} parent=5 // pred_fallthru
      _
    %p2512 = scmp.le.s32.totalorder 2, %s9
    // Predicated region
    $region37: #{ghost_bottleneck.1} parent=5 // pred_check
      %p2513 = pneg %p2512
    $region38: #{ghost_bottleneck.1} parent=5 // pred_check_branch
      %2515 = sbr.rel (%p2513) target = $region40
    $region39: #{ghost_bottleneck.1} parent=5 // pred_region
      %s2516 = ssub.s32 %s9, 2
      // Predicated region
      $region41: #{ghost_bottleneck.1} parent=39 // pred_check
        %p2517 = pneg %p106
      $region42: #{ghost_bottleneck.1} parent=39 // pred_check_branch
        %2519 = sbr.rel (%p2517) target = $region44
      $region43: #{ghost_bottleneck.1} parent=39 // pred_region
        %s2520 = smul.u32 4, %s15
        %p2521 = scmp.lt.s32.totalorder %s2520, 7
        %s2522 = scalar_select %p2521, %s2520, 7
        %s2523 = smul.addr %s2522, 2
        %s2524 = smul.addr %s2523, 8
        %s2525 = scalar_lea.vmem %s3, %s2524
      $region44: #{ghost_bottleneck.1} parent=39 // pred_fallthru
        _
    $region40: #{ghost_bottleneck.1} parent=5 // pred_fallthru
      _
  $region6: #{ghost_bottleneck.1} parent=0 // loop_footer
    %s13 = sadd.s32 1, %s9
  $region7: #{ghost_bottleneck.1} parent=0 // loop_footer_branch
    %8 = sbr.rel target = $region3
  $region8: #{ghost_bottleneck.1} parent=0 // loop_exit
    _

</llo_original>
